<compile_context>
chip_gen: v7x
topology: tpu7x:2x2x1
jax: 0.10.0
libtpu: 0.0.40
codegen_flags: <defaults>
</compile_context>

<pallas_src>
import jax
import jax.numpy as jnp
from jax.experimental import pallas as pl
from jax.experimental.pallas import tpu as pltpu

N_EMBD = 384
HIDDEN = 4 * N_EMBD  # 1536


# ---------------------------------------------------------------------------
# Fused FFN kernel: one (tm, C) row-tile of  relu(x @ W1 + b1) @ W2 + b2
# ---------------------------------------------------------------------------
def ffn_kernel(x_ref, w1_ref, b1_ref, w2_ref, b2_ref, o_ref):
    # In-kernel bf16 cast of x (avoids a separate XLA cast op / HBM pass).
    x = x_ref[...].astype(jnp.bfloat16)                                # (tm, C)
    h = jnp.dot(x, w1_ref[...], preferred_element_type=jnp.float32)   # (tm, 4C) f32
    # Fused bias + ReLU + downcast -> only the bf16 hidden stays live for dot2.
    h = jnp.maximum(h + b1_ref[...], 0.0).astype(jnp.bfloat16)        # (tm, 4C) bf16
    y = jnp.dot(h, w2_ref[...], preferred_element_type=jnp.float32)   # (tm, C) f32
    y = y + b2_ref[...]
    # TODO(synk): training-mode dropout (p=0.3) not implemented (eval = identity).
    o_ref[...] = y.astype(o_ref.dtype)


def _choose_tm(m):
    # Largest tile that still gives >=2 grid steps (v7x megacore + overhead
    # amortization). Tiny inputs fall through to a single padded 128-row step.
    for tm in (1024, 512, 256, 128):
        if pl.cdiv(m, tm) >= 2:
            return tm
    return 128


def feed_forward(x, params):
    """x: (B, T, C) float32 -> (B, T, C) float32."""
    B, T, C = x.shape
    M = B * T

    x2 = x.reshape(M, C)                      # stays f32; cast happens in-kernel
    w1 = params["w1"]                         # (C, 4C)  bf16, stored persistently
    w2 = params["w2"]                         # (4C, C)  bf16, stored persistently
    b1 = params["b1"].reshape(1, HIDDEN)      # f32
    b2 = params["b2"].reshape(1, C)           # f32

    tm = _choose_tm(M)
    n_steps = pl.cdiv(M, tm)
    Mp = n_steps * tm
    if Mp != M:
        x2 = jnp.pad(x2, ((0, Mp - M), (0, 0)))   # padded rows sliced off below

    out = pl.pallas_call(
        ffn_kernel,
        out_shape=jax.ShapeDtypeStruct((Mp, C), jnp.float32),
        grid_spec=pltpu.PrefetchScalarGridSpec(
            num_scalar_prefetch=0,
            grid=(n_steps,),
            in_specs=[
                pl.BlockSpec((tm, C), lambda i: (i, 0)),          # x row-tile (f32)
                pl.BlockSpec((C, HIDDEN), lambda i: (0, 0)),      # W1 (VMEM-resident)
                pl.BlockSpec((1, HIDDEN), lambda i: (0, 0)),      # b1
                pl.BlockSpec((HIDDEN, C), lambda i: (0, 0)),      # W2 (VMEM-resident)
                pl.BlockSpec((1, C), lambda i: (0, 0)),           # b2
            ],
            out_specs=pl.BlockSpec((tm, C), lambda i: (i, 0)),
        ),
        compiler_params=pltpu.CompilerParams(
            dimension_semantics=("parallel",),
            vmem_limit_bytes=48 * 1024 * 1024,   # tm=1024 step ~19 MiB; <64 MiB (v7x)
        ),
    )(x2, w1, b1, w2, b2)

    if Mp != M:
        out = out[:M]
    return out.reshape(B, T, C)


def init_params(key):
    k1, k2, k3, k4 = jax.random.split(key, 4)
    s1 = 1.0 / jnp.sqrt(jnp.float32(N_EMBD))
    s2 = 1.0 / jnp.sqrt(jnp.float32(HIDDEN))
    # Stored as (in, out) = transpose of torch Linear.weight so y = x @ W + b.
    # Weights kept in bf16 persistently (MXU operands); biases stay f32.
    w1 = (jax.random.normal(k1, (N_EMBD, HIDDEN), jnp.float32) * s1).astype(jnp.bfloat16)
    b1 = jax.random.normal(k2, (HIDDEN,), jnp.float32) * s1
    w2 = (jax.random.normal(k3, (HIDDEN, N_EMBD), jnp.float32) * s2).astype(jnp.bfloat16)
    b2 = jax.random.normal(k4, (N_EMBD,), jnp.float32) * s2
    return {"w1": w1, "b1": b1, "w2": w2, "b2": b2}


if __name__ == "__main__":
    key = jax.random.PRNGKey(0)
    kx, kp = jax.random.split(key)
    B, T = 2, 8
    x = jax.random.normal(kx, (B, T, N_EMBD), jnp.float32)
    params = init_params(kp)

    out = feed_forward(x, params)
    jax.block_until_ready(out)
    assert out.shape == (B, T, N_EMBD)

    # Pure-JAX f32 reference (bf16 MXU operands => generous tolerance).
    w1f = params["w1"].astype(jnp.float32)
    w2f = params["w2"].astype(jnp.float32)
    h_ref = jnp.maximum(x @ w1f + params["b1"], 0.0)
    ref = h_ref @ w2f + params["b2"]
    max_err = jnp.max(jnp.abs(out - ref))
    assert jnp.isfinite(max_err) and max_err < 0.25, f"max_err={max_err}"

    print("KERNEL_OK")
</pallas_src>

<mosaic_0001>
module attributes {stable_mosaic.version = 11 : i64} {
  func.func @ffn_kernel(%arg0: i32, %arg1: memref<128x384xf32, #tpu.memory_space<vmem>>, %arg2: memref<384x1536xbf16, #tpu.memory_space<vmem>>, %arg3: memref<1x1536xf32, #tpu.memory_space<vmem>>, %arg4: memref<1536x384xbf16, #tpu.memory_space<vmem>>, %arg5: memref<1x384xf32, #tpu.memory_space<vmem>>, %arg6: memref<128x384xf32, #tpu.memory_space<vmem>>) attributes {dimension_semantics = [#tpu.dimension_semantics<parallel>], iteration_bounds = array<i64: 1>, scalar_prefetch = 0 : i64, scratch_operands = 0 : i64, tpu.core_type = #tpu.core_type<tc>, window_params = [{transform_indices = @transform_0, window_bounds = array<i64: 128, 384>}, {pipeline_mode = #tpu.pipeline_mode<synchronous>, transform_indices = @transform_1, window_bounds = array<i64: 384, 1536>}, {pipeline_mode = #tpu.pipeline_mode<synchronous>, transform_indices = @transform_2, window_bounds = array<i64: 1, 1536>}, {pipeline_mode = #tpu.pipeline_mode<synchronous>, transform_indices = @transform_3, window_bounds = array<i64: 1536, 384>}, {pipeline_mode = #tpu.pipeline_mode<synchronous>, transform_indices = @transform_4, window_bounds = array<i64: 1, 384>}, {transform_indices = @transform_5, window_bounds = array<i64: 128, 384>}]} {
    %c0 = arith.constant 0 : index
    %c0_0 = arith.constant 0 : index
    %0 = vector.load %arg1[%c0, %c0_0] : memref<128x384xf32, #tpu.memory_space<vmem>>, vector<128x384xf32>
    %1 = arith.truncf %0 : vector<128x384xf32> to vector<128x384xbf16>
    %c0_1 = arith.constant 0 : index
    %c0_2 = arith.constant 0 : index
    %2 = vector.load %arg2[%c0_1, %c0_2] : memref<384x1536xbf16, #tpu.memory_space<vmem>>, vector<384x1536xbf16>
    %cst = arith.constant dense<0.000000e+00> : vector<128x1536xf32>
    %3 = tpu.matmul %1, %2, %cst {dimension_numbers = #tpu.dot_dimension_numbers<[1], [0], [0], [1], [0, 0, 1, 1], [], []>} : vector<128x384xbf16>, vector<384x1536xbf16>, vector<128x1536xf32> -> vector<128x1536xf32>
    %c0_3 = arith.constant 0 : index
    %c0_4 = arith.constant 0 : index
    %4 = vector.load %arg3[%c0_3, %c0_4] : memref<1x1536xf32, #tpu.memory_space<vmem>>, vector<1x1536xf32>
    %5 = vector.broadcast %4 : vector<1x1536xf32> to vector<128x1536xf32>
    %6 = arith.addf %3, %5 : vector<128x1536xf32>
    %cst_5 = arith.constant 0.000000e+00 : f32
    %7 = vector.broadcast %cst_5 : f32 to vector<128x1536xf32>
    %8 = arith.maximumf %6, %7 : vector<128x1536xf32>
    %9 = arith.truncf %8 : vector<128x1536xf32> to vector<128x1536xbf16>
    %c0_6 = arith.constant 0 : index
    %c0_7 = arith.constant 0 : index
    %10 = vector.load %arg4[%c0_6, %c0_7] : memref<1536x384xbf16, #tpu.memory_space<vmem>>, vector<1536x384xbf16>
    %cst_8 = arith.constant dense<0.000000e+00> : vector<128x384xf32>
    %11 = tpu.matmul %9, %10, %cst_8 {dimension_numbers = #tpu.dot_dimension_numbers<[1], [0], [0], [1], [0, 0, 1, 1], [], []>} : vector<128x1536xbf16>, vector<1536x384xbf16>, vector<128x384xf32> -> vector<128x384xf32>
    %c0_9 = arith.constant 0 : index
    %c0_10 = arith.constant 0 : index
    %12 = vector.load %arg5[%c0_9, %c0_10] : memref<1x384xf32, #tpu.memory_space<vmem>>, vector<1x384xf32>
    %13 = vector.broadcast %12 : vector<1x384xf32> to vector<128x384xf32>
    %14 = arith.addf %11, %13 : vector<128x384xf32>
    %c0_11 = arith.constant 0 : index
    %c0_12 = arith.constant 0 : index
    %15 = vector.load %arg6[%c0_11, %c0_12] : memref<128x384xf32, #tpu.memory_space<vmem>>, vector<128x384xf32>
    tpu.vector_store %arg6[%c0_11, %c0_12], %14 {strides = array<i32>} : memref<128x384xf32, #tpu.memory_space<vmem>>, vector<128x384xf32>,
    return
  }
  func.func @transform_0(%arg0: i32) -> (i32, i32) {
    %c0_i32 = arith.constant 0 : i32
    %c0_i32_0 = arith.constant 0 : i32
    return %arg0, %c0_i32 : i32, i32
  }
  func.func @transform_1(%arg0: i32) -> (i32, i32) {
    %c0_i32 = arith.constant 0 : i32
    %c0_i32_0 = arith.constant 0 : i32
    %c0_i32_1 = arith.constant 0 : i32
    return %c0_i32, %c0_i32_0 : i32, i32
  }
  func.func @transform_2(%arg0: i32) -> (i32, i32) {
    %c0_i32 = arith.constant 0 : i32
    %c0_i32_0 = arith.constant 0 : i32
    %c0_i32_1 = arith.constant 0 : i32
    return %c0_i32, %c0_i32_0 : i32, i32
  }
  func.func @transform_3(%arg0: i32) -> (i32, i32) {
    %c0_i32 = arith.constant 0 : i32
    %c0_i32_0 = arith.constant 0 : i32
    %c0_i32_1 = arith.constant 0 : i32
    return %c0_i32, %c0_i32_0 : i32, i32
  }
  func.func @transform_4(%arg0: i32) -> (i32, i32) {
    %c0_i32 = arith.constant 0 : i32
    %c0_i32_0 = arith.constant 0 : i32
    %c0_i32_1 = arith.constant 0 : i32
    return %c0_i32, %c0_i32_0 : i32, i32
  }
  func.func @transform_5(%arg0: i32) -> (i32, i32) {
    %c0_i32 = arith.constant 0 : i32
    %c0_i32_0 = arith.constant 0 : i32
    return %arg0, %c0_i32 : i32, i32
  }
}

</mosaic_0001>

<llo_original>
// kernel: tpu_custom_call.1
$region0: #{tpu_custom_call.1}
  #allocation0 [shape = 'u32[]', space=smem, size = 0x4, offset = 0x4, fixed_abs, tag = 'smem constant byte address 0x4 - core index']
  #allocation1 [shape = 'u32[144,128]{1,0:T(1,128)}', space=vmem, size = 0x12000, scoped, tag = 'internal scratch']
  %s0 = inlined_call_operand.hbm [shape: f32[128,384], index: 0, kind: input, shape index: {}]
  %s1 = inlined_call_operand.hbm [shape: bf16[384,1536], index: 1, kind: input, shape index: {}]
  %s2 = inlined_call_operand.hbm [shape: f32[1,1536], index: 2, kind: input, shape index: {}]
  %s3 = inlined_call_operand.hbm [shape: bf16[1536,384], index: 3, kind: input, shape index: {}]
  %s4 = inlined_call_operand.hbm [shape: f32[1,384], index: 4, kind: input, shape index: {}]
  %s5 = inlined_call_operand.hbm [shape: f32[128,384], index: 5, kind: output, shape index: {}]
  %s6 = sld [smem:[#allocation0]]
  $region50: #{tpu_custom_call.1} parent=0
    _
  %s8 = ssub.s32 1, %s6
  %s9 = scalar_select 0, %s8, %s6
  $region1: #{tpu_custom_call.1} parent=0
    #allocation2 [shape = 'u8[196608]{0}', space=vmem, size = 0x30000, scoped, tag = 'input window, operand 0, single buffered']
    #allocation3 [shape = 's32[1]{0}', space=sflag, size = 0x4, scoped, tag = 'scoped memory for tpu_custom_call.1']
    #allocation4 [shape = 's32[1]{0}', space=sflag, size = 0x4, scoped, tag = 'scoped memory for tpu_custom_call.1']
    #allocation5 [shape = 'u8[1179648]{0}', space=vmem, size = 0x120000, scoped, tag = 'input window, operand 1, single buffered']
    #allocation6 [shape = 's32[1]{0}', space=sflag, size = 0x4, scoped, tag = 'scoped memory for tpu_custom_call.1']
    #allocation7 [shape = 'u8[6144]{0}', space=vmem, size = 0x1800, scoped, tag = 'input window, operand 2, single buffered']
    #allocation8 [shape = 'u8[1179648]{0}', space=vmem, size = 0x120000, scoped, tag = 'input window, operand 3, single buffered']
    #allocation9 [shape = 's32[1]{0}', space=sflag, size = 0x4, scoped, tag = 'scoped memory for tpu_custom_call.1']
    #allocation10 [shape = 'u8[1536]{0}', space=vmem, size = 0x800, scoped, tag = 'input window, operand 4, single buffered']
    #allocation11 [shape = 'u8[196608]{0}', space=vmem, size = 0x30000, scoped, tag = 'output window, operand 0, single buffered']
    %10 = vsyncpa [#allocation3], 0
    %11 = vsyncpa [#allocation6], 0
    %12 = vsyncpa [#allocation9], 0
    %13 = vsyncpa [#allocation4], 0
    // Predicated region
    $region2: #{tpu_custom_call.1} parent=1 // pred_check
      _
    $region3: #{tpu_custom_call.1} parent=1 // pred_check_branch
      %15 = sbr.rel (0) target = $region5
    $region4: #{tpu_custom_call.1} parent=1 // pred_region
      %s17 = ssub.s32 6144, 6144
      %18 = vsyncadd [#allocation3], %s17
      %s19 = sshll.u32 [#allocation2], 4
      %s20 = int_to_ptr.vmem [resolvable:$true] %s19
      %25 = dma.hbm_to_vmem [thread:$0]  %s0, 6144, %s20, [#allocation3], 384, 384, 24
    $region5: #{tpu_custom_call.1} parent=1 // pred_fallthru
      _
    // Predicated region
    $region6: #{tpu_custom_call.1} parent=1 // pred_check
      _
    $region7: #{tpu_custom_call.1} parent=1 // pred_check_branch
      %27 = sbr.rel (0) target = $region9
    $region8: #{tpu_custom_call.1} parent=1 // pred_region
      %s29 = ssub.s32 36864, 36864
      %30 = vsyncadd [#allocation6], %s29
      %s31 = sshll.u32 [#allocation5], 4
      %s32 = int_to_ptr.vmem [resolvable:$true] %s31
      %37 = dma.hbm_to_vmem [thread:$0]  %s1, 36864, %s32, [#allocation6], 768, 768, 48
    $region9: #{tpu_custom_call.1} parent=1 // pred_fallthru
      _
    // Predicated region
    $region10: #{tpu_custom_call.1} parent=1 // pred_check
      _
    $region11: #{tpu_custom_call.1} parent=1 // pred_check_branch
      %39 = sbr.rel (0) target = $region13
    $region12: #{tpu_custom_call.1} parent=1 // pred_region
      %s41 = ssub.s32 192, 192
      %42 = vsyncadd [#allocation6], %s41
      %s44 = sshll.u32 [#allocation7], 4
      %s45 = int_to_ptr.vmem [resolvable:$true] %s44
      %47 = dma.hbm_to_vmem [thread:$0]  %s2, 192, %s45, [#allocation6]
    $region13: #{tpu_custom_call.1} parent=1 // pred_fallthru
      _
    // Predicated region
    $region14: #{tpu_custom_call.1} parent=1 // pred_check
      _
    $region15: #{tpu_custom_call.1} parent=1 // pred_check_branch
      %49 = sbr.rel (0) target = $region17
    $region16: #{tpu_custom_call.1} parent=1 // pred_region
      %s51 = ssub.s32 36864, 36864
      %52 = vsyncadd [#allocation9], %s51
      %s53 = sshll.u32 [#allocation8], 4
      %s54 = int_to_ptr.vmem [resolvable:$true] %s53
      %59 = dma.hbm_to_vmem [thread:$0]  %s3, 36864, %s54, [#allocation9], 192, 192, 12
    $region17: #{tpu_custom_call.1} parent=1 // pred_fallthru
      _
    // Predicated region
    $region18: #{tpu_custom_call.1} parent=1 // pred_check
      _
    $region19: #{tpu_custom_call.1} parent=1 // pred_check_branch
      %61 = sbr.rel (0) target = $region21
    $region20: #{tpu_custom_call.1} parent=1 // pred_region
      %s63 = ssub.s32 48, 48
      %64 = vsyncadd [#allocation9], %s63
      %s66 = sshll.u32 [#allocation10], 4
      %s67 = int_to_ptr.vmem [resolvable:$true] %s66
      %69 = dma.hbm_to_vmem [thread:$0]  %s4, 48, %s67, [#allocation9]
    $region21: #{tpu_custom_call.1} parent=1 // pred_fallthru
      _
    // Predicated region
    $region22: #{tpu_custom_call.1} parent=1 // pred_check
      _
    $region23: #{tpu_custom_call.1} parent=1 // pred_check_branch
      %71 = sbr.rel (0) target = $region25
    $region24: #{tpu_custom_call.1} parent=1 // pred_region
      %72 = dma.done [#allocation3], 6144
    $region25: #{tpu_custom_call.1} parent=1 // pred_fallthru
      _
    // Predicated region
    $region26: #{tpu_custom_call.1} parent=1 // pred_check
      _
    $region27: #{tpu_custom_call.1} parent=1 // pred_check_branch
      %74 = sbr.rel (0) target = $region29
    $region28: #{tpu_custom_call.1} parent=1 // pred_region
      %75 = dma.done [#allocation6], 36864
    $region29: #{tpu_custom_call.1} parent=1 // pred_fallthru
      _
    // Predicated region
    $region30: #{tpu_custom_call.1} parent=1 // pred_check
      _
    $region31: #{tpu_custom_call.1} parent=1 // pred_check_branch
      %77 = sbr.rel (0) target = $region33
    $region32: #{tpu_custom_call.1} parent=1 // pred_region
      %78 = dma.done [#allocation6], 192
    $region33: #{tpu_custom_call.1} parent=1 // pred_fallthru
      _
    // Predicated region
    $region34: #{tpu_custom_call.1} parent=1 // pred_check
      _
    $region35: #{tpu_custom_call.1} parent=1 // pred_check_branch
      %80 = sbr.rel (0) target = $region37
    $region36: #{tpu_custom_call.1} parent=1 // pred_region
      %81 = dma.done [#allocation9], 36864
    $region37: #{tpu_custom_call.1} parent=1 // pred_fallthru
      _
    // Predicated region
    $region38: #{tpu_custom_call.1} parent=1 // pred_check
      _
    $region39: #{tpu_custom_call.1} parent=1 // pred_check_branch
      %83 = sbr.rel (0) target = $region41
    $region40: #{tpu_custom_call.1} parent=1 // pred_region
      %84 = dma.done [#allocation9], 48
    $region41: #{tpu_custom_call.1} parent=1 // pred_fallthru
      _
    %v86 = vld [vmem:[#allocation2] sm:$0xff]
    %v87 = vld [vmem:[#allocation2 + $0x8] sm:$0xff]
    %v88 = vld [vmem:[#allocation2 + $0x10] sm:$0xff]
    %v89 = vld [vmem:[#allocation2 + $0x18] sm:$0xff]
    %v90 = vld [vmem:[#allocation2 + $0x20] sm:$0xff]
    %v91 = vld [vmem:[#allocation2 + $0x28] sm:$0xff]
    %v92 = vld [vmem:[#allocation2 + $0x30] sm:$0xff]
    %v93 = vld [vmem:[#allocation2 + $0x38] sm:$0xff]
    %v94 = vld [vmem:[#allocation2 + $0x40] sm:$0xff]
    %v95 = vld [vmem:[#allocation2 + $0x48] sm:$0xff]
    %v96 = vld [vmem:[#allocation2 + $0x50] sm:$0xff]
    %v97 = vld [vmem:[#allocation2 + $0x58] sm:$0xff]
    %v98 = vld [vmem:[#allocation2 + $0x60] sm:$0xff]
    %v99 = vld [vmem:[#allocation2 + $0x68] sm:$0xff]
    %v100 = vld [vmem:[#allocation2 + $0x70] sm:$0xff]
    %v101 = vld [vmem:[#allocation2 + $0x78] sm:$0xff]
    %v102 = vld [vmem:[#allocation2 + $0x80] sm:$0xff]
    %v103 = vld [vmem:[#allocation2 + $0x88] sm:$0xff]
    %v104 = vld [vmem:[#allocation2 + $0x90] sm:$0xff]
    %v105 = vld [vmem:[#allocation2 + $0x98] sm:$0xff]
    %v106 = vld [vmem:[#allocation2 + $0xa0] sm:$0xff]
    %v107 = vld [vmem:[#allocation2 + $0xa8] sm:$0xff]
    %v108 = vld [vmem:[#allocation2 + $0xb0] sm:$0xff]
    %v109 = vld [vmem:[#allocation2 + $0xb8] sm:$0xff]
    %v110 = vld [vmem:[#allocation2 + $0xc0] sm:$0xff]
    %v111 = vld [vmem:[#allocation2 + $0xc8] sm:$0xff]
    %v112 = vld [vmem:[#allocation2 + $0xd0] sm:$0xff]
    %v113 = vld [vmem:[#allocation2 + $0xd8] sm:$0xff]
    %v114 = vld [vmem:[#allocation2 + $0xe0] sm:$0xff]
    %v115 = vld [vmem:[#allocation2 + $0xe8] sm:$0xff]
    %v116 = vld [vmem:[#allocation2 + $0xf0] sm:$0xff]
    %v117 = vld [vmem:[#allocation2 + $0xf8] sm:$0xff]
    %v118 = vld [vmem:[#allocation2 + $0x100] sm:$0xff]
    %v119 = vld [vmem:[#allocation2 + $0x108] sm:$0xff]
    %v120 = vld [vmem:[#allocation2 + $0x110] sm:$0xff]
    %v121 = vld [vmem:[#allocation2 + $0x118] sm:$0xff]
    %v122 = vld [vmem:[#allocation2 + $0x120] sm:$0xff]
    %v123 = vld [vmem:[#allocation2 + $0x128] sm:$0xff]
    %v124 = vld [vmem:[#allocation2 + $0x130] sm:$0xff]
    %v125 = vld [vmem:[#allocation2 + $0x138] sm:$0xff]
    %v126 = vld [vmem:[#allocation2 + $0x140] sm:$0xff]
    %v127 = vld [vmem:[#allocation2 + $0x148] sm:$0xff]
    %v128 = vld [vmem:[#allocation2 + $0x150] sm:$0xff]
    %v129 = vld [vmem:[#allocation2 + $0x158] sm:$0xff]
    %v130 = vld [vmem:[#allocation2 + $0x160] sm:$0xff]
    %v131 = vld [vmem:[#allocation2 + $0x168] sm:$0xff]
    %v132 = vld [vmem:[#allocation2 + $0x170] sm:$0xff]
    %v133 = vld [vmem:[#allocation2 + $0x178] sm:$0xff]
    %v134 = vpack.c.bf16 %v89, %v86
    %v135 = vpack.c.bf16 %v90, %v87
    %v136 = vpack.c.bf16 %v91, %v88
    %v137 = vpack.c.bf16 %v95, %v92
    %v138 = vpack.c.bf16 %v96, %v93
    %v139 = vpack.c.bf16 %v97, %v94
    %v140 = vpack.c.bf16 %v101, %v98
    %v141 = vpack.c.bf16 %v102, %v99
    %v142 = vpack.c.bf16 %v103, %v100
    %v143 = vpack.c.bf16 %v107, %v104
    %v144 = vpack.c.bf16 %v108, %v105
    %v145 = vpack.c.bf16 %v109, %v106
    %v146 = vpack.c.bf16 %v113, %v110
    %v147 = vpack.c.bf16 %v114, %v111
    %v148 = vpack.c.bf16 %v115, %v112
    %v149 = vpack.c.bf16 %v119, %v116
    %v150 = vpack.c.bf16 %v120, %v117
    %v151 = vpack.c.bf16 %v121, %v118
    %v152 = vpack.c.bf16 %v125, %v122
    %v153 = vpack.c.bf16 %v126, %v123
    %v154 = vpack.c.bf16 %v127, %v124
    %v155 = vpack.c.bf16 %v131, %v128
    %v156 = vpack.c.bf16 %v132, %v129
    %v157 = vpack.c.bf16 %v133, %v130
    %v158 = vld [vmem:[#allocation5] sm:$0xff]
    %v159 = vld [vmem:[#allocation5 + $0x8] sm:$0xff]
    %v160 = vld [vmem:[#allocation5 + $0x10] sm:$0xff]
    %v161 = vld [vmem:[#allocation5 + $0x18] sm:$0xff]
    %v162 = vld [vmem:[#allocation5 + $0x20] sm:$0xff]
    %v163 = vld [vmem:[#allocation5 + $0x28] sm:$0xff]
    %v164 = vld [vmem:[#allocation5 + $0x30] sm:$0xff]
    %v165 = vld [vmem:[#allocation5 + $0x38] sm:$0xff]
    %v166 = vld [vmem:[#allocation5 + $0x40] sm:$0xff]
    %v167 = vld [vmem:[#allocation5 + $0x48] sm:$0xff]
    %v168 = vld [vmem:[#allocation5 + $0x50] sm:$0xff]
    %v169 = vld [vmem:[#allocation5 + $0x58] sm:$0xff]
    %v170 = vld [vmem:[#allocation5 + $0x60] sm:$0xff]
    %v171 = vld [vmem:[#allocation5 + $0x68] sm:$0xff]
    %v172 = vld [vmem:[#allocation5 + $0x70] sm:$0xff]
    %v173 = vld [vmem:[#allocation5 + $0x78] sm:$0xff]
    %v174 = vld [vmem:[#allocation5 + $0x80] sm:$0xff]
    %v175 = vld [vmem:[#allocation5 + $0x88] sm:$0xff]
    %v176 = vld [vmem:[#allocation5 + $0x90] sm:$0xff]
    %v177 = vld [vmem:[#allocation5 + $0x98] sm:$0xff]
    %v178 = vld [vmem:[#allocation5 + $0xa0] sm:$0xff]
    %v179 = vld [vmem:[#allocation5 + $0xa8] sm:$0xff]
    %v180 = vld [vmem:[#allocation5 + $0xb0] sm:$0xff]
    %v181 = vld [vmem:[#allocation5 + $0xb8] sm:$0xff]
    %v182 = vld [vmem:[#allocation5 + $0xc0] sm:$0xff]
    %v183 = vld [vmem:[#allocation5 + $0xc8] sm:$0xff]
    %v184 = vld [vmem:[#allocation5 + $0xd0] sm:$0xff]
    %v185 = vld [vmem:[#allocation5 + $0xd8] sm:$0xff]
    %v186 = vld [vmem:[#allocation5 + $0xe0] sm:$0xff]
    %v187 = vld [vmem:[#allocation5 + $0xe8] sm:$0xff]
    %v188 = vld [vmem:[#allocation5 + $0xf0] sm:$0xff]
    %v189 = vld [vmem:[#allocation5 + $0xf8] sm:$0xff]
    %v190 = vld [vmem:[#allocation5 + $0x100] sm:$0xff]
    %v191 = vld [vmem:[#allocation5 + $0x108] sm:$0xff]
    %v192 = vld [vmem:[#allocation5 + $0x110] sm:$0xff]
    %v193 = vld [vmem:[#allocation5 + $0x118] sm:$0xff]
    %v194 = vld [vmem:[#allocation5 + $0x120] sm:$0xff]
    %v195 = vld [vmem:[#allocation5 + $0x128] sm:$0xff]
    %v196 = vld [vmem:[#allocation5 + $0x130] sm:$0xff]
    %v197 = vld [vmem:[#allocation5 + $0x138] sm:$0xff]
    %v198 = vld [vmem:[#allocation5 + $0x140] sm:$0xff]
    %v199 = vld [vmem:[#allocation5 + $0x148] sm:$0xff]
    %v200 = vld [vmem:[#allocation5 + $0x150] sm:$0xff]
    %v201 = vld [vmem:[#allocation5 + $0x158] sm:$0xff]
    %v202 = vld [vmem:[#allocation5 + $0x160] sm:$0xff]
    %v203 = vld [vmem:[#allocation5 + $0x168] sm:$0xff]
    %v204 = vld [vmem:[#allocation5 + $0x170] sm:$0xff]
    %v205 = vld [vmem:[#allocation5 + $0x178] sm:$0xff]
    %v206 = vld [vmem:[#allocation5 + $0x180] sm:$0xff]
    %v207 = vld [vmem:[#allocation5 + $0x188] sm:$0xff]
    %v208 = vld [vmem:[#allocation5 + $0x190] sm:$0xff]
    %v209 = vld [vmem:[#allocation5 + $0x198] sm:$0xff]
    %v210 = vld [vmem:[#allocation5 + $0x1a0] sm:$0xff]
    %v211 = vld [vmem:[#allocation5 + $0x1a8] sm:$0xff]
    %v212 = vld [vmem:[#allocation5 + $0x1b0] sm:$0xff]
    %v213 = vld [vmem:[#allocation5 + $0x1b8] sm:$0xff]
    %v214 = vld [vmem:[#allocation5 + $0x1c0] sm:$0xff]
    %v215 = vld [vmem:[#allocation5 + $0x1c8] sm:$0xff]
    %v216 = vld [vmem:[#allocation5 + $0x1d0] sm:$0xff]
    %v217 = vld [vmem:[#allocation5 + $0x1d8] sm:$0xff]
    %v218 = vld [vmem:[#allocation5 + $0x1e0] sm:$0xff]
    %v219 = vld [vmem:[#allocation5 + $0x1e8] sm:$0xff]
    %v220 = vld [vmem:[#allocation5 + $0x1f0] sm:$0xff]
    %v221 = vld [vmem:[#allocation5 + $0x1f8] sm:$0xff]
    %v222 = vld [vmem:[#allocation5 + $0x200] sm:$0xff]
    %v223 = vld [vmem:[#allocation5 + $0x208] sm:$0xff]
    %v224 = vld [vmem:[#allocation5 + $0x210] sm:$0xff]
    %v225 = vld [vmem:[#allocation5 + $0x218] sm:$0xff]
    %v226 = vld [vmem:[#allocation5 + $0x220] sm:$0xff]
    %v227 = vld [vmem:[#allocation5 + $0x228] sm:$0xff]
    %v228 = vld [vmem:[#allocation5 + $0x230] sm:$0xff]
    %v229 = vld [vmem:[#allocation5 + $0x238] sm:$0xff]
    %v230 = vld [vmem:[#allocation5 + $0x240] sm:$0xff]
    %v231 = vld [vmem:[#allocation5 + $0x248] sm:$0xff]
    %v232 = vld [vmem:[#allocation5 + $0x250] sm:$0xff]
    %v233 = vld [vmem:[#allocation5 + $0x258] sm:$0xff]
    %v234 = vld [vmem:[#allocation5 + $0x260] sm:$0xff]
    %v235 = vld [vmem:[#allocation5 + $0x268] sm:$0xff]
    %v236 = vld [vmem:[#allocation5 + $0x270] sm:$0xff]
    %v237 = vld [vmem:[#allocation5 + $0x278] sm:$0xff]
    %v238 = vld [vmem:[#allocation5 + $0x280] sm:$0xff]
    %v239 = vld [vmem:[#allocation5 + $0x288] sm:$0xff]
    %v240 = vld [vmem:[#allocation5 + $0x290] sm:$0xff]
    %v241 = vld [vmem:[#allocation5 + $0x298] sm:$0xff]
    %v242 = vld [vmem:[#allocation5 + $0x2a0] sm:$0xff]
    %v243 = vld [vmem:[#allocation5 + $0x2a8] sm:$0xff]
    %v244 = vld [vmem:[#allocation5 + $0x2b0] sm:$0xff]
    %v245 = vld [vmem:[#allocation5 + $0x2b8] sm:$0xff]
    %v246 = vld [vmem:[#allocation5 + $0x2c0] sm:$0xff]
    %v247 = vld [vmem:[#allocation5 + $0x2c8] sm:$0xff]
    %v248 = vld [vmem:[#allocation5 + $0x2d0] sm:$0xff]
    %v249 = vld [vmem:[#allocation5 + $0x2d8] sm:$0xff]
    %v250 = vld [vmem:[#allocation5 + $0x2e0] sm:$0xff]
    %v251 = vld [vmem:[#allocation5 + $0x2e8] sm:$0xff]
    %v252 = vld [vmem:[#allocation5 + $0x2f0] sm:$0xff]
    %v253 = vld [vmem:[#allocation5 + $0x2f8] sm:$0xff]
    %v254 = vld [vmem:[#allocation5 + $0x300] sm:$0xff]
    %v255 = vld [vmem:[#allocation5 + $0x308] sm:$0xff]
    %v256 = vld [vmem:[#allocation5 + $0x310] sm:$0xff]
    %v257 = vld [vmem:[#allocation5 + $0x318] sm:$0xff]
    %v258 = vld [vmem:[#allocation5 + $0x320] sm:$0xff]
    %v259 = vld [vmem:[#allocation5 + $0x328] sm:$0xff]
    %v260 = vld [vmem:[#allocation5 + $0x330] sm:$0xff]
    %v261 = vld [vmem:[#allocation5 + $0x338] sm:$0xff]
    %v262 = vld [vmem:[#allocation5 + $0x340] sm:$0xff]
    %v263 = vld [vmem:[#allocation5 + $0x348] sm:$0xff]
    %v264 = vld [vmem:[#allocation5 + $0x350] sm:$0xff]
    %v265 = vld [vmem:[#allocation5 + $0x358] sm:$0xff]
    %v266 = vld [vmem:[#allocation5 + $0x360] sm:$0xff]
    %v267 = vld [vmem:[#allocation5 + $0x368] sm:$0xff]
    %v268 = vld [vmem:[#allocation5 + $0x370] sm:$0xff]
    %v269 = vld [vmem:[#allocation5 + $0x378] sm:$0xff]
    %v270 = vld [vmem:[#allocation5 + $0x380] sm:$0xff]
    %v271 = vld [vmem:[#allocation5 + $0x388] sm:$0xff]
    %v272 = vld [vmem:[#allocation5 + $0x390] sm:$0xff]
    %v273 = vld [vmem:[#allocation5 + $0x398] sm:$0xff]
    %v274 = vld [vmem:[#allocation5 + $0x3a0] sm:$0xff]
    %v275 = vld [vmem:[#allocation5 + $0x3a8] sm:$0xff]
    %v276 = vld [vmem:[#allocation5 + $0x3b0] sm:$0xff]
    %v277 = vld [vmem:[#allocation5 + $0x3b8] sm:$0xff]
    %v278 = vld [vmem:[#allocation5 + $0x3c0] sm:$0xff]
    %v279 = vld [vmem:[#allocation5 + $0x3c8] sm:$0xff]
    %v280 = vld [vmem:[#allocation5 + $0x3d0] sm:$0xff]
    %v281 = vld [vmem:[#allocation5 + $0x3d8] sm:$0xff]
    %v282 = vld [vmem:[#allocation5 + $0x3e0] sm:$0xff]
    %v283 = vld [vmem:[#allocation5 + $0x3e8] sm:$0xff]
    %v284 = vld [vmem:[#allocation5 + $0x3f0] sm:$0xff]
    %v285 = vld [vmem:[#allocation5 + $0x3f8] sm:$0xff]
    %v286 = vld [vmem:[#allocation5 + $0x400] sm:$0xff]
    %v287 = vld [vmem:[#allocation5 + $0x408] sm:$0xff]
    %v288 = vld [vmem:[#allocation5 + $0x410] sm:$0xff]
    %v289 = vld [vmem:[#allocation5 + $0x418] sm:$0xff]
    %v290 = vld [vmem:[#allocation5 + $0x420] sm:$0xff]
    %v291 = vld [vmem:[#allocation5 + $0x428] sm:$0xff]
    %v292 = vld [vmem:[#allocation5 + $0x430] sm:$0xff]
    %v293 = vld [vmem:[#allocation5 + $0x438] sm:$0xff]
    %v294 = vld [vmem:[#allocation5 + $0x440] sm:$0xff]
    %v295 = vld [vmem:[#allocation5 + $0x448] sm:$0xff]
    %v296 = vld [vmem:[#allocation5 + $0x450] sm:$0xff]
    %v297 = vld [vmem:[#allocation5 + $0x458] sm:$0xff]
    %v298 = vld [vmem:[#allocation5 + $0x460] sm:$0xff]
    %v299 = vld [vmem:[#allocation5 + $0x468] sm:$0xff]
    %v300 = vld [vmem:[#allocation5 + $0x470] sm:$0xff]
    %v301 = vld [vmem:[#allocation5 + $0x478] sm:$0xff]
    %v302 = vld [vmem:[#allocation5 + $0x480] sm:$0xff]
    %v303 = vld [vmem:[#allocation5 + $0x488] sm:$0xff]
    %v304 = vld [vmem:[#allocation5 + $0x490] sm:$0xff]
    %v305 = vld [vmem:[#allocation5 + $0x498] sm:$0xff]
    %v306 = vld [vmem:[#allocation5 + $0x4a0] sm:$0xff]
    %v307 = vld [vmem:[#allocation5 + $0x4a8] sm:$0xff]
    %v308 = vld [vmem:[#allocation5 + $0x4b0] sm:$0xff]
    %v309 = vld [vmem:[#allocation5 + $0x4b8] sm:$0xff]
    %v310 = vld [vmem:[#allocation5 + $0x4c0] sm:$0xff]
    %v311 = vld [vmem:[#allocation5 + $0x4c8] sm:$0xff]
    %v312 = vld [vmem:[#allocation5 + $0x4d0] sm:$0xff]
    %v313 = vld [vmem:[#allocation5 + $0x4d8] sm:$0xff]
    %v314 = vld [vmem:[#allocation5 + $0x4e0] sm:$0xff]
    %v315 = vld [vmem:[#allocation5 + $0x4e8] sm:$0xff]
    %v316 = vld [vmem:[#allocation5 + $0x4f0] sm:$0xff]
    %v317 = vld [vmem:[#allocation5 + $0x4f8] sm:$0xff]
    %v318 = vld [vmem:[#allocation5 + $0x500] sm:$0xff]
    %v319 = vld [vmem:[#allocation5 + $0x508] sm:$0xff]
    %v320 = vld [vmem:[#allocation5 + $0x510] sm:$0xff]
    %v321 = vld [vmem:[#allocation5 + $0x518] sm:$0xff]
    %v322 = vld [vmem:[#allocation5 + $0x520] sm:$0xff]
    %v323 = vld [vmem:[#allocation5 + $0x528] sm:$0xff]
    %v324 = vld [vmem:[#allocation5 + $0x530] sm:$0xff]
    %v325 = vld [vmem:[#allocation5 + $0x538] sm:$0xff]
    %v326 = vld [vmem:[#allocation5 + $0x540] sm:$0xff]
    %v327 = vld [vmem:[#allocation5 + $0x548] sm:$0xff]
    %v328 = vld [vmem:[#allocation5 + $0x550] sm:$0xff]
    %v329 = vld [vmem:[#allocation5 + $0x558] sm:$0xff]
    %v330 = vld [vmem:[#allocation5 + $0x560] sm:$0xff]
    %v331 = vld [vmem:[#allocation5 + $0x568] sm:$0xff]
    %v332 = vld [vmem:[#allocation5 + $0x570] sm:$0xff]
    %v333 = vld [vmem:[#allocation5 + $0x578] sm:$0xff]
    %v334 = vld [vmem:[#allocation5 + $0x580] sm:$0xff]
    %v335 = vld [vmem:[#allocation5 + $0x588] sm:$0xff]
    %v336 = vld [vmem:[#allocation5 + $0x590] sm:$0xff]
    %v337 = vld [vmem:[#allocation5 + $0x598] sm:$0xff]
    %v338 = vld [vmem:[#allocation5 + $0x5a0] sm:$0xff]
    %v339 = vld [vmem:[#allocation5 + $0x5a8] sm:$0xff]
    %v340 = vld [vmem:[#allocation5 + $0x5b0] sm:$0xff]
    %v341 = vld [vmem:[#allocation5 + $0x5b8] sm:$0xff]
    %v342 = vld [vmem:[#allocation5 + $0x5c0] sm:$0xff]
    %v343 = vld [vmem:[#allocation5 + $0x5c8] sm:$0xff]
    %v344 = vld [vmem:[#allocation5 + $0x5d0] sm:$0xff]
    %v345 = vld [vmem:[#allocation5 + $0x5d8] sm:$0xff]
    %v346 = vld [vmem:[#allocation5 + $0x5e0] sm:$0xff]
    %v347 = vld [vmem:[#allocation5 + $0x5e8] sm:$0xff]
    %v348 = vld [vmem:[#allocation5 + $0x5f0] sm:$0xff]
    %v349 = vld [vmem:[#allocation5 + $0x5f8] sm:$0xff]
    %v350 = vld [vmem:[#allocation5 + $0x600] sm:$0xff]
    %v351 = vld [vmem:[#allocation5 + $0x608] sm:$0xff]
    %v352 = vld [vmem:[#allocation5 + $0x610] sm:$0xff]
    %v353 = vld [vmem:[#allocation5 + $0x618] sm:$0xff]
    %v354 = vld [vmem:[#allocation5 + $0x620] sm:$0xff]
    %v355 = vld [vmem:[#allocation5 + $0x628] sm:$0xff]
    %v356 = vld [vmem:[#allocation5 + $0x630] sm:$0xff]
    %v357 = vld [vmem:[#allocation5 + $0x638] sm:$0xff]
    %v358 = vld [vmem:[#allocation5 + $0x640] sm:$0xff]
    %v359 = vld [vmem:[#allocation5 + $0x648] sm:$0xff]
    %v360 = vld [vmem:[#allocation5 + $0x650] sm:$0xff]
    %v361 = vld [vmem:[#allocation5 + $0x658] sm:$0xff]
    %v362 = vld [vmem:[#allocation5 + $0x660] sm:$0xff]
    %v363 = vld [vmem:[#allocation5 + $0x668] sm:$0xff]
    %v364 = vld [vmem:[#allocation5 + $0x670] sm:$0xff]
    %v365 = vld [vmem:[#allocation5 + $0x678] sm:$0xff]
    %v366 = vld [vmem:[#allocation5 + $0x680] sm:$0xff]
    %v367 = vld [vmem:[#allocation5 + $0x688] sm:$0xff]
    %v368 = vld [vmem:[#allocation5 + $0x690] sm:$0xff]
    %v369 = vld [vmem:[#allocation5 + $0x698] sm:$0xff]
    %v370 = vld [vmem:[#allocation5 + $0x6a0] sm:$0xff]
    %v371 = vld [vmem:[#allocation5 + $0x6a8] sm:$0xff]
    %v372 = vld [vmem:[#allocation5 + $0x6b0] sm:$0xff]
    %v373 = vld [vmem:[#allocation5 + $0x6b8] sm:$0xff]
    %v374 = vld [vmem:[#allocation5 + $0x6c0] sm:$0xff]
    %v375 = vld [vmem:[#allocation5 + $0x6c8] sm:$0xff]
    %v376 = vld [vmem:[#allocation5 + $0x6d0] sm:$0xff]
    %v377 = vld [vmem:[#allocation5 + $0x6d8] sm:$0xff]
    %v378 = vld [vmem:[#allocation5 + $0x6e0] sm:$0xff]
    %v379 = vld [vmem:[#allocation5 + $0x6e8] sm:$0xff]
    %v380 = vld [vmem:[#allocation5 + $0x6f0] sm:$0xff]
    %v381 = vld [vmem:[#allocation5 + $0x6f8] sm:$0xff]
    %v382 = vld [vmem:[#allocation5 + $0x700] sm:$0xff]
    %v383 = vld [vmem:[#allocation5 + $0x708] sm:$0xff]
    %v384 = vld [vmem:[#allocation5 + $0x710] sm:$0xff]
    %v385 = vld [vmem:[#allocation5 + $0x718] sm:$0xff]
    %v386 = vld [vmem:[#allocation5 + $0x720] sm:$0xff]
    %v387 = vld [vmem:[#allocation5 + $0x728] sm:$0xff]
    %v388 = vld [vmem:[#allocation5 + $0x730] sm:$0xff]
    %v389 = vld [vmem:[#allocation5 + $0x738] sm:$0xff]
    %v390 = vld [vmem:[#allocation5 + $0x740] sm:$0xff]
    %v391 = vld [vmem:[#allocation5 + $0x748] sm:$0xff]
    %v392 = vld [vmem:[#allocation5 + $0x750] sm:$0xff]
    %v393 = vld [vmem:[#allocation5 + $0x758] sm:$0xff]
    %v394 = vld [vmem:[#allocation5 + $0x760] sm:$0xff]
    %v395 = vld [vmem:[#allocation5 + $0x768] sm:$0xff]
    %v396 = vld [vmem:[#allocation5 + $0x770] sm:$0xff]
    %v397 = vld [vmem:[#allocation5 + $0x778] sm:$0xff]
    %v398 = vld [vmem:[#allocation5 + $0x780] sm:$0xff]
    %v399 = vld [vmem:[#allocation5 + $0x788] sm:$0xff]
    %v400 = vld [vmem:[#allocation5 + $0x790] sm:$0xff]
    %v401 = vld [vmem:[#allocation5 + $0x798] sm:$0xff]
    %v402 = vld [vmem:[#allocation5 + $0x7a0] sm:$0xff]
    %v403 = vld [vmem:[#allocation5 + $0x7a8] sm:$0xff]
    %v404 = vld [vmem:[#allocation5 + $0x7b0] sm:$0xff]
    %v405 = vld [vmem:[#allocation5 + $0x7b8] sm:$0xff]
    %v406 = vld [vmem:[#allocation5 + $0x7c0] sm:$0xff]
    %v407 = vld [vmem:[#allocation5 + $0x7c8] sm:$0xff]
    %v408 = vld [vmem:[#allocation5 + $0x7d0] sm:$0xff]
    %v409 = vld [vmem:[#allocation5 + $0x7d8] sm:$0xff]
    %v410 = vld [vmem:[#allocation5 + $0x7e0] sm:$0xff]
    %v411 = vld [vmem:[#allocation5 + $0x7e8] sm:$0xff]
    %v412 = vld [vmem:[#allocation5 + $0x7f0] sm:$0xff]
    %v413 = vld [vmem:[#allocation5 + $0x7f8] sm:$0xff]
    %v414 = vld [vmem:[#allocation5 + $0x800] sm:$0xff]
    %v415 = vld [vmem:[#allocation5 + $0x808] sm:$0xff]
    %v416 = vld [vmem:[#allocation5 + $0x810] sm:$0xff]
    %v417 = vld [vmem:[#allocation5 + $0x818] sm:$0xff]
    %v418 = vld [vmem:[#allocation5 + $0x820] sm:$0xff]
    %v419 = vld [vmem:[#allocation5 + $0x828] sm:$0xff]
    %v420 = vld [vmem:[#allocation5 + $0x830] sm:$0xff]
    %v421 = vld [vmem:[#allocation5 + $0x838] sm:$0xff]
    %v422 = vld [vmem:[#allocation5 + $0x840] sm:$0xff]
    %v423 = vld [vmem:[#allocation5 + $0x848] sm:$0xff]
    %v424 = vld [vmem:[#allocation5 + $0x850] sm:$0xff]
    %v425 = vld [vmem:[#allocation5 + $0x858] sm:$0xff]
    %v426 = vld [vmem:[#allocation5 + $0x860] sm:$0xff]
    %v427 = vld [vmem:[#allocation5 + $0x868] sm:$0xff]
    %v428 = vld [vmem:[#allocation5 + $0x870] sm:$0xff]
    %v429 = vld [vmem:[#allocation5 + $0x878] sm:$0xff]
    %v430 = vld [vmem:[#allocation5 + $0x880] sm:$0xff]
    %v431 = vld [vmem:[#allocation5 + $0x888] sm:$0xff]
    %v432 = vld [vmem:[#allocation5 + $0x890] sm:$0xff]
    %v433 = vld [vmem:[#allocation5 + $0x898] sm:$0xff]
    %v434 = vld [vmem:[#allocation5 + $0x8a0] sm:$0xff]
    %v435 = vld [vmem:[#allocation5 + $0x8a8] sm:$0xff]
    %v436 = vld [vmem:[#allocation5 + $0x8b0] sm:$0xff]
    %v437 = vld [vmem:[#allocation5 + $0x8b8] sm:$0xff]
    %v438 = vld [vmem:[#allocation5 + $0x8c0] sm:$0xff]
    %v439 = vld [vmem:[#allocation5 + $0x8c8] sm:$0xff]
    %v440 = vld [vmem:[#allocation5 + $0x8d0] sm:$0xff]
    %v441 = vld [vmem:[#allocation5 + $0x8d8] sm:$0xff]
    %v442 = vld [vmem:[#allocation5 + $0x8e0] sm:$0xff]
    %v443 = vld [vmem:[#allocation5 + $0x8e8] sm:$0xff]
    %v444 = vld [vmem:[#allocation5 + $0x8f0] sm:$0xff]
    %v445 = vld [vmem:[#allocation5 + $0x8f8] sm:$0xff]
    %v446 = vld [vmem:[#allocation7] sm:$0xff]
    %v447 = vld [vmem:[#allocation7 + $0x8] sm:$0xf]
    %v450 = vlaneseq
    %v451 = vshrl.u32 %v450, 7
    %v452 = vsub.s32 0, %v451
    %v453 = vrot.slane %v446, %v452
    %v454 = vlaneseq
    %v455 = vshrl.u32 %v454, 7
    %v456 = vsub.s32 1, %v455
    %v457 = vrot.slane %v446, %v456
    %v458 = vlaneseq
    %v459 = vshrl.u32 %v458, 7
    %v460 = vsub.s32 2, %v459
    %v461 = vrot.slane %v446, %v460
    %v462 = vlaneseq
    %v463 = vshrl.u32 %v462, 7
    %v464 = vsub.s32 3, %v463
    %v465 = vrot.slane %v446, %v464
    %v466 = vlaneseq
    %v467 = vshrl.u32 %v466, 7
    %v468 = vsub.s32 4, %v467
    %v469 = vrot.slane %v446, %v468
    %v470 = vlaneseq
    %v471 = vshrl.u32 %v470, 7
    %v472 = vsub.s32 5, %v471
    %v473 = vrot.slane %v446, %v472
    %v474 = vlaneseq
    %v475 = vshrl.u32 %v474, 7
    %v476 = vsub.s32 6, %v475
    %v477 = vrot.slane %v446, %v476
    %v478 = vlaneseq
    %v479 = vshrl.u32 %v478, 7
    %v480 = vsub.s32 7, %v479
    %v481 = vrot.slane %v446, %v480
    %v482 = vlaneseq
    %v483 = vshrl.u32 %v482, 7
    %v484 = vsub.s32 0, %v483
    %v485 = vrot.slane %v447, %v484
    %v486 = vlaneseq
    %v487 = vshrl.u32 %v486, 7
    %v488 = vsub.s32 1, %v487
    %v489 = vrot.slane %v447, %v488
    %v490 = vlaneseq
    %v491 = vshrl.u32 %v490, 7
    %v492 = vsub.s32 2, %v491
    %v493 = vrot.slane %v447, %v492
    %v494 = vlaneseq
    %v495 = vshrl.u32 %v494, 7
    %v496 = vsub.s32 3, %v495
    %v497 = vrot.slane %v447, %v496
    %v798 = vunpack.c.l.b16 %v158
    %v799 = vunpack.c.h.b16 %v158
    %v800 = vunpack.c.l.b16 %v159
    %v801 = vunpack.c.h.b16 %v159
    %v802 = vunpack.c.l.b16 %v160
    %v803 = vunpack.c.h.b16 %v160
    %v804 = vunpack.c.l.b16 %v161
    %v805 = vunpack.c.h.b16 %v161
    %v806 = vunpack.c.l.b16 %v162
    %v807 = vunpack.c.h.b16 %v162
    %v808 = vunpack.c.l.b16 %v163
    %v809 = vunpack.c.h.b16 %v163
    %v810 = vunpack.c.l.b16 %v164
    %v811 = vunpack.c.h.b16 %v164
    %v812 = vunpack.c.l.b16 %v165
    %v813 = vunpack.c.h.b16 %v165
    %v814 = vunpack.c.l.b16 %v166
    %v815 = vunpack.c.h.b16 %v166
    %v816 = vunpack.c.l.b16 %v167
    %v817 = vunpack.c.h.b16 %v167
    %v818 = vunpack.c.l.b16 %v168
    %v819 = vunpack.c.h.b16 %v168
    %v820 = vunpack.c.l.b16 %v169
    %v821 = vunpack.c.h.b16 %v169
    %v822 = vunpack.c.l.b16 %v170
    %v823 = vunpack.c.h.b16 %v170
    %v824 = vunpack.c.l.b16 %v171
    %v825 = vunpack.c.h.b16 %v171
    %v826 = vunpack.c.l.b16 %v172
    %v827 = vunpack.c.h.b16 %v172
    %v828 = vunpack.c.l.b16 %v173
    %v829 = vunpack.c.h.b16 %v173
    %v830 = vunpack.c.l.b16 %v174
    %v831 = vunpack.c.h.b16 %v174
    %v832 = vunpack.c.l.b16 %v175
    %v833 = vunpack.c.h.b16 %v175
    %v834 = vunpack.c.l.b16 %v176
    %v835 = vunpack.c.h.b16 %v176
    %v836 = vunpack.c.l.b16 %v177
    %v837 = vunpack.c.h.b16 %v177
    %v838 = vunpack.c.l.b16 %v178
    %v839 = vunpack.c.h.b16 %v178
    %v840 = vunpack.c.l.b16 %v179
    %v841 = vunpack.c.h.b16 %v179
    %v842 = vunpack.c.l.b16 %v180
    %v843 = vunpack.c.h.b16 %v180
    %v844 = vunpack.c.l.b16 %v181
    %v845 = vunpack.c.h.b16 %v181
    %v846 = vunpack.c.l.b16 %v182
    %v847 = vunpack.c.h.b16 %v182
    %v848 = vunpack.c.l.b16 %v183
    %v849 = vunpack.c.h.b16 %v183
    %v850 = vunpack.c.l.b16 %v184
    %v851 = vunpack.c.h.b16 %v184
    %v852 = vunpack.c.l.b16 %v185
    %v853 = vunpack.c.h.b16 %v185
    %v854 = vunpack.c.l.b16 %v186
    %v855 = vunpack.c.h.b16 %v186
    %v856 = vunpack.c.l.b16 %v187
    %v857 = vunpack.c.h.b16 %v187
    %v858 = vunpack.c.l.b16 %v188
    %v859 = vunpack.c.h.b16 %v188
    %v860 = vunpack.c.l.b16 %v189
    %v861 = vunpack.c.h.b16 %v189
    %v862 = vunpack.c.l.b16 %v190
    %v863 = vunpack.c.h.b16 %v190
    %v864 = vunpack.c.l.b16 %v191
    %v865 = vunpack.c.h.b16 %v191
    %v866 = vunpack.c.l.b16 %v192
    %v867 = vunpack.c.h.b16 %v192
    %v868 = vunpack.c.l.b16 %v193
    %v869 = vunpack.c.h.b16 %v193
    %v870 = vunpack.c.l.b16 %v194
    %v871 = vunpack.c.h.b16 %v194
    %v872 = vunpack.c.l.b16 %v195
    %v873 = vunpack.c.h.b16 %v195
    %v874 = vunpack.c.l.b16 %v196
    %v875 = vunpack.c.h.b16 %v196
    %v876 = vunpack.c.l.b16 %v197
    %v877 = vunpack.c.h.b16 %v197
    %v878 = vunpack.c.l.b16 %v198
    %v879 = vunpack.c.h.b16 %v198
    %v880 = vunpack.c.l.b16 %v199
    %v881 = vunpack.c.h.b16 %v199
    %v882 = vunpack.c.l.b16 %v200
    %v883 = vunpack.c.h.b16 %v200
    %v884 = vunpack.c.l.b16 %v201
    %v885 = vunpack.c.h.b16 %v201
    %v886 = vunpack.c.l.b16 %v202
    %v887 = vunpack.c.h.b16 %v202
    %v888 = vunpack.c.l.b16 %v203
    %v889 = vunpack.c.h.b16 %v203
    %v890 = vunpack.c.l.b16 %v204
    %v891 = vunpack.c.h.b16 %v204
    %v892 = vunpack.c.l.b16 %v205
    %v893 = vunpack.c.h.b16 %v205
    %v894 = vunpack.c.l.b16 %v206
    %v895 = vunpack.c.h.b16 %v206
    %v896 = vunpack.c.l.b16 %v207
    %v897 = vunpack.c.h.b16 %v207
    %v898 = vunpack.c.l.b16 %v208
    %v899 = vunpack.c.h.b16 %v208
    %v900 = vunpack.c.l.b16 %v209
    %v901 = vunpack.c.h.b16 %v209
    %v902 = vunpack.c.l.b16 %v210
    %v903 = vunpack.c.h.b16 %v210
    %v904 = vunpack.c.l.b16 %v211
    %v905 = vunpack.c.h.b16 %v211
    %v906 = vunpack.c.l.b16 %v212
    %v907 = vunpack.c.h.b16 %v212
    %v908 = vunpack.c.l.b16 %v213
    %v909 = vunpack.c.h.b16 %v213
    %v910 = vunpack.c.l.b16 %v214
    %v911 = vunpack.c.h.b16 %v214
    %v912 = vunpack.c.l.b16 %v215
    %v913 = vunpack.c.h.b16 %v215
    %v914 = vunpack.c.l.b16 %v216
    %v915 = vunpack.c.h.b16 %v216
    %v916 = vunpack.c.l.b16 %v217
    %v917 = vunpack.c.h.b16 %v217
    %v918 = vunpack.c.l.b16 %v218
    %v919 = vunpack.c.h.b16 %v218
    %v920 = vunpack.c.l.b16 %v219
    %v921 = vunpack.c.h.b16 %v219
    %v922 = vunpack.c.l.b16 %v220
    %v923 = vunpack.c.h.b16 %v220
    %v924 = vunpack.c.l.b16 %v221
    %v925 = vunpack.c.h.b16 %v221
    %v926 = vunpack.c.l.b16 %v222
    %v927 = vunpack.c.h.b16 %v222
    %v928 = vunpack.c.l.b16 %v223
    %v929 = vunpack.c.h.b16 %v223
    %v930 = vunpack.c.l.b16 %v224
    %v931 = vunpack.c.h.b16 %v224
    %v932 = vunpack.c.l.b16 %v225
    %v933 = vunpack.c.h.b16 %v225
    %v934 = vunpack.c.l.b16 %v226
    %v935 = vunpack.c.h.b16 %v226
    %v936 = vunpack.c.l.b16 %v227
    %v937 = vunpack.c.h.b16 %v227
    %v938 = vunpack.c.l.b16 %v228
    %v939 = vunpack.c.h.b16 %v228
    %v940 = vunpack.c.l.b16 %v229
    %v941 = vunpack.c.h.b16 %v229
    %v942 = vunpack.c.l.b16 %v230
    %v943 = vunpack.c.h.b16 %v230
    %v944 = vunpack.c.l.b16 %v231
    %v945 = vunpack.c.h.b16 %v231
    %v946 = vunpack.c.l.b16 %v232
    %v947 = vunpack.c.h.b16 %v232
    %v948 = vunpack.c.l.b16 %v233
    %v949 = vunpack.c.h.b16 %v233
    %v950 = vunpack.c.l.b16 %v234
    %v951 = vunpack.c.h.b16 %v234
    %v952 = vunpack.c.l.b16 %v235
    %v953 = vunpack.c.h.b16 %v235
    %v954 = vunpack.c.l.b16 %v236
    %v955 = vunpack.c.h.b16 %v236
    %v956 = vunpack.c.l.b16 %v237
    %v957 = vunpack.c.h.b16 %v237
    %v958 = vunpack.c.l.b16 %v238
    %v959 = vunpack.c.h.b16 %v238
    %v960 = vunpack.c.l.b16 %v239
    %v961 = vunpack.c.h.b16 %v239
    %v962 = vunpack.c.l.b16 %v240
    %v963 = vunpack.c.h.b16 %v240
    %v964 = vunpack.c.l.b16 %v241
    %v965 = vunpack.c.h.b16 %v241
    %v966 = vunpack.c.l.b16 %v242
    %v967 = vunpack.c.h.b16 %v242
    %v968 = vunpack.c.l.b16 %v243
    %v969 = vunpack.c.h.b16 %v243
    %v970 = vunpack.c.l.b16 %v244
    %v971 = vunpack.c.h.b16 %v244
    %v972 = vunpack.c.l.b16 %v245
    %v973 = vunpack.c.h.b16 %v245
    %v974 = vunpack.c.l.b16 %v246
    %v975 = vunpack.c.h.b16 %v246
    %v976 = vunpack.c.l.b16 %v247
    %v977 = vunpack.c.h.b16 %v247
    %v978 = vunpack.c.l.b16 %v248
    %v979 = vunpack.c.h.b16 %v248
    %v980 = vunpack.c.l.b16 %v249
    %v981 = vunpack.c.h.b16 %v249
    %v982 = vunpack.c.l.b16 %v250
    %v983 = vunpack.c.h.b16 %v250
    %v984 = vunpack.c.l.b16 %v251
    %v985 = vunpack.c.h.b16 %v251
    %v986 = vunpack.c.l.b16 %v252
    %v987 = vunpack.c.h.b16 %v252
    %v988 = vunpack.c.l.b16 %v253
    %v989 = vunpack.c.h.b16 %v253
    %v990 = vunpack.c.l.b16 %v254
    %v991 = vunpack.c.h.b16 %v254
    %v992 = vunpack.c.l.b16 %v255
    %v993 = vunpack.c.h.b16 %v255
    %v994 = vunpack.c.l.b16 %v256
    %v995 = vunpack.c.h.b16 %v256
    %v996 = vunpack.c.l.b16 %v257
    %v997 = vunpack.c.h.b16 %v257
    %v998 = vunpack.c.l.b16 %v258
    %v999 = vunpack.c.h.b16 %v258
    %v1000 = vunpack.c.l.b16 %v259
    %v1001 = vunpack.c.h.b16 %v259
    %v1002 = vunpack.c.l.b16 %v260
    %v1003 = vunpack.c.h.b16 %v260
    %v1004 = vunpack.c.l.b16 %v261
    %v1005 = vunpack.c.h.b16 %v261
    %v1006 = vunpack.c.l.b16 %v262
    %v1007 = vunpack.c.h.b16 %v262
    %v1008 = vunpack.c.l.b16 %v263
    %v1009 = vunpack.c.h.b16 %v263
    %v1010 = vunpack.c.l.b16 %v264
    %v1011 = vunpack.c.h.b16 %v264
    %v1012 = vunpack.c.l.b16 %v265
    %v1013 = vunpack.c.h.b16 %v265
    %v1014 = vunpack.c.l.b16 %v266
    %v1015 = vunpack.c.h.b16 %v266
    %v1016 = vunpack.c.l.b16 %v267
    %v1017 = vunpack.c.h.b16 %v267
    %v1018 = vunpack.c.l.b16 %v268
    %v1019 = vunpack.c.h.b16 %v268
    %v1020 = vunpack.c.l.b16 %v269
    %v1021 = vunpack.c.h.b16 %v269
    %v1022 = vunpack.c.l.b16 %v270
    %v1023 = vunpack.c.h.b16 %v270
    %v1024 = vunpack.c.l.b16 %v271
    %v1025 = vunpack.c.h.b16 %v271
    %v1026 = vunpack.c.l.b16 %v272
    %v1027 = vunpack.c.h.b16 %v272
    %v1028 = vunpack.c.l.b16 %v273
    %v1029 = vunpack.c.h.b16 %v273
    %v1030 = vunpack.c.l.b16 %v274
    %v1031 = vunpack.c.h.b16 %v274
    %v1032 = vunpack.c.l.b16 %v275
    %v1033 = vunpack.c.h.b16 %v275
    %v1034 = vunpack.c.l.b16 %v276
    %v1035 = vunpack.c.h.b16 %v276
    %v1036 = vunpack.c.l.b16 %v277
    %v1037 = vunpack.c.h.b16 %v277
    %v1038 = vunpack.c.l.b16 %v278
    %v1039 = vunpack.c.h.b16 %v278
    %v1040 = vunpack.c.l.b16 %v279
    %v1041 = vunpack.c.h.b16 %v279
    %v1042 = vunpack.c.l.b16 %v280
    %v1043 = vunpack.c.h.b16 %v280
    %v1044 = vunpack.c.l.b16 %v281
    %v1045 = vunpack.c.h.b16 %v281
    %v1046 = vunpack.c.l.b16 %v282
    %v1047 = vunpack.c.h.b16 %v282
    %v1048 = vunpack.c.l.b16 %v283
    %v1049 = vunpack.c.h.b16 %v283
    %v1050 = vunpack.c.l.b16 %v284
    %v1051 = vunpack.c.h.b16 %v284
    %v1052 = vunpack.c.l.b16 %v285
    %v1053 = vunpack.c.h.b16 %v285
    %v1054 = vunpack.c.l.b16 %v286
    %v1055 = vunpack.c.h.b16 %v286
    %v1056 = vunpack.c.l.b16 %v287
    %v1057 = vunpack.c.h.b16 %v287
    %v1058 = vunpack.c.l.b16 %v288
    %v1059 = vunpack.c.h.b16 %v288
    %v1060 = vunpack.c.l.b16 %v289
    %v1061 = vunpack.c.h.b16 %v289
    %v1062 = vunpack.c.l.b16 %v290
    %v1063 = vunpack.c.h.b16 %v290
    %v1064 = vunpack.c.l.b16 %v291
    %v1065 = vunpack.c.h.b16 %v291
    %v1066 = vunpack.c.l.b16 %v292
    %v1067 = vunpack.c.h.b16 %v292
    %v1068 = vunpack.c.l.b16 %v293
    %v1069 = vunpack.c.h.b16 %v293
    %v1070 = vunpack.c.l.b16 %v294
    %v1071 = vunpack.c.h.b16 %v294
    %v1072 = vunpack.c.l.b16 %v295
    %v1073 = vunpack.c.h.b16 %v295
    %v1074 = vunpack.c.l.b16 %v296
    %v1075 = vunpack.c.h.b16 %v296
    %v1076 = vunpack.c.l.b16 %v297
    %v1077 = vunpack.c.h.b16 %v297
    %v1078 = vunpack.c.l.b16 %v298
    %v1079 = vunpack.c.h.b16 %v298
    %v1080 = vunpack.c.l.b16 %v299
    %v1081 = vunpack.c.h.b16 %v299
    %v1082 = vunpack.c.l.b16 %v300
    %v1083 = vunpack.c.h.b16 %v300
    %v1084 = vunpack.c.l.b16 %v301
    %v1085 = vunpack.c.h.b16 %v301
    %v1086 = vunpack.c.l.b16 %v302
    %v1087 = vunpack.c.h.b16 %v302
    %v1088 = vunpack.c.l.b16 %v303
    %v1089 = vunpack.c.h.b16 %v303
    %v1090 = vunpack.c.l.b16 %v304
    %v1091 = vunpack.c.h.b16 %v304
    %v1092 = vunpack.c.l.b16 %v305
    %v1093 = vunpack.c.h.b16 %v305
    %v1094 = vunpack.c.l.b16 %v306
    %v1095 = vunpack.c.h.b16 %v306
    %v1096 = vunpack.c.l.b16 %v307
    %v1097 = vunpack.c.h.b16 %v307
    %v1098 = vunpack.c.l.b16 %v308
    %v1099 = vunpack.c.h.b16 %v308
    %v1100 = vunpack.c.l.b16 %v309
    %v1101 = vunpack.c.h.b16 %v309
    %v1102 = vunpack.c.l.b16 %v310
    %v1103 = vunpack.c.h.b16 %v310
    %v1104 = vunpack.c.l.b16 %v311
    %v1105 = vunpack.c.h.b16 %v311
    %v1106 = vunpack.c.l.b16 %v312
    %v1107 = vunpack.c.h.b16 %v312
    %v1108 = vunpack.c.l.b16 %v313
    %v1109 = vunpack.c.h.b16 %v313
    %v1110 = vunpack.c.l.b16 %v314
    %v1111 = vunpack.c.h.b16 %v314
    %v1112 = vunpack.c.l.b16 %v315
    %v1113 = vunpack.c.h.b16 %v315
    %v1114 = vunpack.c.l.b16 %v316
    %v1115 = vunpack.c.h.b16 %v316
    %v1116 = vunpack.c.l.b16 %v317
    %v1117 = vunpack.c.h.b16 %v317
    %v1118 = vunpack.c.l.b16 %v318
    %v1119 = vunpack.c.h.b16 %v318
    %v1120 = vunpack.c.l.b16 %v319
    %v1121 = vunpack.c.h.b16 %v319
    %v1122 = vunpack.c.l.b16 %v320
    %v1123 = vunpack.c.h.b16 %v320
    %v1124 = vunpack.c.l.b16 %v321
    %v1125 = vunpack.c.h.b16 %v321
    %v1126 = vunpack.c.l.b16 %v322
    %v1127 = vunpack.c.h.b16 %v322
    %v1128 = vunpack.c.l.b16 %v323
    %v1129 = vunpack.c.h.b16 %v323
    %v1130 = vunpack.c.l.b16 %v324
    %v1131 = vunpack.c.h.b16 %v324
    %v1132 = vunpack.c.l.b16 %v325
    %v1133 = vunpack.c.h.b16 %v325
    %v1134 = vunpack.c.l.b16 %v326
    %v1135 = vunpack.c.h.b16 %v326
    %v1136 = vunpack.c.l.b16 %v327
    %v1137 = vunpack.c.h.b16 %v327
    %v1138 = vunpack.c.l.b16 %v328
    %v1139 = vunpack.c.h.b16 %v328
    %v1140 = vunpack.c.l.b16 %v329
    %v1141 = vunpack.c.h.b16 %v329
    %v1142 = vunpack.c.l.b16 %v330
    %v1143 = vunpack.c.h.b16 %v330
    %v1144 = vunpack.c.l.b16 %v331
    %v1145 = vunpack.c.h.b16 %v331
    %v1146 = vunpack.c.l.b16 %v332
    %v1147 = vunpack.c.h.b16 %v332
    %v1148 = vunpack.c.l.b16 %v333
    %v1149 = vunpack.c.h.b16 %v333
    %v1150 = vunpack.c.l.b16 %v334
    %v1151 = vunpack.c.h.b16 %v334
    %v1152 = vunpack.c.l.b16 %v335
    %v1153 = vunpack.c.h.b16 %v335
    %v1154 = vunpack.c.l.b16 %v336
    %v1155 = vunpack.c.h.b16 %v336
    %v1156 = vunpack.c.l.b16 %v337
    %v1157 = vunpack.c.h.b16 %v337
    %v1158 = vunpack.c.l.b16 %v338
    %v1159 = vunpack.c.h.b16 %v338
    %v1160 = vunpack.c.l.b16 %v339
    %v1161 = vunpack.c.h.b16 %v339
    %v1162 = vunpack.c.l.b16 %v340
    %v1163 = vunpack.c.h.b16 %v340
    %v1164 = vunpack.c.l.b16 %v341
    %v1165 = vunpack.c.h.b16 %v341
    %v1166 = vunpack.c.l.b16 %v342
    %v1167 = vunpack.c.h.b16 %v342
    %v1168 = vunpack.c.l.b16 %v343
    %v1169 = vunpack.c.h.b16 %v343
    %v1170 = vunpack.c.l.b16 %v344
    %v1171 = vunpack.c.h.b16 %v344
    %v1172 = vunpack.c.l.b16 %v345
    %v1173 = vunpack.c.h.b16 %v345
    %v1174 = vunpack.c.l.b16 %v346
    %v1175 = vunpack.c.h.b16 %v346
    %v1176 = vunpack.c.l.b16 %v347
    %v1177 = vunpack.c.h.b16 %v347
    %v1178 = vunpack.c.l.b16 %v348
    %v1179 = vunpack.c.h.b16 %v348
    %v1180 = vunpack.c.l.b16 %v349
    %v1181 = vunpack.c.h.b16 %v349
    %v1182 = vunpack.c.l.b16 %v350
    %v1183 = vunpack.c.h.b16 %v350
    %v1184 = vunpack.c.l.b16 %v351
    %v1185 = vunpack.c.h.b16 %v351
    %v1186 = vunpack.c.l.b16 %v352
    %v1187 = vunpack.c.h.b16 %v352
    %v1188 = vunpack.c.l.b16 %v353
    %v1189 = vunpack.c.h.b16 %v353
    %v1190 = vunpack.c.l.b16 %v354
    %v1191 = vunpack.c.h.b16 %v354
    %v1192 = vunpack.c.l.b16 %v355
    %v1193 = vunpack.c.h.b16 %v355
    %v1194 = vunpack.c.l.b16 %v356
    %v1195 = vunpack.c.h.b16 %v356
    %v1196 = vunpack.c.l.b16 %v357
    %v1197 = vunpack.c.h.b16 %v357
    %v1198 = vunpack.c.l.b16 %v358
    %v1199 = vunpack.c.h.b16 %v358
    %v1200 = vunpack.c.l.b16 %v359
    %v1201 = vunpack.c.h.b16 %v359
    %v1202 = vunpack.c.l.b16 %v360
    %v1203 = vunpack.c.h.b16 %v360
    %v1204 = vunpack.c.l.b16 %v361
    %v1205 = vunpack.c.h.b16 %v361
    %v1206 = vunpack.c.l.b16 %v362
    %v1207 = vunpack.c.h.b16 %v362
    %v1208 = vunpack.c.l.b16 %v363
    %v1209 = vunpack.c.h.b16 %v363
    %v1210 = vunpack.c.l.b16 %v364
    %v1211 = vunpack.c.h.b16 %v364
    %v1212 = vunpack.c.l.b16 %v365
    %v1213 = vunpack.c.h.b16 %v365
    %v1214 = vunpack.c.l.b16 %v366
    %v1215 = vunpack.c.h.b16 %v366
    %v1216 = vunpack.c.l.b16 %v367
    %v1217 = vunpack.c.h.b16 %v367
    %v1218 = vunpack.c.l.b16 %v368
    %v1219 = vunpack.c.h.b16 %v368
    %v1220 = vunpack.c.l.b16 %v369
    %v1221 = vunpack.c.h.b16 %v369
    %v1222 = vunpack.c.l.b16 %v370
    %v1223 = vunpack.c.h.b16 %v370
    %v1224 = vunpack.c.l.b16 %v371
    %v1225 = vunpack.c.h.b16 %v371
    %v1226 = vunpack.c.l.b16 %v372
    %v1227 = vunpack.c.h.b16 %v372
    %v1228 = vunpack.c.l.b16 %v373
    %v1229 = vunpack.c.h.b16 %v373
    %v1230 = vunpack.c.l.b16 %v374
    %v1231 = vunpack.c.h.b16 %v374
    %v1232 = vunpack.c.l.b16 %v375
    %v1233 = vunpack.c.h.b16 %v375
    %v1234 = vunpack.c.l.b16 %v376
    %v1235 = vunpack.c.h.b16 %v376
    %v1236 = vunpack.c.l.b16 %v377
    %v1237 = vunpack.c.h.b16 %v377
    %v1238 = vunpack.c.l.b16 %v378
    %v1239 = vunpack.c.h.b16 %v378
    %v1240 = vunpack.c.l.b16 %v379
    %v1241 = vunpack.c.h.b16 %v379
    %v1242 = vunpack.c.l.b16 %v380
    %v1243 = vunpack.c.h.b16 %v380
    %v1244 = vunpack.c.l.b16 %v381
    %v1245 = vunpack.c.h.b16 %v381
    %v1246 = vunpack.c.l.b16 %v382
    %v1247 = vunpack.c.h.b16 %v382
    %v1248 = vunpack.c.l.b16 %v383
    %v1249 = vunpack.c.h.b16 %v383
    %v1250 = vunpack.c.l.b16 %v384
    %v1251 = vunpack.c.h.b16 %v384
    %v1252 = vunpack.c.l.b16 %v385
    %v1253 = vunpack.c.h.b16 %v385
    %v1254 = vunpack.c.l.b16 %v386
    %v1255 = vunpack.c.h.b16 %v386
    %v1256 = vunpack.c.l.b16 %v387
    %v1257 = vunpack.c.h.b16 %v387
    %v1258 = vunpack.c.l.b16 %v388
    %v1259 = vunpack.c.h.b16 %v388
    %v1260 = vunpack.c.l.b16 %v389
    %v1261 = vunpack.c.h.b16 %v389
    %v1262 = vunpack.c.l.b16 %v390
    %v1263 = vunpack.c.h.b16 %v390
    %v1264 = vunpack.c.l.b16 %v391
    %v1265 = vunpack.c.h.b16 %v391
    %v1266 = vunpack.c.l.b16 %v392
    %v1267 = vunpack.c.h.b16 %v392
    %v1268 = vunpack.c.l.b16 %v393
    %v1269 = vunpack.c.h.b16 %v393
    %v1270 = vunpack.c.l.b16 %v394
    %v1271 = vunpack.c.h.b16 %v394
    %v1272 = vunpack.c.l.b16 %v395
    %v1273 = vunpack.c.h.b16 %v395
    %v1274 = vunpack.c.l.b16 %v396
    %v1275 = vunpack.c.h.b16 %v396
    %v1276 = vunpack.c.l.b16 %v397
    %v1277 = vunpack.c.h.b16 %v397
    %v1278 = vunpack.c.l.b16 %v398
    %v1279 = vunpack.c.h.b16 %v398
    %v1280 = vunpack.c.l.b16 %v399
    %v1281 = vunpack.c.h.b16 %v399
    %v1282 = vunpack.c.l.b16 %v400
    %v1283 = vunpack.c.h.b16 %v400
    %v1284 = vunpack.c.l.b16 %v401
    %v1285 = vunpack.c.h.b16 %v401
    %v1286 = vunpack.c.l.b16 %v402
    %v1287 = vunpack.c.h.b16 %v402
    %v1288 = vunpack.c.l.b16 %v403
    %v1289 = vunpack.c.h.b16 %v403
    %v1290 = vunpack.c.l.b16 %v404
    %v1291 = vunpack.c.h.b16 %v404
    %v1292 = vunpack.c.l.b16 %v405
    %v1293 = vunpack.c.h.b16 %v405
    %v1294 = vunpack.c.l.b16 %v406
    %v1295 = vunpack.c.h.b16 %v406
    %v1296 = vunpack.c.l.b16 %v407
    %v1297 = vunpack.c.h.b16 %v407
    %v1298 = vunpack.c.l.b16 %v408
    %v1299 = vunpack.c.h.b16 %v408
    %v1300 = vunpack.c.l.b16 %v409
    %v1301 = vunpack.c.h.b16 %v409
    %v1302 = vunpack.c.l.b16 %v410
    %v1303 = vunpack.c.h.b16 %v410
    %v1304 = vunpack.c.l.b16 %v411
    %v1305 = vunpack.c.h.b16 %v411
    %v1306 = vunpack.c.l.b16 %v412
    %v1307 = vunpack.c.h.b16 %v412
    %v1308 = vunpack.c.l.b16 %v413
    %v1309 = vunpack.c.h.b16 %v413
    %v1310 = vunpack.c.l.b16 %v414
    %v1311 = vunpack.c.h.b16 %v414
    %v1312 = vunpack.c.l.b16 %v415
    %v1313 = vunpack.c.h.b16 %v415
    %v1314 = vunpack.c.l.b16 %v416
    %v1315 = vunpack.c.h.b16 %v416
    %v1316 = vunpack.c.l.b16 %v417
    %v1317 = vunpack.c.h.b16 %v417
    %v1318 = vunpack.c.l.b16 %v418
    %v1319 = vunpack.c.h.b16 %v418
    %v1320 = vunpack.c.l.b16 %v419
    %v1321 = vunpack.c.h.b16 %v419
    %v1322 = vunpack.c.l.b16 %v420
    %v1323 = vunpack.c.h.b16 %v420
    %v1324 = vunpack.c.l.b16 %v421
    %v1325 = vunpack.c.h.b16 %v421
    %v1326 = vunpack.c.l.b16 %v422
    %v1327 = vunpack.c.h.b16 %v422
    %v1328 = vunpack.c.l.b16 %v423
    %v1329 = vunpack.c.h.b16 %v423
    %v1330 = vunpack.c.l.b16 %v424
    %v1331 = vunpack.c.h.b16 %v424
    %v1332 = vunpack.c.l.b16 %v425
    %v1333 = vunpack.c.h.b16 %v425
    %v1334 = vunpack.c.l.b16 %v426
    %v1335 = vunpack.c.h.b16 %v426
    %v1336 = vunpack.c.l.b16 %v427
    %v1337 = vunpack.c.h.b16 %v427
    %v1338 = vunpack.c.l.b16 %v428
    %v1339 = vunpack.c.h.b16 %v428
    %v1340 = vunpack.c.l.b16 %v429
    %v1341 = vunpack.c.h.b16 %v429
    %v1342 = vunpack.c.l.b16 %v430
    %v1343 = vunpack.c.h.b16 %v430
    %v1344 = vunpack.c.l.b16 %v431
    %v1345 = vunpack.c.h.b16 %v431
    %v1346 = vunpack.c.l.b16 %v432
    %v1347 = vunpack.c.h.b16 %v432
    %v1348 = vunpack.c.l.b16 %v433
    %v1349 = vunpack.c.h.b16 %v433
    %v1350 = vunpack.c.l.b16 %v434
    %v1351 = vunpack.c.h.b16 %v434
    %v1352 = vunpack.c.l.b16 %v435
    %v1353 = vunpack.c.h.b16 %v435
    %v1354 = vunpack.c.l.b16 %v436
    %v1355 = vunpack.c.h.b16 %v436
    %v1356 = vunpack.c.l.b16 %v437
    %v1357 = vunpack.c.h.b16 %v437
    %v1358 = vunpack.c.l.b16 %v438
    %v1359 = vunpack.c.h.b16 %v438
    %v1360 = vunpack.c.l.b16 %v439
    %v1361 = vunpack.c.h.b16 %v439
    %v1362 = vunpack.c.l.b16 %v440
    %v1363 = vunpack.c.h.b16 %v440
    %v1364 = vunpack.c.l.b16 %v441
    %v1365 = vunpack.c.h.b16 %v441
    %v1366 = vunpack.c.l.b16 %v442
    %v1367 = vunpack.c.h.b16 %v442
    %v1368 = vunpack.c.l.b16 %v443
    %v1369 = vunpack.c.h.b16 %v443
    %v1370 = vunpack.c.l.b16 %v444
    %v1371 = vunpack.c.h.b16 %v444
    %v1372 = vunpack.c.l.b16 %v445
    %v1373 = vunpack.c.h.b16 %v445
    %v1374 = vpack.c.b16 %v810, %v798
    %v1375 = vpack.c.b16 %v811, %v799
    %v1376 = vpack.c.b16 %v812, %v800
    %v1377 = vpack.c.b16 %v813, %v801
    %v1378 = vpack.c.b16 %v814, %v802
    %v1379 = vpack.c.b16 %v815, %v803
    %v1380 = vpack.c.b16 %v816, %v804
    %v1381 = vpack.c.b16 %v817, %v805
    %v1382 = vpack.c.b16 %v818, %v806
    %v1383 = vpack.c.b16 %v819, %v807
    %v1384 = vpack.c.b16 %v820, %v808
    %v1385 = vpack.c.b16 %v821, %v809
    %v1386 = vpack.c.b16 %v834, %v822
    %v1387 = vpack.c.b16 %v835, %v823
    %v1388 = vpack.c.b16 %v836, %v824
    %v1389 = vpack.c.b16 %v837, %v825
    %v1390 = vpack.c.b16 %v838, %v826
    %v1391 = vpack.c.b16 %v839, %v827
    %v1392 = vpack.c.b16 %v840, %v828
    %v1393 = vpack.c.b16 %v841, %v829
    %v1394 = vpack.c.b16 %v842, %v830
    %v1395 = vpack.c.b16 %v843, %v831
    %v1396 = vpack.c.b16 %v844, %v832
    %v1397 = vpack.c.b16 %v845, %v833
    %v1398 = vpack.c.b16 %v858, %v846
    %v1399 = vpack.c.b16 %v859, %v847
    %v1400 = vpack.c.b16 %v860, %v848
    %v1401 = vpack.c.b16 %v861, %v849
    %v1402 = vpack.c.b16 %v862, %v850
    %v1403 = vpack.c.b16 %v863, %v851
    %v1404 = vpack.c.b16 %v864, %v852
    %v1405 = vpack.c.b16 %v865, %v853
    %v1406 = vpack.c.b16 %v866, %v854
    %v1407 = vpack.c.b16 %v867, %v855
    %v1408 = vpack.c.b16 %v868, %v856
    %v1409 = vpack.c.b16 %v869, %v857
    %v1410 = vpack.c.b16 %v882, %v870
    %v1411 = vpack.c.b16 %v883, %v871
    %v1412 = vpack.c.b16 %v884, %v872
    %v1413 = vpack.c.b16 %v885, %v873
    %v1414 = vpack.c.b16 %v886, %v874
    %v1415 = vpack.c.b16 %v887, %v875
    %v1416 = vpack.c.b16 %v888, %v876
    %v1417 = vpack.c.b16 %v889, %v877
    %v1418 = vpack.c.b16 %v890, %v878
    %v1419 = vpack.c.b16 %v891, %v879
    %v1420 = vpack.c.b16 %v892, %v880
    %v1421 = vpack.c.b16 %v893, %v881
    %v1422 = vpack.c.b16 %v906, %v894
    %v1423 = vpack.c.b16 %v907, %v895
    %v1424 = vpack.c.b16 %v908, %v896
    %v1425 = vpack.c.b16 %v909, %v897
    %v1426 = vpack.c.b16 %v910, %v898
    %v1427 = vpack.c.b16 %v911, %v899
    %v1428 = vpack.c.b16 %v912, %v900
    %v1429 = vpack.c.b16 %v913, %v901
    %v1430 = vpack.c.b16 %v914, %v902
    %v1431 = vpack.c.b16 %v915, %v903
    %v1432 = vpack.c.b16 %v916, %v904
    %v1433 = vpack.c.b16 %v917, %v905
    %v1434 = vpack.c.b16 %v930, %v918
    %v1435 = vpack.c.b16 %v931, %v919
    %v1436 = vpack.c.b16 %v932, %v920
    %v1437 = vpack.c.b16 %v933, %v921
    %v1438 = vpack.c.b16 %v934, %v922
    %v1439 = vpack.c.b16 %v935, %v923
    %v1440 = vpack.c.b16 %v936, %v924
    %v1441 = vpack.c.b16 %v937, %v925
    %v1442 = vpack.c.b16 %v938, %v926
    %v1443 = vpack.c.b16 %v939, %v927
    %v1444 = vpack.c.b16 %v940, %v928
    %v1445 = vpack.c.b16 %v941, %v929
    %v1446 = vpack.c.b16 %v954, %v942
    %v1447 = vpack.c.b16 %v955, %v943
    %v1448 = vpack.c.b16 %v956, %v944
    %v1449 = vpack.c.b16 %v957, %v945
    %v1450 = vpack.c.b16 %v958, %v946
    %v1451 = vpack.c.b16 %v959, %v947
    %v1452 = vpack.c.b16 %v960, %v948
    %v1453 = vpack.c.b16 %v961, %v949
    %v1454 = vpack.c.b16 %v962, %v950
    %v1455 = vpack.c.b16 %v963, %v951
    %v1456 = vpack.c.b16 %v964, %v952
    %v1457 = vpack.c.b16 %v965, %v953
    %v1458 = vpack.c.b16 %v978, %v966
    %v1459 = vpack.c.b16 %v979, %v967
    %v1460 = vpack.c.b16 %v980, %v968
    %v1461 = vpack.c.b16 %v981, %v969
    %v1462 = vpack.c.b16 %v982, %v970
    %v1463 = vpack.c.b16 %v983, %v971
    %v1464 = vpack.c.b16 %v984, %v972
    %v1465 = vpack.c.b16 %v985, %v973
    %v1466 = vpack.c.b16 %v986, %v974
    %v1467 = vpack.c.b16 %v987, %v975
    %v1468 = vpack.c.b16 %v988, %v976
    %v1469 = vpack.c.b16 %v989, %v977
    %v1470 = vpack.c.b16 %v1002, %v990
    %v1471 = vpack.c.b16 %v1003, %v991
    %v1472 = vpack.c.b16 %v1004, %v992
    %v1473 = vpack.c.b16 %v1005, %v993
    %v1474 = vpack.c.b16 %v1006, %v994
    %v1475 = vpack.c.b16 %v1007, %v995
    %v1476 = vpack.c.b16 %v1008, %v996
    %v1477 = vpack.c.b16 %v1009, %v997
    %v1478 = vpack.c.b16 %v1010, %v998
    %v1479 = vpack.c.b16 %v1011, %v999
    %v1480 = vpack.c.b16 %v1012, %v1000
    %v1481 = vpack.c.b16 %v1013, %v1001
    %v1482 = vpack.c.b16 %v1026, %v1014
    %v1483 = vpack.c.b16 %v1027, %v1015
    %v1484 = vpack.c.b16 %v1028, %v1016
    %v1485 = vpack.c.b16 %v1029, %v1017
    %v1486 = vpack.c.b16 %v1030, %v1018
    %v1487 = vpack.c.b16 %v1031, %v1019
    %v1488 = vpack.c.b16 %v1032, %v1020
    %v1489 = vpack.c.b16 %v1033, %v1021
    %v1490 = vpack.c.b16 %v1034, %v1022
    %v1491 = vpack.c.b16 %v1035, %v1023
    %v1492 = vpack.c.b16 %v1036, %v1024
    %v1493 = vpack.c.b16 %v1037, %v1025
    %v1494 = vpack.c.b16 %v1050, %v1038
    %v1495 = vpack.c.b16 %v1051, %v1039
    %v1496 = vpack.c.b16 %v1052, %v1040
    %v1497 = vpack.c.b16 %v1053, %v1041
    %v1498 = vpack.c.b16 %v1054, %v1042
    %v1499 = vpack.c.b16 %v1055, %v1043
    %v1500 = vpack.c.b16 %v1056, %v1044
    %v1501 = vpack.c.b16 %v1057, %v1045
    %v1502 = vpack.c.b16 %v1058, %v1046
    %v1503 = vpack.c.b16 %v1059, %v1047
    %v1504 = vpack.c.b16 %v1060, %v1048
    %v1505 = vpack.c.b16 %v1061, %v1049
    %v1506 = vpack.c.b16 %v1074, %v1062
    %v1507 = vpack.c.b16 %v1075, %v1063
    %v1508 = vpack.c.b16 %v1076, %v1064
    %v1509 = vpack.c.b16 %v1077, %v1065
    %v1510 = vpack.c.b16 %v1078, %v1066
    %v1511 = vpack.c.b16 %v1079, %v1067
    %v1512 = vpack.c.b16 %v1080, %v1068
    %v1513 = vpack.c.b16 %v1081, %v1069
    %v1514 = vpack.c.b16 %v1082, %v1070
    %v1515 = vpack.c.b16 %v1083, %v1071
    %v1516 = vpack.c.b16 %v1084, %v1072
    %v1517 = vpack.c.b16 %v1085, %v1073
    %v1518 = vpack.c.b16 %v1098, %v1086
    %v1519 = vpack.c.b16 %v1099, %v1087
    %v1520 = vpack.c.b16 %v1100, %v1088
    %v1521 = vpack.c.b16 %v1101, %v1089
    %v1522 = vpack.c.b16 %v1102, %v1090
    %v1523 = vpack.c.b16 %v1103, %v1091
    %v1524 = vpack.c.b16 %v1104, %v1092
    %v1525 = vpack.c.b16 %v1105, %v1093
    %v1526 = vpack.c.b16 %v1106, %v1094
    %v1527 = vpack.c.b16 %v1107, %v1095
    %v1528 = vpack.c.b16 %v1108, %v1096
    %v1529 = vpack.c.b16 %v1109, %v1097
    %v1530 = vpack.c.b16 %v1122, %v1110
    %v1531 = vpack.c.b16 %v1123, %v1111
    %v1532 = vpack.c.b16 %v1124, %v1112
    %v1533 = vpack.c.b16 %v1125, %v1113
    %v1534 = vpack.c.b16 %v1126, %v1114
    %v1535 = vpack.c.b16 %v1127, %v1115
    %v1536 = vpack.c.b16 %v1128, %v1116
    %v1537 = vpack.c.b16 %v1129, %v1117
    %v1538 = vpack.c.b16 %v1130, %v1118
    %v1539 = vpack.c.b16 %v1131, %v1119
    %v1540 = vpack.c.b16 %v1132, %v1120
    %v1541 = vpack.c.b16 %v1133, %v1121
    %v1542 = vpack.c.b16 %v1146, %v1134
    %v1543 = vpack.c.b16 %v1147, %v1135
    %v1544 = vpack.c.b16 %v1148, %v1136
    %v1545 = vpack.c.b16 %v1149, %v1137
    %v1546 = vpack.c.b16 %v1150, %v1138
    %v1547 = vpack.c.b16 %v1151, %v1139
    %v1548 = vpack.c.b16 %v1152, %v1140
    %v1549 = vpack.c.b16 %v1153, %v1141
    %v1550 = vpack.c.b16 %v1154, %v1142
    %v1551 = vpack.c.b16 %v1155, %v1143
    %v1552 = vpack.c.b16 %v1156, %v1144
    %v1553 = vpack.c.b16 %v1157, %v1145
    %v1554 = vpack.c.b16 %v1170, %v1158
    %v1555 = vpack.c.b16 %v1171, %v1159
    %v1556 = vpack.c.b16 %v1172, %v1160
    %v1557 = vpack.c.b16 %v1173, %v1161
    %v1558 = vpack.c.b16 %v1174, %v1162
    %v1559 = vpack.c.b16 %v1175, %v1163
    %v1560 = vpack.c.b16 %v1176, %v1164
    %v1561 = vpack.c.b16 %v1177, %v1165
    %v1562 = vpack.c.b16 %v1178, %v1166
    %v1563 = vpack.c.b16 %v1179, %v1167
    %v1564 = vpack.c.b16 %v1180, %v1168
    %v1565 = vpack.c.b16 %v1181, %v1169
    %v1566 = vpack.c.b16 %v1194, %v1182
    %v1567 = vpack.c.b16 %v1195, %v1183
    %v1568 = vpack.c.b16 %v1196, %v1184
    %v1569 = vpack.c.b16 %v1197, %v1185
    %v1570 = vpack.c.b16 %v1198, %v1186
    %v1571 = vpack.c.b16 %v1199, %v1187
    %v1572 = vpack.c.b16 %v1200, %v1188
    %v1573 = vpack.c.b16 %v1201, %v1189
    %v1574 = vpack.c.b16 %v1202, %v1190
    %v1575 = vpack.c.b16 %v1203, %v1191
    %v1576 = vpack.c.b16 %v1204, %v1192
    %v1577 = vpack.c.b16 %v1205, %v1193
    %v1578 = vpack.c.b16 %v1218, %v1206
    %v1579 = vpack.c.b16 %v1219, %v1207
    %v1580 = vpack.c.b16 %v1220, %v1208
    %v1581 = vpack.c.b16 %v1221, %v1209
    %v1582 = vpack.c.b16 %v1222, %v1210
    %v1583 = vpack.c.b16 %v1223, %v1211
    %v1584 = vpack.c.b16 %v1224, %v1212
    %v1585 = vpack.c.b16 %v1225, %v1213
    %v1586 = vpack.c.b16 %v1226, %v1214
    %v1587 = vpack.c.b16 %v1227, %v1215
    %v1588 = vpack.c.b16 %v1228, %v1216
    %v1589 = vpack.c.b16 %v1229, %v1217
    %v1590 = vpack.c.b16 %v1242, %v1230
    %v1591 = vpack.c.b16 %v1243, %v1231
    %v1592 = vpack.c.b16 %v1244, %v1232
    %v1593 = vpack.c.b16 %v1245, %v1233
    %v1594 = vpack.c.b16 %v1246, %v1234
    %v1595 = vpack.c.b16 %v1247, %v1235
    %v1596 = vpack.c.b16 %v1248, %v1236
    %v1597 = vpack.c.b16 %v1249, %v1237
    %v1598 = vpack.c.b16 %v1250, %v1238
    %v1599 = vpack.c.b16 %v1251, %v1239
    %v1600 = vpack.c.b16 %v1252, %v1240
    %v1601 = vpack.c.b16 %v1253, %v1241
    %v1602 = vpack.c.b16 %v1266, %v1254
    %v1603 = vpack.c.b16 %v1267, %v1255
    %v1604 = vpack.c.b16 %v1268, %v1256
    %v1605 = vpack.c.b16 %v1269, %v1257
    %v1606 = vpack.c.b16 %v1270, %v1258
    %v1607 = vpack.c.b16 %v1271, %v1259
    %v1608 = vpack.c.b16 %v1272, %v1260
    %v1609 = vpack.c.b16 %v1273, %v1261
    %v1610 = vpack.c.b16 %v1274, %v1262
    %v1611 = vpack.c.b16 %v1275, %v1263
    %v1612 = vpack.c.b16 %v1276, %v1264
    %v1613 = vpack.c.b16 %v1277, %v1265
    %v1614 = vpack.c.b16 %v1290, %v1278
    %v1615 = vpack.c.b16 %v1291, %v1279
    %v1616 = vpack.c.b16 %v1292, %v1280
    %v1617 = vpack.c.b16 %v1293, %v1281
    %v1618 = vpack.c.b16 %v1294, %v1282
    %v1619 = vpack.c.b16 %v1295, %v1283
    %v1620 = vpack.c.b16 %v1296, %v1284
    %v1621 = vpack.c.b16 %v1297, %v1285
    %v1622 = vpack.c.b16 %v1298, %v1286
    %v1623 = vpack.c.b16 %v1299, %v1287
    %v1624 = vpack.c.b16 %v1300, %v1288
    %v1625 = vpack.c.b16 %v1301, %v1289
    %v1626 = vpack.c.b16 %v1314, %v1302
    %v1627 = vpack.c.b16 %v1315, %v1303
    %v1628 = vpack.c.b16 %v1316, %v1304
    %v1629 = vpack.c.b16 %v1317, %v1305
    %v1630 = vpack.c.b16 %v1318, %v1306
    %v1631 = vpack.c.b16 %v1319, %v1307
    %v1632 = vpack.c.b16 %v1320, %v1308
    %v1633 = vpack.c.b16 %v1321, %v1309
    %v1634 = vpack.c.b16 %v1322, %v1310
    %v1635 = vpack.c.b16 %v1323, %v1311
    %v1636 = vpack.c.b16 %v1324, %v1312
    %v1637 = vpack.c.b16 %v1325, %v1313
    %v1638 = vpack.c.b16 %v1338, %v1326
    %v1639 = vpack.c.b16 %v1339, %v1327
    %v1640 = vpack.c.b16 %v1340, %v1328
    %v1641 = vpack.c.b16 %v1341, %v1329
    %v1642 = vpack.c.b16 %v1342, %v1330
    %v1643 = vpack.c.b16 %v1343, %v1331
    %v1644 = vpack.c.b16 %v1344, %v1332
    %v1645 = vpack.c.b16 %v1345, %v1333
    %v1646 = vpack.c.b16 %v1346, %v1334
    %v1647 = vpack.c.b16 %v1347, %v1335
    %v1648 = vpack.c.b16 %v1348, %v1336
    %v1649 = vpack.c.b16 %v1349, %v1337
    %v1650 = vpack.c.b16 %v1362, %v1350
    %v1651 = vpack.c.b16 %v1363, %v1351
    %v1652 = vpack.c.b16 %v1364, %v1352
    %v1653 = vpack.c.b16 %v1365, %v1353
    %v1654 = vpack.c.b16 %v1366, %v1354
    %v1655 = vpack.c.b16 %v1367, %v1355
    %v1656 = vpack.c.b16 %v1368, %v1356
    %v1657 = vpack.c.b16 %v1369, %v1357
    %v1658 = vpack.c.b16 %v1370, %v1358
    %v1659 = vpack.c.b16 %v1371, %v1359
    %v1660 = vpack.c.b16 %v1372, %v1360
    %v1661 = vpack.c.b16 %v1373, %v1361
    %1950 = vmatprep.subr.bf16.mxu0 %v1375
    %1951 = vmatpush1.bf16.msra.mxu0 %v1374
    %1952 = vmatprep.subr.bf16.mxu0 %v1387
    %1953 = vmatpush1.bf16.msra.mxu0 %v1386
    %1954 = vmatprep.subr.bf16.mxu0 %v1399
    %1955 = vmatpush1.bf16.msra.mxu0 %v1398
    %1956 = vmatprep.subr.bf16.mxu0 %v1411
    %1957 = vmatpush1.bf16.msra.mxu0 %v1410
    %1958 = vmatprep.subr.bf16.mxu0 %v1423
    %1959 = vmatpush1.bf16.msra.mxu0 %v1422
    %1960 = vmatprep.subr.bf16.mxu0 %v1435
    %1961 = vmatpush1.bf16.msra.mxu0 %v1434
    %1962 = vmatprep.subr.bf16.mxu0 %v1447
    %1963 = vmatpush1.bf16.msra.mxu0 %v1446
    %1964 = vmatprep.subr.bf16.mxu0 %v1459
    %1965 = vmatpush1.bf16.msra.mxu0 %v1458
    %1966 = vmatprep.subr.bf16.mxu0 %v1471
    %1967 = vmatpush1.bf16.msra.mxu0 %v1470
    %1968 = vmatprep.subr.bf16.mxu0 %v1483
    %1969 = vmatpush1.bf16.msra.mxu0 %v1482
    %1970 = vmatprep.subr.bf16.mxu0 %v1495
    %1971 = vmatpush1.bf16.msra.mxu0 %v1494
    %1972 = vmatprep.subr.bf16.mxu0 %v1507
    %1973 = vmatpush1.bf16.msra.mxu0 %v1506
    %1974 = vmatprep.subr.bf16.mxu0 %v1519
    %1975 = vmatpush1.bf16.msra.mxu0 %v1518
    %1976 = vmatprep.subr.bf16.mxu0 %v1531
    %1977 = vmatpush1.bf16.msra.mxu0 %v1530
    %1978 = vmatprep.subr.bf16.mxu0 %v1543
    %1979 = vmatpush1.bf16.msra.mxu0 %v1542
    %1980 = vmatprep.subr.bf16.mxu0 %v1555
    %1981 = vmatpush1.bf16.msra.mxu0 %v1554
    %1982 = vmatprep.mubr.bf16.mxu0 %v135
    %1983 = vmatmul.mubr.bf16.gmra.mrb[0].mxu0 %v134
    %v1984 = vpop.f32.mrb[0].mxu0
    %v1985 = vadd.f32 %v453, %v1984
    %v1986 = vpop.f32.mrb[0].mxu0
    %v1987 = vadd.f32 %v457, %v1986
    %v1988 = vpop.f32.mrb[0].mxu0
    %v1989 = vadd.f32 %v453, %v1988
    %v1990 = vpop.f32.mrb[0].mxu0
    %v1991 = vadd.f32 %v457, %v1990
    %1992 = vmatprep.mubr.bf16.mxu0 %v138
    %1993 = vmatmul.mubr.bf16.gmra.mrb[0].mxu0 %v137
    %v1994 = vpop.f32.mrb[0].mxu0
    %v1995 = vadd.f32 %v453, %v1994
    %v1996 = vpop.f32.mrb[0].mxu0
    %v1997 = vadd.f32 %v457, %v1996
    %v1998 = vpop.f32.mrb[0].mxu0
    %v1999 = vadd.f32 %v453, %v1998
    %v2000 = vpop.f32.mrb[0].mxu0
    %v2001 = vadd.f32 %v457, %v2000
    %2002 = vmatprep.mubr.bf16.mxu0 %v141
    %2003 = vmatmul.mubr.bf16.gmra.mrb[0].mxu0 %v140
    %v2004 = vpop.f32.mrb[0].mxu0
    %v2005 = vadd.f32 %v453, %v2004
    %v2006 = vpop.f32.mrb[0].mxu0
    %v2007 = vadd.f32 %v457, %v2006
    %v2008 = vpop.f32.mrb[0].mxu0
    %v2009 = vadd.f32 %v453, %v2008
    %v2010 = vpop.f32.mrb[0].mxu0
    %v2011 = vadd.f32 %v457, %v2010
    %2012 = vmatprep.mubr.bf16.mxu0 %v144
    %2013 = vmatmul.mubr.bf16.gmra.mrb[0].mxu0 %v143
    %v2014 = vpop.f32.mrb[0].mxu0
    %v2015 = vadd.f32 %v453, %v2014
    %v2016 = vpop.f32.mrb[0].mxu0
    %v2017 = vadd.f32 %v457, %v2016
    %v2018 = vpop.f32.mrb[0].mxu0
    %v2019 = vadd.f32 %v453, %v2018
    %v2020 = vpop.f32.mrb[0].mxu0
    %v2021 = vadd.f32 %v457, %v2020
    %2022 = vmatprep.mubr.bf16.mxu0 %v147
    %2023 = vmatmul.mubr.bf16.gmra.mrb[0].mxu0 %v146
    %v2024 = vpop.f32.mrb[0].mxu0
    %v2025 = vadd.f32 %v453, %v2024
    %v2026 = vpop.f32.mrb[0].mxu0
    %v2027 = vadd.f32 %v457, %v2026
    %v2028 = vpop.f32.mrb[0].mxu0
    %v2029 = vadd.f32 %v453, %v2028
    %v2030 = vpop.f32.mrb[0].mxu0
    %v2031 = vadd.f32 %v457, %v2030
    %2032 = vmatprep.mubr.bf16.mxu0 %v150
    %2033 = vmatmul.mubr.bf16.gmra.mrb[0].mxu0 %v149
    %v2034 = vpop.f32.mrb[0].mxu0
    %v2035 = vadd.f32 %v453, %v2034
    %v2036 = vpop.f32.mrb[0].mxu0
    %v2037 = vadd.f32 %v457, %v2036
    %v2038 = vpop.f32.mrb[0].mxu0
    %v2039 = vadd.f32 %v453, %v2038
    %v2040 = vpop.f32.mrb[0].mxu0
    %v2041 = vadd.f32 %v457, %v2040
    %2042 = vmatprep.mubr.bf16.mxu0 %v153
    %2043 = vmatmul.mubr.bf16.gmra.mrb[0].mxu0 %v152
    %v2044 = vpop.f32.mrb[0].mxu0
    %v2045 = vadd.f32 %v453, %v2044
    %v2046 = vpop.f32.mrb[0].mxu0
    %v2047 = vadd.f32 %v457, %v2046
    %v2048 = vpop.f32.mrb[0].mxu0
    %v2049 = vadd.f32 %v453, %v2048
    %v2050 = vpop.f32.mrb[0].mxu0
    %v2051 = vadd.f32 %v457, %v2050
    %2052 = vmatprep.mubr.bf16.mxu0 %v156
    %2053 = vmatmul.mubr.bf16.gmra.mrb[0].mxu0 %v155
    %v2054 = vpop.f32.mrb[0].mxu0
    %v2055 = vadd.f32 %v453, %v2054
    %v2056 = vpop.f32.mrb[0].mxu0
    %v2057 = vadd.f32 %v457, %v2056
    %v2058 = vpop.f32.mrb[0].mxu0
    %v2059 = vadd.f32 %v453, %v2058
    %v2060 = vpop.f32.mrb[0].mxu0
    %v2061 = vadd.f32 %v457, %v2060
    %2062 = vdwg.mxu0
    %2063 = vmatprep.subr.bf16.mxu0 %v1567
    %2064 = vmatpush1.bf16.msra.mxu0 %v1566
    %2065 = vmatprep.subr.bf16.mxu0 %v1579
    %2066 = vmatpush1.bf16.msra.mxu0 %v1578
    %2067 = vmatprep.subr.bf16.mxu0 %v1591
    %2068 = vmatpush1.bf16.msra.mxu0 %v1590
    %2069 = vmatprep.subr.bf16.mxu0 %v1603
    %2070 = vmatpush1.bf16.msra.mxu0 %v1602
    %2071 = vmatprep.subr.bf16.mxu0 %v1615
    %2072 = vmatpush1.bf16.msra.mxu0 %v1614
    %2073 = vmatprep.subr.bf16.mxu0 %v1627
    %2074 = vmatpush1.bf16.msra.mxu0 %v1626
    %2075 = vmatprep.subr.bf16.mxu0 %v1639
    %2076 = vmatpush1.bf16.msra.mxu0 %v1638
    %2077 = vmatprep.subr.bf16.mxu0 %v1651
    %2078 = vmatpush1.bf16.msra.mxu0 %v1650
    %2079 = vmatprep.subr.bf16.mxu0 0
    %2080 = vmatpush1.bf16.msra.mxu0 0
    %2081 = vmatprep.subr.bf16.mxu0 0
    %2082 = vmatpush1.bf16.msra.mxu0 0
    %2083 = vmatprep.subr.bf16.mxu0 0
    %2084 = vmatpush1.bf16.msra.mxu0 0
    %2085 = vmatprep.subr.bf16.mxu0 0
    %2086 = vmatpush1.bf16.msra.mxu0 0
    %2087 = vmatprep.subr.bf16.mxu0 0
    %2088 = vmatpush1.bf16.msra.mxu0 0
    %2089 = vmatprep.subr.bf16.mxu0 0
    %2090 = vmatpush1.bf16.msra.mxu0 0
    %2091 = vmatprep.subr.bf16.mxu0 0
    %2092 = vmatpush1.bf16.msra.mxu0 0
    %2093 = vmatprep.subr.bf16.mxu0 0
    %2094 = vmatpush1.bf16.msra.mxu0 0
    %2095 = vmatprep.mubr.bf16.mxu0 0
    %2096 = vmatmul.mubr.bf16.gmra.mrb[0].mxu0 %v136
    %v2097 = vpop.f32.mrb[0].mxu0
    %v2098 = vadd.f32 %v1985, %v2097
    %v2099 = vpop.f32.mrb[0].mxu0
    %v2100 = vadd.f32 %v1987, %v2099
    %v2101 = vpop.f32.mrb[0].mxu0
    %v2102 = vadd.f32 %v1989, %v2101
    %v2103 = vpop.f32.mrb[0].mxu0
    %v2104 = vadd.f32 %v1991, %v2103
    %2105 = vmatprep.mubr.bf16.mxu0 0
    %2106 = vmatmul.mubr.bf16.gmra.mrb[0].mxu0 %v139
    %v2107 = vpop.f32.mrb[0].mxu0
    %v2108 = vadd.f32 %v1995, %v2107
    %v2109 = vpop.f32.mrb[0].mxu0
    %v2110 = vadd.f32 %v1997, %v2109
    %v2111 = vpop.f32.mrb[0].mxu0
    %v2112 = vadd.f32 %v1999, %v2111
    %v2113 = vpop.f32.mrb[0].mxu0
    %v2114 = vadd.f32 %v2001, %v2113
    %2115 = vmatprep.mubr.bf16.mxu0 0
    %2116 = vmatmul.mubr.bf16.gmra.mrb[0].mxu0 %v142
    %v2117 = vpop.f32.mrb[0].mxu0
    %v2118 = vadd.f32 %v2005, %v2117
    %v2119 = vpop.f32.mrb[0].mxu0
    %v2120 = vadd.f32 %v2007, %v2119
    %v2121 = vpop.f32.mrb[0].mxu0
    %v2122 = vadd.f32 %v2009, %v2121
    %v2123 = vpop.f32.mrb[0].mxu0
    %v2124 = vadd.f32 %v2011, %v2123
    %2125 = vmatprep.mubr.bf16.mxu0 0
    %2126 = vmatmul.mubr.bf16.gmra.mrb[0].mxu0 %v145
    %v2127 = vpop.f32.mrb[0].mxu0
    %v2128 = vadd.f32 %v2015, %v2127
    %v2129 = vpop.f32.mrb[0].mxu0
    %v2130 = vadd.f32 %v2017, %v2129
    %v2131 = vpop.f32.mrb[0].mxu0
    %v2132 = vadd.f32 %v2019, %v2131
    %v2133 = vpop.f32.mrb[0].mxu0
    %v2134 = vadd.f32 %v2021, %v2133
    %2135 = vmatprep.mubr.bf16.mxu0 0
    %2136 = vmatmul.mubr.bf16.gmra.mrb[0].mxu0 %v148
    %v2137 = vpop.f32.mrb[0].mxu0
    %v2138 = vadd.f32 %v2025, %v2137
    %v2139 = vpop.f32.mrb[0].mxu0
    %v2140 = vadd.f32 %v2027, %v2139
    %v2141 = vpop.f32.mrb[0].mxu0
    %v2142 = vadd.f32 %v2029, %v2141
    %v2143 = vpop.f32.mrb[0].mxu0
    %v2144 = vadd.f32 %v2031, %v2143
    %2145 = vmatprep.mubr.bf16.mxu0 0
    %2146 = vmatmul.mubr.bf16.gmra.mrb[0].mxu0 %v151
    %v2147 = vpop.f32.mrb[0].mxu0
    %v2148 = vadd.f32 %v2035, %v2147
    %v2149 = vpop.f32.mrb[0].mxu0
    %v2150 = vadd.f32 %v2037, %v2149
    %v2151 = vpop.f32.mrb[0].mxu0
    %v2152 = vadd.f32 %v2039, %v2151
    %v2153 = vpop.f32.mrb[0].mxu0
    %v2154 = vadd.f32 %v2041, %v2153
    %2155 = vmatprep.mubr.bf16.mxu0 0
    %2156 = vmatmul.mubr.bf16.gmra.mrb[0].mxu0 %v154
    %v2157 = vpop.f32.mrb[0].mxu0
    %v2158 = vadd.f32 %v2045, %v2157
    %v2159 = vpop.f32.mrb[0].mxu0
    %v2160 = vadd.f32 %v2047, %v2159
    %v2161 = vpop.f32.mrb[0].mxu0
    %v2162 = vadd.f32 %v2049, %v2161
    %v2163 = vpop.f32.mrb[0].mxu0
    %v2164 = vadd.f32 %v2051, %v2163
    %2165 = vmatprep.mubr.bf16.mxu0 0
    %2166 = vmatmul.mubr.bf16.gmra.mrb[0].mxu0 %v157
    %v2167 = vpop.f32.mrb[0].mxu0
    %v2168 = vadd.f32 %v2055, %v2167
    %v2169 = vpop.f32.mrb[0].mxu0
    %v2170 = vadd.f32 %v2057, %v2169
    %v2171 = vpop.f32.mrb[0].mxu0
    %v2172 = vadd.f32 %v2059, %v2171
    %v2173 = vpop.f32.mrb[0].mxu0
    %v2174 = vadd.f32 %v2061, %v2173
    %2175 = vdwg.mxu0
    %2176 = vmatprep.subr.bf16.mxu0 %v1377
    %2177 = vmatpush1.bf16.msra.mxu0 %v1376
    %2178 = vmatprep.subr.bf16.mxu0 %v1389
    %2179 = vmatpush1.bf16.msra.mxu0 %v1388
    %2180 = vmatprep.subr.bf16.mxu0 %v1401
    %2181 = vmatpush1.bf16.msra.mxu0 %v1400
    %2182 = vmatprep.subr.bf16.mxu0 %v1413
    %2183 = vmatpush1.bf16.msra.mxu0 %v1412
    %2184 = vmatprep.subr.bf16.mxu0 %v1425
    %2185 = vmatpush1.bf16.msra.mxu0 %v1424
    %2186 = vmatprep.subr.bf16.mxu0 %v1437
    %2187 = vmatpush1.bf16.msra.mxu0 %v1436
    %2188 = vmatprep.subr.bf16.mxu0 %v1449
    %2189 = vmatpush1.bf16.msra.mxu0 %v1448
    %2190 = vmatprep.subr.bf16.mxu0 %v1461
    %2191 = vmatpush1.bf16.msra.mxu0 %v1460
    %2192 = vmatprep.subr.bf16.mxu0 %v1473
    %2193 = vmatpush1.bf16.msra.mxu0 %v1472
    %2194 = vmatprep.subr.bf16.mxu0 %v1485
    %2195 = vmatpush1.bf16.msra.mxu0 %v1484
    %2196 = vmatprep.subr.bf16.mxu0 %v1497
    %2197 = vmatpush1.bf16.msra.mxu0 %v1496
    %2198 = vmatprep.subr.bf16.mxu0 %v1509
    %2199 = vmatpush1.bf16.msra.mxu0 %v1508
    %2200 = vmatprep.subr.bf16.mxu0 %v1521
    %2201 = vmatpush1.bf16.msra.mxu0 %v1520
    %2202 = vmatprep.subr.bf16.mxu0 %v1533
    %2203 = vmatpush1.bf16.msra.mxu0 %v1532
    %2204 = vmatprep.subr.bf16.mxu0 %v1545
    %2205 = vmatpush1.bf16.msra.mxu0 %v1544
    %2206 = vmatprep.subr.bf16.mxu0 %v1557
    %2207 = vmatpush1.bf16.msra.mxu0 %v1556
    %2208 = vmatprep.mubr.bf16.mxu0 %v135
    %2209 = vmatmul.mubr.bf16.gmra.mrb[0].mxu0 %v134
    %v2210 = vpop.f32.mrb[0].mxu0
    %v2211 = vadd.f32 %v461, %v2210
    %v2212 = vpop.f32.mrb[0].mxu0
    %v2213 = vadd.f32 %v465, %v2212
    %v2214 = vpop.f32.mrb[0].mxu0
    %v2215 = vadd.f32 %v461, %v2214
    %v2216 = vpop.f32.mrb[0].mxu0
    %v2217 = vadd.f32 %v465, %v2216
    %2218 = vmatprep.mubr.bf16.mxu0 %v138
    %2219 = vmatmul.mubr.bf16.gmra.mrb[0].mxu0 %v137
    %v2220 = vpop.f32.mrb[0].mxu0
    %v2221 = vadd.f32 %v461, %v2220
    %v2222 = vpop.f32.mrb[0].mxu0
    %v2223 = vadd.f32 %v465, %v2222
    %v2224 = vpop.f32.mrb[0].mxu0
    %v2225 = vadd.f32 %v461, %v2224
    %v2226 = vpop.f32.mrb[0].mxu0
    %v2227 = vadd.f32 %v465, %v2226
    %2228 = vmatprep.mubr.bf16.mxu0 %v141
    %2229 = vmatmul.mubr.bf16.gmra.mrb[0].mxu0 %v140
    %v2230 = vpop.f32.mrb[0].mxu0
    %v2231 = vadd.f32 %v461, %v2230
    %v2232 = vpop.f32.mrb[0].mxu0
    %v2233 = vadd.f32 %v465, %v2232
    %v2234 = vpop.f32.mrb[0].mxu0
    %v2235 = vadd.f32 %v461, %v2234
    %v2236 = vpop.f32.mrb[0].mxu0
    %v2237 = vadd.f32 %v465, %v2236
    %2238 = vmatprep.mubr.bf16.mxu0 %v144
    %2239 = vmatmul.mubr.bf16.gmra.mrb[0].mxu0 %v143
    %v2240 = vpop.f32.mrb[0].mxu0
    %v2241 = vadd.f32 %v461, %v2240
    %v2242 = vpop.f32.mrb[0].mxu0
    %v2243 = vadd.f32 %v465, %v2242
    %v2244 = vpop.f32.mrb[0].mxu0
    %v2245 = vadd.f32 %v461, %v2244
    %v2246 = vpop.f32.mrb[0].mxu0
    %v2247 = vadd.f32 %v465, %v2246
    %2248 = vmatprep.mubr.bf16.mxu0 %v147
    %2249 = vmatmul.mubr.bf16.gmra.mrb[0].mxu0 %v146
    %v2250 = vpop.f32.mrb[0].mxu0
    %v2251 = vadd.f32 %v461, %v2250
    %v2252 = vpop.f32.mrb[0].mxu0
    %v2253 = vadd.f32 %v465, %v2252
    %v2254 = vpop.f32.mrb[0].mxu0
    %v2255 = vadd.f32 %v461, %v2254
    %v2256 = vpop.f32.mrb[0].mxu0
    %v2257 = vadd.f32 %v465, %v2256
    %2258 = vmatprep.mubr.bf16.mxu0 %v150
    %2259 = vmatmul.mubr.bf16.gmra.mrb[0].mxu0 %v149
    %v2260 = vpop.f32.mrb[0].mxu0
    %v2261 = vadd.f32 %v461, %v2260
    %v2262 = vpop.f32.mrb[0].mxu0
    %v2263 = vadd.f32 %v465, %v2262
    %v2264 = vpop.f32.mrb[0].mxu0
    %v2265 = vadd.f32 %v461, %v2264
    %v2266 = vpop.f32.mrb[0].mxu0
    %v2267 = vadd.f32 %v465, %v2266
    %2268 = vmatprep.mubr.bf16.mxu0 %v153
    %2269 = vmatmul.mubr.bf16.gmra.mrb[0].mxu0 %v152
    %v2270 = vpop.f32.mrb[0].mxu0
    %v2271 = vadd.f32 %v461, %v2270
    %v2272 = vpop.f32.mrb[0].mxu0
    %v2273 = vadd.f32 %v465, %v2272
    %v2274 = vpop.f32.mrb[0].mxu0
    %v2275 = vadd.f32 %v461, %v2274
    %v2276 = vpop.f32.mrb[0].mxu0
    %v2277 = vadd.f32 %v465, %v2276
    %2278 = vmatprep.mubr.bf16.mxu0 %v156
    %2279 = vmatmul.mubr.bf16.gmra.mrb[0].mxu0 %v155
    %v2280 = vpop.f32.mrb[0].mxu0
    %v2281 = vadd.f32 %v461, %v2280
    %v2282 = vpop.f32.mrb[0].mxu0
    %v2283 = vadd.f32 %v465, %v2282
    %v2284 = vpop.f32.mrb[0].mxu0
    %v2285 = vadd.f32 %v461, %v2284
    %v2286 = vpop.f32.mrb[0].mxu0
    %v2287 = vadd.f32 %v465, %v2286
    %2288 = vdwg.mxu0
    %2289 = vmatprep.subr.bf16.mxu0 %v1569
    %2290 = vmatpush1.bf16.msra.mxu0 %v1568
    %2291 = vmatprep.subr.bf16.mxu0 %v1581
    %2292 = vmatpush1.bf16.msra.mxu0 %v1580
    %2293 = vmatprep.subr.bf16.mxu0 %v1593
    %2294 = vmatpush1.bf16.msra.mxu0 %v1592
    %2295 = vmatprep.subr.bf16.mxu0 %v1605
    %2296 = vmatpush1.bf16.msra.mxu0 %v1604
    %2297 = vmatprep.subr.bf16.mxu0 %v1617
    %2298 = vmatpush1.bf16.msra.mxu0 %v1616
    %2299 = vmatprep.subr.bf16.mxu0 %v1629
    %2300 = vmatpush1.bf16.msra.mxu0 %v1628
    %2301 = vmatprep.subr.bf16.mxu0 %v1641
    %2302 = vmatpush1.bf16.msra.mxu0 %v1640
    %2303 = vmatprep.subr.bf16.mxu0 %v1653
    %2304 = vmatpush1.bf16.msra.mxu0 %v1652
    %2305 = vmatprep.subr.bf16.mxu0 0
    %2306 = vmatpush1.bf16.msra.mxu0 0
    %2307 = vmatprep.subr.bf16.mxu0 0
    %2308 = vmatpush1.bf16.msra.mxu0 0
    %2309 = vmatprep.subr.bf16.mxu0 0
    %2310 = vmatpush1.bf16.msra.mxu0 0
    %2311 = vmatprep.subr.bf16.mxu0 0
    %2312 = vmatpush1.bf16.msra.mxu0 0
    %2313 = vmatprep.subr.bf16.mxu0 0
    %2314 = vmatpush1.bf16.msra.mxu0 0
    %2315 = vmatprep.subr.bf16.mxu0 0
    %2316 = vmatpush1.bf16.msra.mxu0 0
    %2317 = vmatprep.subr.bf16.mxu0 0
    %2318 = vmatpush1.bf16.msra.mxu0 0
    %2319 = vmatprep.subr.bf16.mxu0 0
    %2320 = vmatpush1.bf16.msra.mxu0 0
    %2321 = vmatprep.mubr.bf16.mxu0 0
    %2322 = vmatmul.mubr.bf16.gmra.mrb[0].mxu0 %v136
    %v2323 = vpop.f32.mrb[0].mxu0
    %v2324 = vadd.f32 %v2211, %v2323
    %v2325 = vpop.f32.mrb[0].mxu0
    %v2326 = vadd.f32 %v2213, %v2325
    %v2327 = vpop.f32.mrb[0].mxu0
    %v2328 = vadd.f32 %v2215, %v2327
    %v2329 = vpop.f32.mrb[0].mxu0
    %v2330 = vadd.f32 %v2217, %v2329
    %2331 = vmatprep.mubr.bf16.mxu0 0
    %2332 = vmatmul.mubr.bf16.gmra.mrb[0].mxu0 %v139
    %v2333 = vpop.f32.mrb[0].mxu0
    %v2334 = vadd.f32 %v2221, %v2333
    %v2335 = vpop.f32.mrb[0].mxu0
    %v2336 = vadd.f32 %v2223, %v2335
    %v2337 = vpop.f32.mrb[0].mxu0
    %v2338 = vadd.f32 %v2225, %v2337
    %v2339 = vpop.f32.mrb[0].mxu0
    %v2340 = vadd.f32 %v2227, %v2339
    %2341 = vmatprep.mubr.bf16.mxu0 0
    %2342 = vmatmul.mubr.bf16.gmra.mrb[0].mxu0 %v142
    %v2343 = vpop.f32.mrb[0].mxu0
    %v2344 = vadd.f32 %v2231, %v2343
    %v2345 = vpop.f32.mrb[0].mxu0
    %v2346 = vadd.f32 %v2233, %v2345
    %v2347 = vpop.f32.mrb[0].mxu0
    %v2348 = vadd.f32 %v2235, %v2347
    %v2349 = vpop.f32.mrb[0].mxu0
    %v2350 = vadd.f32 %v2237, %v2349
    %2351 = vmatprep.mubr.bf16.mxu0 0
    %2352 = vmatmul.mubr.bf16.gmra.mrb[0].mxu0 %v145
    %v2353 = vpop.f32.mrb[0].mxu0
    %v2354 = vadd.f32 %v2241, %v2353
    %v2355 = vpop.f32.mrb[0].mxu0
    %v2356 = vadd.f32 %v2243, %v2355
    %v2357 = vpop.f32.mrb[0].mxu0
    %v2358 = vadd.f32 %v2245, %v2357
    %v2359 = vpop.f32.mrb[0].mxu0
    %v2360 = vadd.f32 %v2247, %v2359
    %2361 = vmatprep.mubr.bf16.mxu0 0
    %2362 = vmatmul.mubr.bf16.gmra.mrb[0].mxu0 %v148
    %v2363 = vpop.f32.mrb[0].mxu0
    %v2364 = vadd.f32 %v2251, %v2363
    %v2365 = vpop.f32.mrb[0].mxu0
    %v2366 = vadd.f32 %v2253, %v2365
    %v2367 = vpop.f32.mrb[0].mxu0
    %v2368 = vadd.f32 %v2255, %v2367
    %v2369 = vpop.f32.mrb[0].mxu0
    %v2370 = vadd.f32 %v2257, %v2369
    %2371 = vmatprep.mubr.bf16.mxu0 0
    %2372 = vmatmul.mubr.bf16.gmra.mrb[0].mxu0 %v151
    %v2373 = vpop.f32.mrb[0].mxu0
    %v2374 = vadd.f32 %v2261, %v2373
    %v2375 = vpop.f32.mrb[0].mxu0
    %v2376 = vadd.f32 %v2263, %v2375
    %v2377 = vpop.f32.mrb[0].mxu0
    %v2378 = vadd.f32 %v2265, %v2377
    %v2379 = vpop.f32.mrb[0].mxu0
    %v2380 = vadd.f32 %v2267, %v2379
    %2381 = vmatprep.mubr.bf16.mxu0 0
    %2382 = vmatmul.mubr.bf16.gmra.mrb[0].mxu0 %v154
    %v2383 = vpop.f32.mrb[0].mxu0
    %v2384 = vadd.f32 %v2271, %v2383
    %v2385 = vpop.f32.mrb[0].mxu0
    %v2386 = vadd.f32 %v2273, %v2385
    %v2387 = vpop.f32.mrb[0].mxu0
    %v2388 = vadd.f32 %v2275, %v2387
    %v2389 = vpop.f32.mrb[0].mxu0
    %v2390 = vadd.f32 %v2277, %v2389
    %2391 = vmatprep.mubr.bf16.mxu0 0
    %2392 = vmatmul.mubr.bf16.gmra.mrb[0].mxu0 %v157
    %v2393 = vpop.f32.mrb[0].mxu0
    %v2394 = vadd.f32 %v2281, %v2393
    %v2395 = vpop.f32.mrb[0].mxu0
    %v2396 = vadd.f32 %v2283, %v2395
    %v2397 = vpop.f32.mrb[0].mxu0
    %v2398 = vadd.f32 %v2285, %v2397
    %v2399 = vpop.f32.mrb[0].mxu0
    %v2400 = vadd.f32 %v2287, %v2399
    %2401 = vdwg.mxu0
    %2402 = vmatprep.subr.bf16.mxu0 %v1379
    %2403 = vmatpush1.bf16.msra.mxu0 %v1378
    %2404 = vmatprep.subr.bf16.mxu0 %v1391
    %2405 = vmatpush1.bf16.msra.mxu0 %v1390
    %2406 = vmatprep.subr.bf16.mxu0 %v1403
    %2407 = vmatpush1.bf16.msra.mxu0 %v1402
    %2408 = vmatprep.subr.bf16.mxu0 %v1415
    %2409 = vmatpush1.bf16.msra.mxu0 %v1414
    %2410 = vmatprep.subr.bf16.mxu0 %v1427
    %2411 = vmatpush1.bf16.msra.mxu0 %v1426
    %2412 = vmatprep.subr.bf16.mxu0 %v1439
    %2413 = vmatpush1.bf16.msra.mxu0 %v1438
    %2414 = vmatprep.subr.bf16.mxu0 %v1451
    %2415 = vmatpush1.bf16.msra.mxu0 %v1450
    %2416 = vmatprep.subr.bf16.mxu0 %v1463
    %2417 = vmatpush1.bf16.msra.mxu0 %v1462
    %2418 = vmatprep.subr.bf16.mxu0 %v1475
    %2419 = vmatpush1.bf16.msra.mxu0 %v1474
    %2420 = vmatprep.subr.bf16.mxu0 %v1487
    %2421 = vmatpush1.bf16.msra.mxu0 %v1486
    %2422 = vmatprep.subr.bf16.mxu0 %v1499
    %2423 = vmatpush1.bf16.msra.mxu0 %v1498
    %2424 = vmatprep.subr.bf16.mxu0 %v1511
    %2425 = vmatpush1.bf16.msra.mxu0 %v1510
    %2426 = vmatprep.subr.bf16.mxu0 %v1523
    %2427 = vmatpush1.bf16.msra.mxu0 %v1522
    %2428 = vmatprep.subr.bf16.mxu0 %v1535
    %2429 = vmatpush1.bf16.msra.mxu0 %v1534
    %2430 = vmatprep.subr.bf16.mxu0 %v1547
    %2431 = vmatpush1.bf16.msra.mxu0 %v1546
    %2432 = vmatprep.subr.bf16.mxu0 %v1559
    %2433 = vmatpush1.bf16.msra.mxu0 %v1558
    %2434 = vmatprep.mubr.bf16.mxu0 %v135
    %2435 = vmatmul.mubr.bf16.gmra.mrb[0].mxu0 %v134
    %v2436 = vpop.f32.mrb[0].mxu0
    %v2437 = vadd.f32 %v469, %v2436
    %v2438 = vpop.f32.mrb[0].mxu0
    %v2439 = vadd.f32 %v473, %v2438
    %v2440 = vpop.f32.mrb[0].mxu0
    %v2441 = vadd.f32 %v469, %v2440
    %v2442 = vpop.f32.mrb[0].mxu0
    %v2443 = vadd.f32 %v473, %v2442
    %2444 = vmatprep.mubr.bf16.mxu0 %v138
    %2445 = vmatmul.mubr.bf16.gmra.mrb[0].mxu0 %v137
    %v2446 = vpop.f32.mrb[0].mxu0
    %v2447 = vadd.f32 %v469, %v2446
    %v2448 = vpop.f32.mrb[0].mxu0
    %v2449 = vadd.f32 %v473, %v2448
    %v2450 = vpop.f32.mrb[0].mxu0
    %v2451 = vadd.f32 %v469, %v2450
    %v2452 = vpop.f32.mrb[0].mxu0
    %v2453 = vadd.f32 %v473, %v2452
    %2454 = vmatprep.mubr.bf16.mxu0 %v141
    %2455 = vmatmul.mubr.bf16.gmra.mrb[0].mxu0 %v140
    %v2456 = vpop.f32.mrb[0].mxu0
    %v2457 = vadd.f32 %v469, %v2456
    %v2458 = vpop.f32.mrb[0].mxu0
    %v2459 = vadd.f32 %v473, %v2458
    %v2460 = vpop.f32.mrb[0].mxu0
    %v2461 = vadd.f32 %v469, %v2460
    %v2462 = vpop.f32.mrb[0].mxu0
    %v2463 = vadd.f32 %v473, %v2462
    %2464 = vmatprep.mubr.bf16.mxu0 %v144
    %2465 = vmatmul.mubr.bf16.gmra.mrb[0].mxu0 %v143
    %v2466 = vpop.f32.mrb[0].mxu0
    %v2467 = vadd.f32 %v469, %v2466
    %v2468 = vpop.f32.mrb[0].mxu0
    %v2469 = vadd.f32 %v473, %v2468
    %v2470 = vpop.f32.mrb[0].mxu0
    %v2471 = vadd.f32 %v469, %v2470
    %v2472 = vpop.f32.mrb[0].mxu0
    %v2473 = vadd.f32 %v473, %v2472
    %2474 = vmatprep.mubr.bf16.mxu0 %v147
    %2475 = vmatmul.mubr.bf16.gmra.mrb[0].mxu0 %v146
    %v2476 = vpop.f32.mrb[0].mxu0
    %v2477 = vadd.f32 %v469, %v2476
    %v2478 = vpop.f32.mrb[0].mxu0
    %v2479 = vadd.f32 %v473, %v2478
    %v2480 = vpop.f32.mrb[0].mxu0
    %v2481 = vadd.f32 %v469, %v2480
    %v2482 = vpop.f32.mrb[0].mxu0
    %v2483 = vadd.f32 %v473, %v2482
    %2484 = vmatprep.mubr.bf16.mxu0 %v150
    %2485 = vmatmul.mubr.bf16.gmra.mrb[0].mxu0 %v149
    %v2486 = vpop.f32.mrb[0].mxu0
    %v2487 = vadd.f32 %v469, %v2486
    %v2488 = vpop.f32.mrb[0].mxu0
    %v2489 = vadd.f32 %v473, %v2488
    %v2490 = vpop.f32.mrb[0].mxu0
    %v2491 = vadd.f32 %v469, %v2490
    %v2492 = vpop.f32.mrb[0].mxu0
    %v2493 = vadd.f32 %v473, %v2492
    %2494 = vmatprep.mubr.bf16.mxu0 %v153
    %2495 = vmatmul.mubr.bf16.gmra.mrb[0].mxu0 %v152
    %v2496 = vpop.f32.mrb[0].mxu0
    %v2497 = vadd.f32 %v469, %v2496
    %v2498 = vpop.f32.mrb[0].mxu0
    %v2499 = vadd.f32 %v473, %v2498
    %v2500 = vpop.f32.mrb[0].mxu0
    %v2501 = vadd.f32 %v469, %v2500
    %v2502 = vpop.f32.mrb[0].mxu0
    %v2503 = vadd.f32 %v473, %v2502
    %2504 = vmatprep.mubr.bf16.mxu0 %v156
    %2505 = vmatmul.mubr.bf16.gmra.mrb[0].mxu0 %v155
    %v2506 = vpop.f32.mrb[0].mxu0
    %v2507 = vadd.f32 %v469, %v2506
    %v2508 = vpop.f32.mrb[0].mxu0
    %v2509 = vadd.f32 %v473, %v2508
    %v2510 = vpop.f32.mrb[0].mxu0
    %v2511 = vadd.f32 %v469, %v2510
    %v2512 = vpop.f32.mrb[0].mxu0
    %v2513 = vadd.f32 %v473, %v2512
    %2514 = vdwg.mxu0
    %2515 = vmatprep.subr.bf16.mxu0 %v1571
    %2516 = vmatpush1.bf16.msra.mxu0 %v1570
    %2517 = vmatprep.subr.bf16.mxu0 %v1583
    %2518 = vmatpush1.bf16.msra.mxu0 %v1582
    %2519 = vmatprep.subr.bf16.mxu0 %v1595
    %2520 = vmatpush1.bf16.msra.mxu0 %v1594
    %2521 = vmatprep.subr.bf16.mxu0 %v1607
    %2522 = vmatpush1.bf16.msra.mxu0 %v1606
    %2523 = vmatprep.subr.bf16.mxu0 %v1619
    %2524 = vmatpush1.bf16.msra.mxu0 %v1618
    %2525 = vmatprep.subr.bf16.mxu0 %v1631
    %2526 = vmatpush1.bf16.msra.mxu0 %v1630
    %2527 = vmatprep.subr.bf16.mxu0 %v1643
    %2528 = vmatpush1.bf16.msra.mxu0 %v1642
    %2529 = vmatprep.subr.bf16.mxu0 %v1655
    %2530 = vmatpush1.bf16.msra.mxu0 %v1654
    %2531 = vmatprep.subr.bf16.mxu0 0
    %2532 = vmatpush1.bf16.msra.mxu0 0
    %2533 = vmatprep.subr.bf16.mxu0 0
    %2534 = vmatpush1.bf16.msra.mxu0 0
    %2535 = vmatprep.subr.bf16.mxu0 0
    %2536 = vmatpush1.bf16.msra.mxu0 0
    %2537 = vmatprep.subr.bf16.mxu0 0
    %2538 = vmatpush1.bf16.msra.mxu0 0
    %2539 = vmatprep.subr.bf16.mxu0 0
    %2540 = vmatpush1.bf16.msra.mxu0 0
    %2541 = vmatprep.subr.bf16.mxu0 0
    %2542 = vmatpush1.bf16.msra.mxu0 0
    %2543 = vmatprep.subr.bf16.mxu0 0
    %2544 = vmatpush1.bf16.msra.mxu0 0
    %2545 = vmatprep.subr.bf16.mxu0 0
    %2546 = vmatpush1.bf16.msra.mxu0 0
    %2547 = vmatprep.mubr.bf16.mxu0 0
    %2548 = vmatmul.mubr.bf16.gmra.mrb[0].mxu0 %v136
    %v2549 = vpop.f32.mrb[0].mxu0
    %v2550 = vadd.f32 %v2437, %v2549
    %v2551 = vpop.f32.mrb[0].mxu0
    %v2552 = vadd.f32 %v2439, %v2551
    %v2553 = vpop.f32.mrb[0].mxu0
    %v2554 = vadd.f32 %v2441, %v2553
    %v2555 = vpop.f32.mrb[0].mxu0
    %v2556 = vadd.f32 %v2443, %v2555
    %2557 = vmatprep.mubr.bf16.mxu0 0
    %2558 = vmatmul.mubr.bf16.gmra.mrb[0].mxu0 %v139
    %v2559 = vpop.f32.mrb[0].mxu0
    %v2560 = vadd.f32 %v2447, %v2559
    %v2561 = vpop.f32.mrb[0].mxu0
    %v2562 = vadd.f32 %v2449, %v2561
    %v2563 = vpop.f32.mrb[0].mxu0
    %v2564 = vadd.f32 %v2451, %v2563
    %v2565 = vpop.f32.mrb[0].mxu0
    %v2566 = vadd.f32 %v2453, %v2565
    %2567 = vmatprep.mubr.bf16.mxu0 0
    %2568 = vmatmul.mubr.bf16.gmra.mrb[0].mxu0 %v142
    %v2569 = vpop.f32.mrb[0].mxu0
    %v2570 = vadd.f32 %v2457, %v2569
    %v2571 = vpop.f32.mrb[0].mxu0
    %v2572 = vadd.f32 %v2459, %v2571
    %v2573 = vpop.f32.mrb[0].mxu0
    %v2574 = vadd.f32 %v2461, %v2573
    %v2575 = vpop.f32.mrb[0].mxu0
    %v2576 = vadd.f32 %v2463, %v2575
    %2577 = vmatprep.mubr.bf16.mxu0 0
    %2578 = vmatmul.mubr.bf16.gmra.mrb[0].mxu0 %v145
    %v2579 = vpop.f32.mrb[0].mxu0
    %v2580 = vadd.f32 %v2467, %v2579
    %v2581 = vpop.f32.mrb[0].mxu0
    %v2582 = vadd.f32 %v2469, %v2581
    %v2583 = vpop.f32.mrb[0].mxu0
    %v2584 = vadd.f32 %v2471, %v2583
    %v2585 = vpop.f32.mrb[0].mxu0
    %v2586 = vadd.f32 %v2473, %v2585
    %2587 = vmatprep.mubr.bf16.mxu0 0
    %2588 = vmatmul.mubr.bf16.gmra.mrb[0].mxu0 %v148
    %v2589 = vpop.f32.mrb[0].mxu0
    %v2590 = vadd.f32 %v2477, %v2589
    %v2591 = vpop.f32.mrb[0].mxu0
    %v2592 = vadd.f32 %v2479, %v2591
    %v2593 = vpop.f32.mrb[0].mxu0
    %v2594 = vadd.f32 %v2481, %v2593
    %v2595 = vpop.f32.mrb[0].mxu0
    %v2596 = vadd.f32 %v2483, %v2595
    %2597 = vmatprep.mubr.bf16.mxu0 0
    %2598 = vmatmul.mubr.bf16.gmra.mrb[0].mxu0 %v151
    %v2599 = vpop.f32.mrb[0].mxu0
    %v2600 = vadd.f32 %v2487, %v2599
    %v2601 = vpop.f32.mrb[0].mxu0
    %v2602 = vadd.f32 %v2489, %v2601
    %v2603 = vpop.f32.mrb[0].mxu0
    %v2604 = vadd.f32 %v2491, %v2603
    %v2605 = vpop.f32.mrb[0].mxu0
    %v2606 = vadd.f32 %v2493, %v2605
    %2607 = vmatprep.mubr.bf16.mxu0 0
    %2608 = vmatmul.mubr.bf16.gmra.mrb[0].mxu0 %v154
    %v2609 = vpop.f32.mrb[0].mxu0
    %v2610 = vadd.f32 %v2497, %v2609
    %v2611 = vpop.f32.mrb[0].mxu0
    %v2612 = vadd.f32 %v2499, %v2611
    %v2613 = vpop.f32.mrb[0].mxu0
    %v2614 = vadd.f32 %v2501, %v2613
    %v2615 = vpop.f32.mrb[0].mxu0
    %v2616 = vadd.f32 %v2503, %v2615
    %2617 = vmatprep.mubr.bf16.mxu0 0
    %2618 = vmatmul.mubr.bf16.gmra.mrb[0].mxu0 %v157
    %v2619 = vpop.f32.mrb[0].mxu0
    %v2620 = vadd.f32 %v2507, %v2619
    %v2621 = vpop.f32.mrb[0].mxu0
    %v2622 = vadd.f32 %v2509, %v2621
    %v2623 = vpop.f32.mrb[0].mxu0
    %v2624 = vadd.f32 %v2511, %v2623
    %v2625 = vpop.f32.mrb[0].mxu0
    %v2626 = vadd.f32 %v2513, %v2625
    %2627 = vdwg.mxu0
    %2628 = vmatprep.subr.bf16.mxu0 %v1381
    %2629 = vmatpush1.bf16.msra.mxu0 %v1380
    %2630 = vmatprep.subr.bf16.mxu0 %v1393
    %2631 = vmatpush1.bf16.msra.mxu0 %v1392
    %2632 = vmatprep.subr.bf16.mxu0 %v1405
    %2633 = vmatpush1.bf16.msra.mxu0 %v1404
    %2634 = vmatprep.subr.bf16.mxu0 %v1417
    %2635 = vmatpush1.bf16.msra.mxu0 %v1416
    %2636 = vmatprep.subr.bf16.mxu0 %v1429
    %2637 = vmatpush1.bf16.msra.mxu0 %v1428
    %2638 = vmatprep.subr.bf16.mxu0 %v1441
    %2639 = vmatpush1.bf16.msra.mxu0 %v1440
    %2640 = vmatprep.subr.bf16.mxu0 %v1453
    %2641 = vmatpush1.bf16.msra.mxu0 %v1452
    %2642 = vmatprep.subr.bf16.mxu0 %v1465
    %2643 = vmatpush1.bf16.msra.mxu0 %v1464
    %2644 = vmatprep.subr.bf16.mxu0 %v1477
    %2645 = vmatpush1.bf16.msra.mxu0 %v1476
    %2646 = vmatprep.subr.bf16.mxu0 %v1489
    %2647 = vmatpush1.bf16.msra.mxu0 %v1488
    %2648 = vmatprep.subr.bf16.mxu0 %v1501
    %2649 = vmatpush1.bf16.msra.mxu0 %v1500
    %2650 = vmatprep.subr.bf16.mxu0 %v1513
    %2651 = vmatpush1.bf16.msra.mxu0 %v1512
    %2652 = vmatprep.subr.bf16.mxu0 %v1525
    %2653 = vmatpush1.bf16.msra.mxu0 %v1524
    %2654 = vmatprep.subr.bf16.mxu0 %v1537
    %2655 = vmatpush1.bf16.msra.mxu0 %v1536
    %2656 = vmatprep.subr.bf16.mxu0 %v1549
    %2657 = vmatpush1.bf16.msra.mxu0 %v1548
    %2658 = vmatprep.subr.bf16.mxu0 %v1561
    %2659 = vmatpush1.bf16.msra.mxu0 %v1560
    %2660 = vmatprep.mubr.bf16.mxu0 %v135
    %2661 = vmatmul.mubr.bf16.gmra.mrb[0].mxu0 %v134
    %v2662 = vpop.f32.mrb[0].mxu0
    %v2663 = vadd.f32 %v477, %v2662
    %v2664 = vpop.f32.mrb[0].mxu0
    %v2665 = vadd.f32 %v481, %v2664
    %v2666 = vpop.f32.mrb[0].mxu0
    %v2667 = vadd.f32 %v477, %v2666
    %v2668 = vpop.f32.mrb[0].mxu0
    %v2669 = vadd.f32 %v481, %v2668
    %2670 = vmatprep.mubr.bf16.mxu0 %v138
    %2671 = vmatmul.mubr.bf16.gmra.mrb[0].mxu0 %v137
    %v2672 = vpop.f32.mrb[0].mxu0
    %v2673 = vadd.f32 %v477, %v2672
    %v2674 = vpop.f32.mrb[0].mxu0
    %v2675 = vadd.f32 %v481, %v2674
    %v2676 = vpop.f32.mrb[0].mxu0
    %v2677 = vadd.f32 %v477, %v2676
    %v2678 = vpop.f32.mrb[0].mxu0
    %v2679 = vadd.f32 %v481, %v2678
    %2680 = vmatprep.mubr.bf16.mxu0 %v141
    %2681 = vmatmul.mubr.bf16.gmra.mrb[0].mxu0 %v140
    %v2682 = vpop.f32.mrb[0].mxu0
    %v2683 = vadd.f32 %v477, %v2682
    %v2684 = vpop.f32.mrb[0].mxu0
    %v2685 = vadd.f32 %v481, %v2684
    %v2686 = vpop.f32.mrb[0].mxu0
    %v2687 = vadd.f32 %v477, %v2686
    %v2688 = vpop.f32.mrb[0].mxu0
    %v2689 = vadd.f32 %v481, %v2688
    %2690 = vmatprep.mubr.bf16.mxu0 %v144
    %2691 = vmatmul.mubr.bf16.gmra.mrb[0].mxu0 %v143
    %v2692 = vpop.f32.mrb[0].mxu0
    %v2693 = vadd.f32 %v477, %v2692
    %v2694 = vpop.f32.mrb[0].mxu0
    %v2695 = vadd.f32 %v481, %v2694
    %v2696 = vpop.f32.mrb[0].mxu0
    %v2697 = vadd.f32 %v477, %v2696
    %v2698 = vpop.f32.mrb[0].mxu0
    %v2699 = vadd.f32 %v481, %v2698
    %2700 = vmatprep.mubr.bf16.mxu0 %v147
    %2701 = vmatmul.mubr.bf16.gmra.mrb[0].mxu0 %v146
    %v2702 = vpop.f32.mrb[0].mxu0
    %v2703 = vadd.f32 %v477, %v2702
    %v2704 = vpop.f32.mrb[0].mxu0
    %v2705 = vadd.f32 %v481, %v2704
    %v2706 = vpop.f32.mrb[0].mxu0
    %v2707 = vadd.f32 %v477, %v2706
    %v2708 = vpop.f32.mrb[0].mxu0
    %v2709 = vadd.f32 %v481, %v2708
    %2710 = vmatprep.mubr.bf16.mxu0 %v150
    %2711 = vmatmul.mubr.bf16.gmra.mrb[0].mxu0 %v149
    %v2712 = vpop.f32.mrb[0].mxu0
    %v2713 = vadd.f32 %v477, %v2712
    %v2714 = vpop.f32.mrb[0].mxu0
    %v2715 = vadd.f32 %v481, %v2714
    %v2716 = vpop.f32.mrb[0].mxu0
    %v2717 = vadd.f32 %v477, %v2716
    %v2718 = vpop.f32.mrb[0].mxu0
    %v2719 = vadd.f32 %v481, %v2718
    %2720 = vmatprep.mubr.bf16.mxu0 %v153
    %2721 = vmatmul.mubr.bf16.gmra.mrb[0].mxu0 %v152
    %v2722 = vpop.f32.mrb[0].mxu0
    %v2723 = vadd.f32 %v477, %v2722
    %v2724 = vpop.f32.mrb[0].mxu0
    %v2725 = vadd.f32 %v481, %v2724
    %v2726 = vpop.f32.mrb[0].mxu0
    %v2727 = vadd.f32 %v477, %v2726
    %v2728 = vpop.f32.mrb[0].mxu0
    %v2729 = vadd.f32 %v481, %v2728
    %2730 = vmatprep.mubr.bf16.mxu0 %v156
    %2731 = vmatmul.mubr.bf16.gmra.mrb[0].mxu0 %v155
    %v2732 = vpop.f32.mrb[0].mxu0
    %v2733 = vadd.f32 %v477, %v2732
    %v2734 = vpop.f32.mrb[0].mxu0
    %v2735 = vadd.f32 %v481, %v2734
    %v2736 = vpop.f32.mrb[0].mxu0
    %v2737 = vadd.f32 %v477, %v2736
    %v2738 = vpop.f32.mrb[0].mxu0
    %v2739 = vadd.f32 %v481, %v2738
    %2740 = vdwg.mxu0
    %2741 = vmatprep.subr.bf16.mxu0 %v1573
    %2742 = vmatpush1.bf16.msra.mxu0 %v1572
    %2743 = vmatprep.subr.bf16.mxu0 %v1585
    %2744 = vmatpush1.bf16.msra.mxu0 %v1584
    %2745 = vmatprep.subr.bf16.mxu0 %v1597
    %2746 = vmatpush1.bf16.msra.mxu0 %v1596
    %2747 = vmatprep.subr.bf16.mxu0 %v1609
    %2748 = vmatpush1.bf16.msra.mxu0 %v1608
    %2749 = vmatprep.subr.bf16.mxu0 %v1621
    %2750 = vmatpush1.bf16.msra.mxu0 %v1620
    %2751 = vmatprep.subr.bf16.mxu0 %v1633
    %2752 = vmatpush1.bf16.msra.mxu0 %v1632
    %2753 = vmatprep.subr.bf16.mxu0 %v1645
    %2754 = vmatpush1.bf16.msra.mxu0 %v1644
    %2755 = vmatprep.subr.bf16.mxu0 %v1657
    %2756 = vmatpush1.bf16.msra.mxu0 %v1656
    %2757 = vmatprep.subr.bf16.mxu0 0
    %2758 = vmatpush1.bf16.msra.mxu0 0
    %2759 = vmatprep.subr.bf16.mxu0 0
    %2760 = vmatpush1.bf16.msra.mxu0 0
    %2761 = vmatprep.subr.bf16.mxu0 0
    %2762 = vmatpush1.bf16.msra.mxu0 0
    %2763 = vmatprep.subr.bf16.mxu0 0
    %2764 = vmatpush1.bf16.msra.mxu0 0
    %2765 = vmatprep.subr.bf16.mxu0 0
    %2766 = vmatpush1.bf16.msra.mxu0 0
    %2767 = vmatprep.subr.bf16.mxu0 0
    %2768 = vmatpush1.bf16.msra.mxu0 0
    %2769 = vmatprep.subr.bf16.mxu0 0
    %2770 = vmatpush1.bf16.msra.mxu0 0
    %2771 = vmatprep.subr.bf16.mxu0 0
    %2772 = vmatpush1.bf16.msra.mxu0 0
    %2773 = vmatprep.mubr.bf16.mxu0 0
    %2774 = vmatmul.mubr.bf16.gmra.mrb[0].mxu0 %v136
    %v2775 = vpop.f32.mrb[0].mxu0
    %v2776 = vadd.f32 %v2663, %v2775
    %v2777 = vpop.f32.mrb[0].mxu0
    %v2778 = vadd.f32 %v2665, %v2777
    %v2779 = vpop.f32.mrb[0].mxu0
    %v2780 = vadd.f32 %v2667, %v2779
    %v2781 = vpop.f32.mrb[0].mxu0
    %v2782 = vadd.f32 %v2669, %v2781
    %2783 = vmatprep.mubr.bf16.mxu0 0
    %2784 = vmatmul.mubr.bf16.gmra.mrb[0].mxu0 %v139
    %v2785 = vpop.f32.mrb[0].mxu0
    %v2786 = vadd.f32 %v2673, %v2785
    %v2787 = vpop.f32.mrb[0].mxu0
    %v2788 = vadd.f32 %v2675, %v2787
    %v2789 = vpop.f32.mrb[0].mxu0
    %v2790 = vadd.f32 %v2677, %v2789
    %v2791 = vpop.f32.mrb[0].mxu0
    %v2792 = vadd.f32 %v2679, %v2791
    %2793 = vmatprep.mubr.bf16.mxu0 0
    %2794 = vmatmul.mubr.bf16.gmra.mrb[0].mxu0 %v142
    %v2795 = vpop.f32.mrb[0].mxu0
    %v2796 = vadd.f32 %v2683, %v2795
    %v2797 = vpop.f32.mrb[0].mxu0
    %v2798 = vadd.f32 %v2685, %v2797
    %v2799 = vpop.f32.mrb[0].mxu0
    %v2800 = vadd.f32 %v2687, %v2799
    %v2801 = vpop.f32.mrb[0].mxu0
    %v2802 = vadd.f32 %v2689, %v2801
    %2803 = vmatprep.mubr.bf16.mxu0 0
    %2804 = vmatmul.mubr.bf16.gmra.mrb[0].mxu0 %v145
    %v2805 = vpop.f32.mrb[0].mxu0
    %v2806 = vadd.f32 %v2693, %v2805
    %v2807 = vpop.f32.mrb[0].mxu0
    %v2808 = vadd.f32 %v2695, %v2807
    %v2809 = vpop.f32.mrb[0].mxu0
    %v2810 = vadd.f32 %v2697, %v2809
    %v2811 = vpop.f32.mrb[0].mxu0
    %v2812 = vadd.f32 %v2699, %v2811
    %2813 = vmatprep.mubr.bf16.mxu0 0
    %2814 = vmatmul.mubr.bf16.gmra.mrb[0].mxu0 %v148
    %v2815 = vpop.f32.mrb[0].mxu0
    %v2816 = vadd.f32 %v2703, %v2815
    %v2817 = vpop.f32.mrb[0].mxu0
    %v2818 = vadd.f32 %v2705, %v2817
    %v2819 = vpop.f32.mrb[0].mxu0
    %v2820 = vadd.f32 %v2707, %v2819
    %v2821 = vpop.f32.mrb[0].mxu0
    %v2822 = vadd.f32 %v2709, %v2821
    %2823 = vmatprep.mubr.bf16.mxu0 0
    %2824 = vmatmul.mubr.bf16.gmra.mrb[0].mxu0 %v151
    %v2825 = vpop.f32.mrb[0].mxu0
    %v2826 = vadd.f32 %v2713, %v2825
    %v2827 = vpop.f32.mrb[0].mxu0
    %v2828 = vadd.f32 %v2715, %v2827
    %v2829 = vpop.f32.mrb[0].mxu0
    %v2830 = vadd.f32 %v2717, %v2829
    %v2831 = vpop.f32.mrb[0].mxu0
    %v2832 = vadd.f32 %v2719, %v2831
    %2833 = vmatprep.mubr.bf16.mxu0 0
    %2834 = vmatmul.mubr.bf16.gmra.mrb[0].mxu0 %v154
    %v2835 = vpop.f32.mrb[0].mxu0
    %v2836 = vadd.f32 %v2723, %v2835
    %v2837 = vpop.f32.mrb[0].mxu0
    %v2838 = vadd.f32 %v2725, %v2837
    %v2839 = vpop.f32.mrb[0].mxu0
    %v2840 = vadd.f32 %v2727, %v2839
    %v2841 = vpop.f32.mrb[0].mxu0
    %v2842 = vadd.f32 %v2729, %v2841
    %2843 = vmatprep.mubr.bf16.mxu0 0
    %2844 = vmatmul.mubr.bf16.gmra.mrb[0].mxu0 %v157
    %v2845 = vpop.f32.mrb[0].mxu0
    %v2846 = vadd.f32 %v2733, %v2845
    %v2847 = vpop.f32.mrb[0].mxu0
    %v2848 = vadd.f32 %v2735, %v2847
    %v2849 = vpop.f32.mrb[0].mxu0
    %v2850 = vadd.f32 %v2737, %v2849
    %v2851 = vpop.f32.mrb[0].mxu0
    %v2852 = vadd.f32 %v2739, %v2851
    %2853 = vdwg.mxu0
    %2854 = vmatprep.subr.bf16.mxu0 %v1383
    %2855 = vmatpush1.bf16.msra.mxu0 %v1382
    %2856 = vmatprep.subr.bf16.mxu0 %v1395
    %2857 = vmatpush1.bf16.msra.mxu0 %v1394
    %2858 = vmatprep.subr.bf16.mxu0 %v1407
    %2859 = vmatpush1.bf16.msra.mxu0 %v1406
    %2860 = vmatprep.subr.bf16.mxu0 %v1419
    %2861 = vmatpush1.bf16.msra.mxu0 %v1418
    %2862 = vmatprep.subr.bf16.mxu0 %v1431
    %2863 = vmatpush1.bf16.msra.mxu0 %v1430
    %2864 = vmatprep.subr.bf16.mxu0 %v1443
    %2865 = vmatpush1.bf16.msra.mxu0 %v1442
    %2866 = vmatprep.subr.bf16.mxu0 %v1455
    %2867 = vmatpush1.bf16.msra.mxu0 %v1454
    %2868 = vmatprep.subr.bf16.mxu0 %v1467
    %2869 = vmatpush1.bf16.msra.mxu0 %v1466
    %2870 = vmatprep.subr.bf16.mxu0 %v1479
    %2871 = vmatpush1.bf16.msra.mxu0 %v1478
    %2872 = vmatprep.subr.bf16.mxu0 %v1491
    %2873 = vmatpush1.bf16.msra.mxu0 %v1490
    %2874 = vmatprep.subr.bf16.mxu0 %v1503
    %2875 = vmatpush1.bf16.msra.mxu0 %v1502
    %2876 = vmatprep.subr.bf16.mxu0 %v1515
    %2877 = vmatpush1.bf16.msra.mxu0 %v1514
    %2878 = vmatprep.subr.bf16.mxu0 %v1527
    %2879 = vmatpush1.bf16.msra.mxu0 %v1526
    %2880 = vmatprep.subr.bf16.mxu0 %v1539
    %2881 = vmatpush1.bf16.msra.mxu0 %v1538
    %2882 = vmatprep.subr.bf16.mxu0 %v1551
    %2883 = vmatpush1.bf16.msra.mxu0 %v1550
    %2884 = vmatprep.subr.bf16.mxu0 %v1563
    %2885 = vmatpush1.bf16.msra.mxu0 %v1562
    %2886 = vmatprep.mubr.bf16.mxu0 %v135
    %2887 = vmatmul.mubr.bf16.gmra.mrb[0].mxu0 %v134
    %v2888 = vpop.f32.mrb[0].mxu0
    %v2889 = vadd.f32 %v485, %v2888
    %v2890 = vpop.f32.mrb[0].mxu0
    %v2891 = vadd.f32 %v489, %v2890
    %v2892 = vpop.f32.mrb[0].mxu0
    %v2893 = vadd.f32 %v485, %v2892
    %v2894 = vpop.f32.mrb[0].mxu0
    %v2895 = vadd.f32 %v489, %v2894
    %2896 = vmatprep.mubr.bf16.mxu0 %v138
    %2897 = vmatmul.mubr.bf16.gmra.mrb[0].mxu0 %v137
    %v2898 = vpop.f32.mrb[0].mxu0
    %v2899 = vadd.f32 %v485, %v2898
    %v2900 = vpop.f32.mrb[0].mxu0
    %v2901 = vadd.f32 %v489, %v2900
    %v2902 = vpop.f32.mrb[0].mxu0
    %v2903 = vadd.f32 %v485, %v2902
    %v2904 = vpop.f32.mrb[0].mxu0
    %v2905 = vadd.f32 %v489, %v2904
    %2906 = vmatprep.mubr.bf16.mxu0 %v141
    %2907 = vmatmul.mubr.bf16.gmra.mrb[0].mxu0 %v140
    %v2908 = vpop.f32.mrb[0].mxu0
    %v2909 = vadd.f32 %v485, %v2908
    %v2910 = vpop.f32.mrb[0].mxu0
    %v2911 = vadd.f32 %v489, %v2910
    %v2912 = vpop.f32.mrb[0].mxu0
    %v2913 = vadd.f32 %v485, %v2912
    %v2914 = vpop.f32.mrb[0].mxu0
    %v2915 = vadd.f32 %v489, %v2914
    %2916 = vmatprep.mubr.bf16.mxu0 %v144
    %2917 = vmatmul.mubr.bf16.gmra.mrb[0].mxu0 %v143
    %v2918 = vpop.f32.mrb[0].mxu0
    %v2919 = vadd.f32 %v485, %v2918
    %v2920 = vpop.f32.mrb[0].mxu0
    %v2921 = vadd.f32 %v489, %v2920
    %v2922 = vpop.f32.mrb[0].mxu0
    %v2923 = vadd.f32 %v485, %v2922
    %v2924 = vpop.f32.mrb[0].mxu0
    %v2925 = vadd.f32 %v489, %v2924
    %2926 = vmatprep.mubr.bf16.mxu0 %v147
    %2927 = vmatmul.mubr.bf16.gmra.mrb[0].mxu0 %v146
    %v2928 = vpop.f32.mrb[0].mxu0
    %v2929 = vadd.f32 %v485, %v2928
    %v2930 = vpop.f32.mrb[0].mxu0
    %v2931 = vadd.f32 %v489, %v2930
    %v2932 = vpop.f32.mrb[0].mxu0
    %v2933 = vadd.f32 %v485, %v2932
    %v2934 = vpop.f32.mrb[0].mxu0
    %v2935 = vadd.f32 %v489, %v2934
    %2936 = vmatprep.mubr.bf16.mxu0 %v150
    %2937 = vmatmul.mubr.bf16.gmra.mrb[0].mxu0 %v149
    %v2938 = vpop.f32.mrb[0].mxu0
    %v2939 = vadd.f32 %v485, %v2938
    %v2940 = vpop.f32.mrb[0].mxu0
    %v2941 = vadd.f32 %v489, %v2940
    %v2942 = vpop.f32.mrb[0].mxu0
    %v2943 = vadd.f32 %v485, %v2942
    %v2944 = vpop.f32.mrb[0].mxu0
    %v2945 = vadd.f32 %v489, %v2944
    %2946 = vmatprep.mubr.bf16.mxu0 %v153
    %2947 = vmatmul.mubr.bf16.gmra.mrb[0].mxu0 %v152
    %v2948 = vpop.f32.mrb[0].mxu0
    %v2949 = vadd.f32 %v485, %v2948
    %v2950 = vpop.f32.mrb[0].mxu0
    %v2951 = vadd.f32 %v489, %v2950
    %v2952 = vpop.f32.mrb[0].mxu0
    %v2953 = vadd.f32 %v485, %v2952
    %v2954 = vpop.f32.mrb[0].mxu0
    %v2955 = vadd.f32 %v489, %v2954
    %2956 = vmatprep.mubr.bf16.mxu0 %v156
    %2957 = vmatmul.mubr.bf16.gmra.mrb[0].mxu0 %v155
    %v2958 = vpop.f32.mrb[0].mxu0
    %v2959 = vadd.f32 %v485, %v2958
    %v2960 = vpop.f32.mrb[0].mxu0
    %v2961 = vadd.f32 %v489, %v2960
    %v2962 = vpop.f32.mrb[0].mxu0
    %v2963 = vadd.f32 %v485, %v2962
    %v2964 = vpop.f32.mrb[0].mxu0
    %v2965 = vadd.f32 %v489, %v2964
    %2966 = vdwg.mxu0
    %2967 = vmatprep.subr.bf16.mxu0 %v1575
    %2968 = vmatpush1.bf16.msra.mxu0 %v1574
    %2969 = vmatprep.subr.bf16.mxu0 %v1587
    %2970 = vmatpush1.bf16.msra.mxu0 %v1586
    %2971 = vmatprep.subr.bf16.mxu0 %v1599
    %2972 = vmatpush1.bf16.msra.mxu0 %v1598
    %2973 = vmatprep.subr.bf16.mxu0 %v1611
    %2974 = vmatpush1.bf16.msra.mxu0 %v1610
    %2975 = vmatprep.subr.bf16.mxu0 %v1623
    %2976 = vmatpush1.bf16.msra.mxu0 %v1622
    %2977 = vmatprep.subr.bf16.mxu0 %v1635
    %2978 = vmatpush1.bf16.msra.mxu0 %v1634
    %2979 = vmatprep.subr.bf16.mxu0 %v1647
    %2980 = vmatpush1.bf16.msra.mxu0 %v1646
    %2981 = vmatprep.subr.bf16.mxu0 %v1659
    %2982 = vmatpush1.bf16.msra.mxu0 %v1658
    %2983 = vmatprep.subr.bf16.mxu0 0
    %2984 = vmatpush1.bf16.msra.mxu0 0
    %2985 = vmatprep.subr.bf16.mxu0 0
    %2986 = vmatpush1.bf16.msra.mxu0 0
    %2987 = vmatprep.subr.bf16.mxu0 0
    %2988 = vmatpush1.bf16.msra.mxu0 0
    %2989 = vmatprep.subr.bf16.mxu0 0
    %2990 = vmatpush1.bf16.msra.mxu0 0
    %2991 = vmatprep.subr.bf16.mxu0 0
    %2992 = vmatpush1.bf16.msra.mxu0 0
    %2993 = vmatprep.subr.bf16.mxu0 0
    %2994 = vmatpush1.bf16.msra.mxu0 0
    %2995 = vmatprep.subr.bf16.mxu0 0
    %2996 = vmatpush1.bf16.msra.mxu0 0
    %2997 = vmatprep.subr.bf16.mxu0 0
    %2998 = vmatpush1.bf16.msra.mxu0 0
    %2999 = vmatprep.mubr.bf16.mxu0 0
    %3000 = vmatmul.mubr.bf16.gmra.mrb[0].mxu0 %v136
    %v3001 = vpop.f32.mrb[0].mxu0
    %v3002 = vadd.f32 %v2889, %v3001
    %v3003 = vpop.f32.mrb[0].mxu0
    %v3004 = vadd.f32 %v2891, %v3003
    %v3005 = vpop.f32.mrb[0].mxu0
    %v3006 = vadd.f32 %v2893, %v3005
    %v3007 = vpop.f32.mrb[0].mxu0
    %v3008 = vadd.f32 %v2895, %v3007
    %3009 = vmatprep.mubr.bf16.mxu0 0
    %3010 = vmatmul.mubr.bf16.gmra.mrb[0].mxu0 %v139
    %v3011 = vpop.f32.mrb[0].mxu0
    %v3012 = vadd.f32 %v2899, %v3011
    %v3013 = vpop.f32.mrb[0].mxu0
    %v3014 = vadd.f32 %v2901, %v3013
    %v3015 = vpop.f32.mrb[0].mxu0
    %v3016 = vadd.f32 %v2903, %v3015
    %v3017 = vpop.f32.mrb[0].mxu0
    %v3018 = vadd.f32 %v2905, %v3017
    %3019 = vmatprep.mubr.bf16.mxu0 0
    %3020 = vmatmul.mubr.bf16.gmra.mrb[0].mxu0 %v142
    %v3021 = vpop.f32.mrb[0].mxu0
    %v3022 = vadd.f32 %v2909, %v3021
    %v3023 = vpop.f32.mrb[0].mxu0
    %v3024 = vadd.f32 %v2911, %v3023
    %v3025 = vpop.f32.mrb[0].mxu0
    %v3026 = vadd.f32 %v2913, %v3025
    %v3027 = vpop.f32.mrb[0].mxu0
    %v3028 = vadd.f32 %v2915, %v3027
    %3029 = vmatprep.mubr.bf16.mxu0 0
    %3030 = vmatmul.mubr.bf16.gmra.mrb[0].mxu0 %v145
    %v3031 = vpop.f32.mrb[0].mxu0
    %v3032 = vadd.f32 %v2919, %v3031
    %v3033 = vpop.f32.mrb[0].mxu0
    %v3034 = vadd.f32 %v2921, %v3033
    %v3035 = vpop.f32.mrb[0].mxu0
    %v3036 = vadd.f32 %v2923, %v3035
    %v3037 = vpop.f32.mrb[0].mxu0
    %v3038 = vadd.f32 %v2925, %v3037
    %3039 = vmatprep.mubr.bf16.mxu0 0
    %3040 = vmatmul.mubr.bf16.gmra.mrb[0].mxu0 %v148
    %v3041 = vpop.f32.mrb[0].mxu0
    %v3042 = vadd.f32 %v2929, %v3041
    %v3043 = vpop.f32.mrb[0].mxu0
    %v3044 = vadd.f32 %v2931, %v3043
    %v3045 = vpop.f32.mrb[0].mxu0
    %v3046 = vadd.f32 %v2933, %v3045
    %v3047 = vpop.f32.mrb[0].mxu0
    %v3048 = vadd.f32 %v2935, %v3047
    %3049 = vmatprep.mubr.bf16.mxu0 0
    %3050 = vmatmul.mubr.bf16.gmra.mrb[0].mxu0 %v151
    %v3051 = vpop.f32.mrb[0].mxu0
    %v3052 = vadd.f32 %v2939, %v3051
    %v3053 = vpop.f32.mrb[0].mxu0
    %v3054 = vadd.f32 %v2941, %v3053
    %v3055 = vpop.f32.mrb[0].mxu0
    %v3056 = vadd.f32 %v2943, %v3055
    %v3057 = vpop.f32.mrb[0].mxu0
    %v3058 = vadd.f32 %v2945, %v3057
    %3059 = vmatprep.mubr.bf16.mxu0 0
    %3060 = vmatmul.mubr.bf16.gmra.mrb[0].mxu0 %v154
    %v3061 = vpop.f32.mrb[0].mxu0
    %v3062 = vadd.f32 %v2949, %v3061
    %v3063 = vpop.f32.mrb[0].mxu0
    %v3064 = vadd.f32 %v2951, %v3063
    %v3065 = vpop.f32.mrb[0].mxu0
    %v3066 = vadd.f32 %v2953, %v3065
    %v3067 = vpop.f32.mrb[0].mxu0
    %v3068 = vadd.f32 %v2955, %v3067
    %3069 = vmatprep.mubr.bf16.mxu0 0
    %3070 = vmatmul.mubr.bf16.gmra.mrb[0].mxu0 %v157
    %v3071 = vpop.f32.mrb[0].mxu0
    %v3072 = vadd.f32 %v2959, %v3071
    %v3073 = vpop.f32.mrb[0].mxu0
    %v3074 = vadd.f32 %v2961, %v3073
    %v3075 = vpop.f32.mrb[0].mxu0
    %v3076 = vadd.f32 %v2963, %v3075
    %v3077 = vpop.f32.mrb[0].mxu0
    %v3078 = vadd.f32 %v2965, %v3077
    %3079 = vdwg.mxu0
    %3080 = vmatprep.subr.bf16.mxu0 %v1385
    %3081 = vmatpush1.bf16.msra.mxu0 %v1384
    %3082 = vmatprep.subr.bf16.mxu0 %v1397
    %3083 = vmatpush1.bf16.msra.mxu0 %v1396
    %3084 = vmatprep.subr.bf16.mxu0 %v1409
    %3085 = vmatpush1.bf16.msra.mxu0 %v1408
    %3086 = vmatprep.subr.bf16.mxu0 %v1421
    %3087 = vmatpush1.bf16.msra.mxu0 %v1420
    %3088 = vmatprep.subr.bf16.mxu0 %v1433
    %3089 = vmatpush1.bf16.msra.mxu0 %v1432
    %3090 = vmatprep.subr.bf16.mxu0 %v1445
    %3091 = vmatpush1.bf16.msra.mxu0 %v1444
    %3092 = vmatprep.subr.bf16.mxu0 %v1457
    %3093 = vmatpush1.bf16.msra.mxu0 %v1456
    %3094 = vmatprep.subr.bf16.mxu0 %v1469
    %3095 = vmatpush1.bf16.msra.mxu0 %v1468
    %3096 = vmatprep.subr.bf16.mxu0 %v1481
    %3097 = vmatpush1.bf16.msra.mxu0 %v1480
    %3098 = vmatprep.subr.bf16.mxu0 %v1493
    %3099 = vmatpush1.bf16.msra.mxu0 %v1492
    %3100 = vmatprep.subr.bf16.mxu0 %v1505
    %3101 = vmatpush1.bf16.msra.mxu0 %v1504
    %3102 = vmatprep.subr.bf16.mxu0 %v1517
    %3103 = vmatpush1.bf16.msra.mxu0 %v1516
    %3104 = vmatprep.subr.bf16.mxu0 %v1529
    %3105 = vmatpush1.bf16.msra.mxu0 %v1528
    %3106 = vmatprep.subr.bf16.mxu0 %v1541
    %3107 = vmatpush1.bf16.msra.mxu0 %v1540
    %3108 = vmatprep.subr.bf16.mxu0 %v1553
    %3109 = vmatpush1.bf16.msra.mxu0 %v1552
    %3110 = vmatprep.subr.bf16.mxu0 %v1565
    %3111 = vmatpush1.bf16.msra.mxu0 %v1564
    %3112 = vmatprep.mubr.bf16.mxu0 %v135
    %3113 = vmatmul.mubr.bf16.gmra.mrb[0].mxu0 %v134
    %v3114 = vpop.f32.mrb[0].mxu0
    %v3115 = vadd.f32 %v493, %v3114
    %v3116 = vpop.f32.mrb[0].mxu0
    %v3117 = vadd.f32 %v497, %v3116
    %v3118 = vpop.f32.mrb[0].mxu0
    %v3119 = vadd.f32 %v493, %v3118
    %v3120 = vpop.f32.mrb[0].mxu0
    %v3121 = vadd.f32 %v497, %v3120
    %3122 = vmatprep.mubr.bf16.mxu0 %v138
    %3123 = vmatmul.mubr.bf16.gmra.mrb[0].mxu0 %v137
    %v3124 = vpop.f32.mrb[0].mxu0
    %v3125 = vadd.f32 %v493, %v3124
    %v3126 = vpop.f32.mrb[0].mxu0
    %v3127 = vadd.f32 %v497, %v3126
    %v3128 = vpop.f32.mrb[0].mxu0
    %v3129 = vadd.f32 %v493, %v3128
    %v3130 = vpop.f32.mrb[0].mxu0
    %v3131 = vadd.f32 %v497, %v3130
    %3132 = vmatprep.mubr.bf16.mxu0 %v141
    %3133 = vmatmul.mubr.bf16.gmra.mrb[0].mxu0 %v140
    %v3134 = vpop.f32.mrb[0].mxu0
    %v3135 = vadd.f32 %v493, %v3134
    %v3136 = vpop.f32.mrb[0].mxu0
    %v3137 = vadd.f32 %v497, %v3136
    %v3138 = vpop.f32.mrb[0].mxu0
    %v3139 = vadd.f32 %v493, %v3138
    %v3140 = vpop.f32.mrb[0].mxu0
    %v3141 = vadd.f32 %v497, %v3140
    %3142 = vmatprep.mubr.bf16.mxu0 %v144
    %3143 = vmatmul.mubr.bf16.gmra.mrb[0].mxu0 %v143
    %v3144 = vpop.f32.mrb[0].mxu0
    %v3145 = vadd.f32 %v493, %v3144
    %v3146 = vpop.f32.mrb[0].mxu0
    %v3147 = vadd.f32 %v497, %v3146
    %v3148 = vpop.f32.mrb[0].mxu0
    %v3149 = vadd.f32 %v493, %v3148
    %v3150 = vpop.f32.mrb[0].mxu0
    %v3151 = vadd.f32 %v497, %v3150
    %3152 = vmatprep.mubr.bf16.mxu0 %v147
    %3153 = vmatmul.mubr.bf16.gmra.mrb[0].mxu0 %v146
    %v3154 = vpop.f32.mrb[0].mxu0
    %v3155 = vadd.f32 %v493, %v3154
    %v3156 = vpop.f32.mrb[0].mxu0
    %v3157 = vadd.f32 %v497, %v3156
    %v3158 = vpop.f32.mrb[0].mxu0
    %v3159 = vadd.f32 %v493, %v3158
    %v3160 = vpop.f32.mrb[0].mxu0
    %v3161 = vadd.f32 %v497, %v3160
    %3162 = vmatprep.mubr.bf16.mxu0 %v150
    %3163 = vmatmul.mubr.bf16.gmra.mrb[0].mxu0 %v149
    %v3164 = vpop.f32.mrb[0].mxu0
    %v3165 = vadd.f32 %v493, %v3164
    %v3166 = vpop.f32.mrb[0].mxu0
    %v3167 = vadd.f32 %v497, %v3166
    %v3168 = vpop.f32.mrb[0].mxu0
    %v3169 = vadd.f32 %v493, %v3168
    %v3170 = vpop.f32.mrb[0].mxu0
    %v3171 = vadd.f32 %v497, %v3170
    %3172 = vmatprep.mubr.bf16.mxu0 %v153
    %3173 = vmatmul.mubr.bf16.gmra.mrb[0].mxu0 %v152
    %v3174 = vpop.f32.mrb[0].mxu0
    %v3175 = vadd.f32 %v493, %v3174
    %v3176 = vpop.f32.mrb[0].mxu0
    %v3177 = vadd.f32 %v497, %v3176
    %v3178 = vpop.f32.mrb[0].mxu0
    %v3179 = vadd.f32 %v493, %v3178
    %v3180 = vpop.f32.mrb[0].mxu0
    %v3181 = vadd.f32 %v497, %v3180
    %3182 = vmatprep.mubr.bf16.mxu0 %v156
    %3183 = vmatmul.mubr.bf16.gmra.mrb[0].mxu0 %v155
    %v3184 = vpop.f32.mrb[0].mxu0
    %v3185 = vadd.f32 %v493, %v3184
    %v3186 = vpop.f32.mrb[0].mxu0
    %v3187 = vadd.f32 %v497, %v3186
    %v3188 = vpop.f32.mrb[0].mxu0
    %v3189 = vadd.f32 %v493, %v3188
    %v3190 = vpop.f32.mrb[0].mxu0
    %v3191 = vadd.f32 %v497, %v3190
    %3192 = vdwg.mxu0
    %3193 = vmatprep.subr.bf16.mxu0 %v1577
    %3194 = vmatpush1.bf16.msra.mxu0 %v1576
    %3195 = vmatprep.subr.bf16.mxu0 %v1589
    %3196 = vmatpush1.bf16.msra.mxu0 %v1588
    %3197 = vmatprep.subr.bf16.mxu0 %v1601
    %3198 = vmatpush1.bf16.msra.mxu0 %v1600
    %3199 = vmatprep.subr.bf16.mxu0 %v1613
    %3200 = vmatpush1.bf16.msra.mxu0 %v1612
    %3201 = vmatprep.subr.bf16.mxu0 %v1625
    %3202 = vmatpush1.bf16.msra.mxu0 %v1624
    %3203 = vmatprep.subr.bf16.mxu0 %v1637
    %3204 = vmatpush1.bf16.msra.mxu0 %v1636
    %3205 = vmatprep.subr.bf16.mxu0 %v1649
    %3206 = vmatpush1.bf16.msra.mxu0 %v1648
    %3207 = vmatprep.subr.bf16.mxu0 %v1661
    %3208 = vmatpush1.bf16.msra.mxu0 %v1660
    %3209 = vmatprep.subr.bf16.mxu0 0
    %3210 = vmatpush1.bf16.msra.mxu0 0
    %3211 = vmatprep.subr.bf16.mxu0 0
    %3212 = vmatpush1.bf16.msra.mxu0 0
    %3213 = vmatprep.subr.bf16.mxu0 0
    %3214 = vmatpush1.bf16.msra.mxu0 0
    %3215 = vmatprep.subr.bf16.mxu0 0
    %3216 = vmatpush1.bf16.msra.mxu0 0
    %3217 = vmatprep.subr.bf16.mxu0 0
    %3218 = vmatpush1.bf16.msra.mxu0 0
    %3219 = vmatprep.subr.bf16.mxu0 0
    %3220 = vmatpush1.bf16.msra.mxu0 0
    %3221 = vmatprep.subr.bf16.mxu0 0
    %3222 = vmatpush1.bf16.msra.mxu0 0
    %3223 = vmatprep.subr.bf16.mxu0 0
    %3224 = vmatpush1.bf16.msra.mxu0 0
    %3225 = vmatprep.mubr.bf16.mxu0 0
    %3226 = vmatmul.mubr.bf16.gmra.mrb[0].mxu0 %v136
    %v3227 = vpop.f32.mrb[0].mxu0
    %v3228 = vadd.f32 %v3115, %v3227
    %v3229 = vpop.f32.mrb[0].mxu0
    %v3230 = vadd.f32 %v3117, %v3229
    %v3231 = vpop.f32.mrb[0].mxu0
    %v3232 = vadd.f32 %v3119, %v3231
    %v3233 = vpop.f32.mrb[0].mxu0
    %v3234 = vadd.f32 %v3121, %v3233
    %3235 = vmatprep.mubr.bf16.mxu0 0
    %3236 = vmatmul.mubr.bf16.gmra.mrb[0].mxu0 %v139
    %v3237 = vpop.f32.mrb[0].mxu0
    %v3238 = vadd.f32 %v3125, %v3237
    %v3239 = vpop.f32.mrb[0].mxu0
    %v3240 = vadd.f32 %v3127, %v3239
    %v3241 = vpop.f32.mrb[0].mxu0
    %v3242 = vadd.f32 %v3129, %v3241
    %v3243 = vpop.f32.mrb[0].mxu0
    %v3244 = vadd.f32 %v3131, %v3243
    %3245 = vmatprep.mubr.bf16.mxu0 0
    %3246 = vmatmul.mubr.bf16.gmra.mrb[0].mxu0 %v142
    %v3247 = vpop.f32.mrb[0].mxu0
    %v3248 = vadd.f32 %v3135, %v3247
    %v3249 = vpop.f32.mrb[0].mxu0
    %v3250 = vadd.f32 %v3137, %v3249
    %v3251 = vpop.f32.mrb[0].mxu0
    %v3252 = vadd.f32 %v3139, %v3251
    %v3253 = vpop.f32.mrb[0].mxu0
    %v3254 = vadd.f32 %v3141, %v3253
    %3255 = vmatprep.mubr.bf16.mxu0 0
    %3256 = vmatmul.mubr.bf16.gmra.mrb[0].mxu0 %v145
    %v3257 = vpop.f32.mrb[0].mxu0
    %v3258 = vadd.f32 %v3145, %v3257
    %v3259 = vpop.f32.mrb[0].mxu0
    %v3260 = vadd.f32 %v3147, %v3259
    %v3261 = vpop.f32.mrb[0].mxu0
    %v3262 = vadd.f32 %v3149, %v3261
    %v3263 = vpop.f32.mrb[0].mxu0
    %v3264 = vadd.f32 %v3151, %v3263
    %3265 = vmatprep.mubr.bf16.mxu0 0
    %3266 = vmatmul.mubr.bf16.gmra.mrb[0].mxu0 %v148
    %v3267 = vpop.f32.mrb[0].mxu0
    %v3268 = vadd.f32 %v3155, %v3267
    %v3269 = vpop.f32.mrb[0].mxu0
    %v3270 = vadd.f32 %v3157, %v3269
    %v3271 = vpop.f32.mrb[0].mxu0
    %v3272 = vadd.f32 %v3159, %v3271
    %v3273 = vpop.f32.mrb[0].mxu0
    %v3274 = vadd.f32 %v3161, %v3273
    %3275 = vmatprep.mubr.bf16.mxu0 0
    %3276 = vmatmul.mubr.bf16.gmra.mrb[0].mxu0 %v151
    %v3277 = vpop.f32.mrb[0].mxu0
    %v3278 = vadd.f32 %v3165, %v3277
    %v3279 = vpop.f32.mrb[0].mxu0
    %v3280 = vadd.f32 %v3167, %v3279
    %v3281 = vpop.f32.mrb[0].mxu0
    %v3282 = vadd.f32 %v3169, %v3281
    %v3283 = vpop.f32.mrb[0].mxu0
    %v3284 = vadd.f32 %v3171, %v3283
    %3285 = vmatprep.mubr.bf16.mxu0 0
    %3286 = vmatmul.mubr.bf16.gmra.mrb[0].mxu0 %v154
    %v3287 = vpop.f32.mrb[0].mxu0
    %v3288 = vadd.f32 %v3175, %v3287
    %v3289 = vpop.f32.mrb[0].mxu0
    %v3290 = vadd.f32 %v3177, %v3289
    %v3291 = vpop.f32.mrb[0].mxu0
    %v3292 = vadd.f32 %v3179, %v3291
    %v3293 = vpop.f32.mrb[0].mxu0
    %v3294 = vadd.f32 %v3181, %v3293
    %3295 = vmatprep.mubr.bf16.mxu0 0
    %3296 = vmatmul.mubr.bf16.gmra.mrb[0].mxu0 %v157
    %v3297 = vpop.f32.mrb[0].mxu0
    %v3298 = vadd.f32 %v3185, %v3297
    %v3299 = vpop.f32.mrb[0].mxu0
    %v3300 = vadd.f32 %v3187, %v3299
    %v3301 = vpop.f32.mrb[0].mxu0
    %v3302 = vadd.f32 %v3189, %v3301
    %v3303 = vpop.f32.mrb[0].mxu0
    %v3304 = vadd.f32 %v3191, %v3303
    %3305 = vdwg.mxu0
    %v3306 = vmax.f32 %v2098, 0.0
    %v3307 = vmax.f32 %v2100, 0.0
    %v3308 = vmax.f32 %v2324, 0.0
    %v3309 = vmax.f32 %v2326, 0.0
    %v3310 = vmax.f32 %v2550, 0.0
    %v3311 = vmax.f32 %v2552, 0.0
    %v3312 = vmax.f32 %v2776, 0.0
    %v3313 = vmax.f32 %v2778, 0.0
    %v3314 = vmax.f32 %v3002, 0.0
    %v3315 = vmax.f32 %v3004, 0.0
    %v3316 = vmax.f32 %v3228, 0.0
    %v3317 = vmax.f32 %v3230, 0.0
    %v3318 = vmax.f32 %v2102, 0.0
    %v3319 = vmax.f32 %v2104, 0.0
    %v3320 = vmax.f32 %v2328, 0.0
    %v3321 = vmax.f32 %v2330, 0.0
    %v3322 = vmax.f32 %v2554, 0.0
    %v3323 = vmax.f32 %v2556, 0.0
    %v3324 = vmax.f32 %v2780, 0.0
    %v3325 = vmax.f32 %v2782, 0.0
    %v3326 = vmax.f32 %v3006, 0.0
    %v3327 = vmax.f32 %v3008, 0.0
    %v3328 = vmax.f32 %v3232, 0.0
    %v3329 = vmax.f32 %v3234, 0.0
    %v3330 = vmax.f32 %v2108, 0.0
    %v3331 = vmax.f32 %v2110, 0.0
    %v3332 = vmax.f32 %v2334, 0.0
    %v3333 = vmax.f32 %v2336, 0.0
    %v3334 = vmax.f32 %v2560, 0.0
    %v3335 = vmax.f32 %v2562, 0.0
    %v3336 = vmax.f32 %v2786, 0.0
    %v3337 = vmax.f32 %v2788, 0.0
    %v3338 = vmax.f32 %v3012, 0.0
    %v3339 = vmax.f32 %v3014, 0.0
    %v3340 = vmax.f32 %v3238, 0.0
    %v3341 = vmax.f32 %v3240, 0.0
    %v3342 = vmax.f32 %v2112, 0.0
    %v3343 = vmax.f32 %v2114, 0.0
    %v3344 = vmax.f32 %v2338, 0.0
    %v3345 = vmax.f32 %v2340, 0.0
    %v3346 = vmax.f32 %v2564, 0.0
    %v3347 = vmax.f32 %v2566, 0.0
    %v3348 = vmax.f32 %v2790, 0.0
    %v3349 = vmax.f32 %v2792, 0.0
    %v3350 = vmax.f32 %v3016, 0.0
    %v3351 = vmax.f32 %v3018, 0.0
    %v3352 = vmax.f32 %v3242, 0.0
    %v3353 = vmax.f32 %v3244, 0.0
    %v3354 = vmax.f32 %v2118, 0.0
    %v3355 = vmax.f32 %v2120, 0.0
    %v3356 = vmax.f32 %v2344, 0.0
    %v3357 = vmax.f32 %v2346, 0.0
    %v3358 = vmax.f32 %v2570, 0.0
    %v3359 = vmax.f32 %v2572, 0.0
    %v3360 = vmax.f32 %v2796, 0.0
    %v3361 = vmax.f32 %v2798, 0.0
    %v3362 = vmax.f32 %v3022, 0.0
    %v3363 = vmax.f32 %v3024, 0.0
    %v3364 = vmax.f32 %v3248, 0.0
    %v3365 = vmax.f32 %v3250, 0.0
    %v3366 = vmax.f32 %v2122, 0.0
    %v3367 = vmax.f32 %v2124, 0.0
    %v3368 = vmax.f32 %v2348, 0.0
    %v3369 = vmax.f32 %v2350, 0.0
    %v3370 = vmax.f32 %v2574, 0.0
    %v3371 = vmax.f32 %v2576, 0.0
    %v3372 = vmax.f32 %v2800, 0.0
    %v3373 = vmax.f32 %v2802, 0.0
    %v3374 = vmax.f32 %v3026, 0.0
    %v3375 = vmax.f32 %v3028, 0.0
    %v3376 = vmax.f32 %v3252, 0.0
    %v3377 = vmax.f32 %v3254, 0.0
    %v3378 = vmax.f32 %v2128, 0.0
    %v3379 = vmax.f32 %v2130, 0.0
    %v3380 = vmax.f32 %v2354, 0.0
    %v3381 = vmax.f32 %v2356, 0.0
    %v3382 = vmax.f32 %v2580, 0.0
    %v3383 = vmax.f32 %v2582, 0.0
    %v3384 = vmax.f32 %v2806, 0.0
    %v3385 = vmax.f32 %v2808, 0.0
    %v3386 = vmax.f32 %v3032, 0.0
    %v3387 = vmax.f32 %v3034, 0.0
    %v3388 = vmax.f32 %v3258, 0.0
    %v3389 = vmax.f32 %v3260, 0.0
    %v3390 = vmax.f32 %v2132, 0.0
    %v3391 = vmax.f32 %v2134, 0.0
    %v3392 = vmax.f32 %v2358, 0.0
    %v3393 = vmax.f32 %v2360, 0.0
    %v3394 = vmax.f32 %v2584, 0.0
    %v3395 = vmax.f32 %v2586, 0.0
    %v3396 = vmax.f32 %v2810, 0.0
    %v3397 = vmax.f32 %v2812, 0.0
    %v3398 = vmax.f32 %v3036, 0.0
    %v3399 = vmax.f32 %v3038, 0.0
    %v3400 = vmax.f32 %v3262, 0.0
    %v3401 = vmax.f32 %v3264, 0.0
    %v3402 = vmax.f32 %v2138, 0.0
    %v3403 = vmax.f32 %v2140, 0.0
    %v3404 = vmax.f32 %v2364, 0.0
    %v3405 = vmax.f32 %v2366, 0.0
    %v3406 = vmax.f32 %v2590, 0.0
    %v3407 = vmax.f32 %v2592, 0.0
    %v3408 = vmax.f32 %v2816, 0.0
    %v3409 = vmax.f32 %v2818, 0.0
    %v3410 = vmax.f32 %v3042, 0.0
    %v3411 = vmax.f32 %v3044, 0.0
    %v3412 = vmax.f32 %v3268, 0.0
    %v3413 = vmax.f32 %v3270, 0.0
    %v3414 = vmax.f32 %v2142, 0.0
    %v3415 = vmax.f32 %v2144, 0.0
    %v3416 = vmax.f32 %v2368, 0.0
    %v3417 = vmax.f32 %v2370, 0.0
    %v3418 = vmax.f32 %v2594, 0.0
    %v3419 = vmax.f32 %v2596, 0.0
    %v3420 = vmax.f32 %v2820, 0.0
    %v3421 = vmax.f32 %v2822, 0.0
    %v3422 = vmax.f32 %v3046, 0.0
    %v3423 = vmax.f32 %v3048, 0.0
    %v3424 = vmax.f32 %v3272, 0.0
    %v3425 = vmax.f32 %v3274, 0.0
    %v3426 = vmax.f32 %v2148, 0.0
    %v3427 = vmax.f32 %v2150, 0.0
    %v3428 = vmax.f32 %v2374, 0.0
    %v3429 = vmax.f32 %v2376, 0.0
    %v3430 = vmax.f32 %v2600, 0.0
    %v3431 = vmax.f32 %v2602, 0.0
    %v3432 = vmax.f32 %v2826, 0.0
    %v3433 = vmax.f32 %v2828, 0.0
    %v3434 = vmax.f32 %v3052, 0.0
    %v3435 = vmax.f32 %v3054, 0.0
    %v3436 = vmax.f32 %v3278, 0.0
    %v3437 = vmax.f32 %v3280, 0.0
    %v3438 = vmax.f32 %v2152, 0.0
    %v3439 = vmax.f32 %v2154, 0.0
    %v3440 = vmax.f32 %v2378, 0.0
    %v3441 = vmax.f32 %v2380, 0.0
    %v3442 = vmax.f32 %v2604, 0.0
    %v3443 = vmax.f32 %v2606, 0.0
    %v3444 = vmax.f32 %v2830, 0.0
    %v3445 = vmax.f32 %v2832, 0.0
    %v3446 = vmax.f32 %v3056, 0.0
    %v3447 = vmax.f32 %v3058, 0.0
    %v3448 = vmax.f32 %v3282, 0.0
    %v3449 = vmax.f32 %v3284, 0.0
    %v3450 = vmax.f32 %v2158, 0.0
    %v3451 = vmax.f32 %v2160, 0.0
    %v3452 = vmax.f32 %v2384, 0.0
    %v3453 = vmax.f32 %v2386, 0.0
    %v3454 = vmax.f32 %v2610, 0.0
    %v3455 = vmax.f32 %v2612, 0.0
    %v3456 = vmax.f32 %v2836, 0.0
    %v3457 = vmax.f32 %v2838, 0.0
    %v3458 = vmax.f32 %v3062, 0.0
    %v3459 = vmax.f32 %v3064, 0.0
    %v3460 = vmax.f32 %v3288, 0.0
    %v3461 = vmax.f32 %v3290, 0.0
    %v3462 = vmax.f32 %v2162, 0.0
    %v3463 = vmax.f32 %v2164, 0.0
    %v3464 = vmax.f32 %v2388, 0.0
    %v3465 = vmax.f32 %v2390, 0.0
    %v3466 = vmax.f32 %v2614, 0.0
    %v3467 = vmax.f32 %v2616, 0.0
    %v3468 = vmax.f32 %v2840, 0.0
    %v3469 = vmax.f32 %v2842, 0.0
    %v3470 = vmax.f32 %v3066, 0.0
    %v3471 = vmax.f32 %v3068, 0.0
    %v3472 = vmax.f32 %v3292, 0.0
    %v3473 = vmax.f32 %v3294, 0.0
    %v3474 = vmax.f32 %v2168, 0.0
    %v3475 = vmax.f32 %v2170, 0.0
    %v3476 = vmax.f32 %v2394, 0.0
    %v3477 = vmax.f32 %v2396, 0.0
    %v3478 = vmax.f32 %v2620, 0.0
    %v3479 = vmax.f32 %v2622, 0.0
    %v3480 = vmax.f32 %v2846, 0.0
    %v3481 = vmax.f32 %v2848, 0.0
    %v3482 = vmax.f32 %v3072, 0.0
    %v3483 = vmax.f32 %v3074, 0.0
    %v3484 = vmax.f32 %v3298, 0.0
    %v3485 = vmax.f32 %v3300, 0.0
    %v3486 = vmax.f32 %v2172, 0.0
    %v3487 = vmax.f32 %v2174, 0.0
    %v3488 = vmax.f32 %v2398, 0.0
    %v3489 = vmax.f32 %v2400, 0.0
    %v3490 = vmax.f32 %v2624, 0.0
    %v3491 = vmax.f32 %v2626, 0.0
    %v3492 = vmax.f32 %v2850, 0.0
    %v3493 = vmax.f32 %v2852, 0.0
    %v3494 = vmax.f32 %v3076, 0.0
    %v3495 = vmax.f32 %v3078, 0.0
    %v3496 = vmax.f32 %v3302, 0.0
    %v3497 = vmax.f32 %v3304, 0.0
    %v3498 = vpack.c.bf16 %v3318, %v3306
    %v3499 = vpack.c.bf16 %v3319, %v3307
    %v3500 = vpack.c.bf16 %v3320, %v3308
    %v3501 = vpack.c.bf16 %v3321, %v3309
    %v3502 = vpack.c.bf16 %v3322, %v3310
    %v3503 = vpack.c.bf16 %v3323, %v3311
    %v3504 = vpack.c.bf16 %v3324, %v3312
    %v3505 = vpack.c.bf16 %v3325, %v3313
    %v3506 = vpack.c.bf16 %v3326, %v3314
    %v3507 = vpack.c.bf16 %v3327, %v3315
    %v3508 = vpack.c.bf16 %v3328, %v3316
    %v3509 = vpack.c.bf16 %v3329, %v3317
    %v3510 = vpack.c.bf16 %v3342, %v3330
    %v3511 = vpack.c.bf16 %v3343, %v3331
    %v3512 = vpack.c.bf16 %v3344, %v3332
    %v3513 = vpack.c.bf16 %v3345, %v3333
    %v3514 = vpack.c.bf16 %v3346, %v3334
    %v3515 = vpack.c.bf16 %v3347, %v3335
    %v3516 = vpack.c.bf16 %v3348, %v3336
    %v3517 = vpack.c.bf16 %v3349, %v3337
    %v3518 = vpack.c.bf16 %v3350, %v3338
    %v3519 = vpack.c.bf16 %v3351, %v3339
    %v3520 = vpack.c.bf16 %v3352, %v3340
    %v3521 = vpack.c.bf16 %v3353, %v3341
    %v3522 = vpack.c.bf16 %v3366, %v3354
    %v3523 = vpack.c.bf16 %v3367, %v3355
    %v3524 = vpack.c.bf16 %v3368, %v3356
    %v3525 = vpack.c.bf16 %v3369, %v3357
    %v3526 = vpack.c.bf16 %v3370, %v3358
    %v3527 = vpack.c.bf16 %v3371, %v3359
    %v3528 = vpack.c.bf16 %v3372, %v3360
    %v3529 = vpack.c.bf16 %v3373, %v3361
    %v3530 = vpack.c.bf16 %v3374, %v3362
    %v3531 = vpack.c.bf16 %v3375, %v3363
    %v3532 = vpack.c.bf16 %v3376, %v3364
    %v3533 = vpack.c.bf16 %v3377, %v3365
    %v3534 = vpack.c.bf16 %v3390, %v3378
    %v3535 = vpack.c.bf16 %v3391, %v3379
    %v3536 = vpack.c.bf16 %v3392, %v3380
    %v3537 = vpack.c.bf16 %v3393, %v3381
    %v3538 = vpack.c.bf16 %v3394, %v3382
    %v3539 = vpack.c.bf16 %v3395, %v3383
    %v3540 = vpack.c.bf16 %v3396, %v3384
    %v3541 = vpack.c.bf16 %v3397, %v3385
    %v3542 = vpack.c.bf16 %v3398, %v3386
    %v3543 = vpack.c.bf16 %v3399, %v3387
    %v3544 = vpack.c.bf16 %v3400, %v3388
    %v3545 = vpack.c.bf16 %v3401, %v3389
    %v3546 = vpack.c.bf16 %v3414, %v3402
    %v3547 = vpack.c.bf16 %v3415, %v3403
    %v3548 = vpack.c.bf16 %v3416, %v3404
    %v3549 = vpack.c.bf16 %v3417, %v3405
    %v3550 = vpack.c.bf16 %v3418, %v3406
    %v3551 = vpack.c.bf16 %v3419, %v3407
    %v3552 = vpack.c.bf16 %v3420, %v3408
    %v3553 = vpack.c.bf16 %v3421, %v3409
    %v3554 = vpack.c.bf16 %v3422, %v3410
    %v3555 = vpack.c.bf16 %v3423, %v3411
    %v3556 = vpack.c.bf16 %v3424, %v3412
    %v3557 = vpack.c.bf16 %v3425, %v3413
    %v3558 = vpack.c.bf16 %v3438, %v3426
    %v3559 = vpack.c.bf16 %v3439, %v3427
    %v3560 = vpack.c.bf16 %v3440, %v3428
    %v3561 = vpack.c.bf16 %v3441, %v3429
    %v3562 = vpack.c.bf16 %v3442, %v3430
    %v3563 = vpack.c.bf16 %v3443, %v3431
    %v3564 = vpack.c.bf16 %v3444, %v3432
    %v3565 = vpack.c.bf16 %v3445, %v3433
    %v3566 = vpack.c.bf16 %v3446, %v3434
    %v3567 = vpack.c.bf16 %v3447, %v3435
    %v3568 = vpack.c.bf16 %v3448, %v3436
    %v3569 = vpack.c.bf16 %v3449, %v3437
    %v3570 = vpack.c.bf16 %v3462, %v3450
    %v3571 = vpack.c.bf16 %v3463, %v3451
    %v3572 = vpack.c.bf16 %v3464, %v3452
    %v3573 = vpack.c.bf16 %v3465, %v3453
    %v3574 = vpack.c.bf16 %v3466, %v3454
    %v3575 = vpack.c.bf16 %v3467, %v3455
    %v3576 = vpack.c.bf16 %v3468, %v3456
    %v3577 = vpack.c.bf16 %v3469, %v3457
    %v3578 = vpack.c.bf16 %v3470, %v3458
    %v3579 = vpack.c.bf16 %v3471, %v3459
    %v3580 = vpack.c.bf16 %v3472, %v3460
    %v3581 = vpack.c.bf16 %v3473, %v3461
    %v3582 = vpack.c.bf16 %v3486, %v3474
    %v3583 = vpack.c.bf16 %v3487, %v3475
    %v3584 = vpack.c.bf16 %v3488, %v3476
    %v3585 = vpack.c.bf16 %v3489, %v3477
    %v3586 = vpack.c.bf16 %v3490, %v3478
    %v3587 = vpack.c.bf16 %v3491, %v3479
    %v3588 = vpack.c.bf16 %v3492, %v3480
    %v3589 = vpack.c.bf16 %v3493, %v3481
    %v3590 = vpack.c.bf16 %v3494, %v3482
    %v3591 = vpack.c.bf16 %v3495, %v3483
    %v3592 = vpack.c.bf16 %v3496, %v3484
    %v3593 = vpack.c.bf16 %v3497, %v3485
    %v3594 = vld [vmem:[#allocation8] sm:$0xff]
    %v3595 = vld [vmem:[#allocation8 + $0x8] sm:$0xf]
    %v3596 = vld [vmem:[#allocation8 + $0xc] sm:$0xff]
    %v3597 = vld [vmem:[#allocation8 + $0x14] sm:$0xf]
    %v3598 = vld [vmem:[#allocation8 + $0x18] sm:$0xff]
    %v3599 = vld [vmem:[#allocation8 + $0x20] sm:$0xf]
    %v3600 = vld [vmem:[#allocation8 + $0x24] sm:$0xff]
    %v3601 = vld [vmem:[#allocation8 + $0x2c] sm:$0xf]
    %v3602 = vld [vmem:[#allocation8 + $0x30] sm:$0xff]
    %v3603 = vld [vmem:[#allocation8 + $0x38] sm:$0xf]
    %v3604 = vld [vmem:[#allocation8 + $0x3c] sm:$0xff]
    %v3605 = vld [vmem:[#allocation8 + $0x44] sm:$0xf]
    %v3606 = vld [vmem:[#allocation8 + $0x48] sm:$0xff]
    %v3607 = vld [vmem:[#allocation8 + $0x50] sm:$0xf]
    %v3608 = vld [vmem:[#allocation8 + $0x54] sm:$0xff]
    %v3609 = vld [vmem:[#allocation8 + $0x5c] sm:$0xf]
    %v3610 = vld [vmem:[#allocation8 + $0x60] sm:$0xff]
    %v3611 = vld [vmem:[#allocation8 + $0x68] sm:$0xf]
    %v3612 = vld [vmem:[#allocation8 + $0x6c] sm:$0xff]
    %v3613 = vld [vmem:[#allocation8 + $0x74] sm:$0xf]
    %v3614 = vld [vmem:[#allocation8 + $0x78] sm:$0xff]
    %v3615 = vld [vmem:[#allocation8 + $0x80] sm:$0xf]
    %v3616 = vld [vmem:[#allocation8 + $0x84] sm:$0xff]
    %v3617 = vld [vmem:[#allocation8 + $0x8c] sm:$0xf]
    %v3618 = vld [vmem:[#allocation8 + $0x90] sm:$0xff]
    %v3619 = vld [vmem:[#allocation8 + $0x98] sm:$0xf]
    %v3620 = vld [vmem:[#allocation8 + $0x9c] sm:$0xff]
    %v3621 = vld [vmem:[#allocation8 + $0xa4] sm:$0xf]
    %v3622 = vld [vmem:[#allocation8 + $0xa8] sm:$0xff]
    %v3623 = vld [vmem:[#allocation8 + $0xb0] sm:$0xf]
    %v3624 = vld [vmem:[#allocation8 + $0xb4] sm:$0xff]
    %v3625 = vld [vmem:[#allocation8 + $0xbc] sm:$0xf]
    %v3626 = vld [vmem:[#allocation8 + $0xc0] sm:$0xff]
    %v3627 = vld [vmem:[#allocation8 + $0xc8] sm:$0xf]
    %v3628 = vld [vmem:[#allocation8 + $0xcc] sm:$0xff]
    %v3629 = vld [vmem:[#allocation8 + $0xd4] sm:$0xf]
    %v3630 = vld [vmem:[#allocation8 + $0xd8] sm:$0xff]
    %v3631 = vld [vmem:[#allocation8 + $0xe0] sm:$0xf]
    %v3632 = vld [vmem:[#allocation8 + $0xe4] sm:$0xff]
    %v3633 = vld [vmem:[#allocation8 + $0xec] sm:$0xf]
    %v3634 = vld [vmem:[#allocation8 + $0xf0] sm:$0xff]
    %v3635 = vld [vmem:[#allocation8 + $0xf8] sm:$0xf]
    %v3636 = vld [vmem:[#allocation8 + $0xfc] sm:$0xff]
    %v3637 = vld [vmem:[#allocation8 + $0x104] sm:$0xf]
    %v3638 = vld [vmem:[#allocation8 + $0x108] sm:$0xff]
    %v3639 = vld [vmem:[#allocation8 + $0x110] sm:$0xf]
    %v3640 = vld [vmem:[#allocation8 + $0x114] sm:$0xff]
    %v3641 = vld [vmem:[#allocation8 + $0x11c] sm:$0xf]
    %v3642 = vld [vmem:[#allocation8 + $0x120] sm:$0xff]
    %v3643 = vld [vmem:[#allocation8 + $0x128] sm:$0xf]
    %v3644 = vld [vmem:[#allocation8 + $0x12c] sm:$0xff]
    %v3645 = vld [vmem:[#allocation8 + $0x134] sm:$0xf]
    %v3646 = vld [vmem:[#allocation8 + $0x138] sm:$0xff]
    %v3647 = vld [vmem:[#allocation8 + $0x140] sm:$0xf]
    %v3648 = vld [vmem:[#allocation8 + $0x144] sm:$0xff]
    %v3649 = vld [vmem:[#allocation8 + $0x14c] sm:$0xf]
    %v3650 = vld [vmem:[#allocation8 + $0x150] sm:$0xff]
    %v3651 = vld [vmem:[#allocation8 + $0x158] sm:$0xf]
    %v3652 = vld [vmem:[#allocation8 + $0x15c] sm:$0xff]
    %v3653 = vld [vmem:[#allocation8 + $0x164] sm:$0xf]
    %v3654 = vld [vmem:[#allocation8 + $0x168] sm:$0xff]
    %v3655 = vld [vmem:[#allocation8 + $0x170] sm:$0xf]
    %v3656 = vld [vmem:[#allocation8 + $0x174] sm:$0xff]
    %v3657 = vld [vmem:[#allocation8 + $0x17c] sm:$0xf]
    %v3658 = vld [vmem:[#allocation8 + $0x180] sm:$0xff]
    %v3659 = vld [vmem:[#allocation8 + $0x188] sm:$0xf]
    %v3660 = vld [vmem:[#allocation8 + $0x18c] sm:$0xff]
    %v3661 = vld [vmem:[#allocation8 + $0x194] sm:$0xf]
    %v3662 = vld [vmem:[#allocation8 + $0x198] sm:$0xff]
    %v3663 = vld [vmem:[#allocation8 + $0x1a0] sm:$0xf]
    %v3664 = vld [vmem:[#allocation8 + $0x1a4] sm:$0xff]
    %v3665 = vld [vmem:[#allocation8 + $0x1ac] sm:$0xf]
    %v3666 = vld [vmem:[#allocation8 + $0x1b0] sm:$0xff]
    %v3667 = vld [vmem:[#allocation8 + $0x1b8] sm:$0xf]
    %v3668 = vld [vmem:[#allocation8 + $0x1bc] sm:$0xff]
    %v3669 = vld [vmem:[#allocation8 + $0x1c4] sm:$0xf]
    %v3670 = vld [vmem:[#allocation8 + $0x1c8] sm:$0xff]
    %v3671 = vld [vmem:[#allocation8 + $0x1d0] sm:$0xf]
    %v3672 = vld [vmem:[#allocation8 + $0x1d4] sm:$0xff]
    %v3673 = vld [vmem:[#allocation8 + $0x1dc] sm:$0xf]
    %v3674 = vld [vmem:[#allocation8 + $0x1e0] sm:$0xff]
    %v3675 = vld [vmem:[#allocation8 + $0x1e8] sm:$0xf]
    %v3676 = vld [vmem:[#allocation8 + $0x1ec] sm:$0xff]
    %v3677 = vld [vmem:[#allocation8 + $0x1f4] sm:$0xf]
    %v3678 = vld [vmem:[#allocation8 + $0x1f8] sm:$0xff]
    %v3679 = vld [vmem:[#allocation8 + $0x200] sm:$0xf]
    %v3680 = vld [vmem:[#allocation8 + $0x204] sm:$0xff]
    %v3681 = vld [vmem:[#allocation8 + $0x20c] sm:$0xf]
    %v3682 = vld [vmem:[#allocation8 + $0x210] sm:$0xff]
    %v3683 = vld [vmem:[#allocation8 + $0x218] sm:$0xf]
    %v3684 = vld [vmem:[#allocation8 + $0x21c] sm:$0xff]
    %v3685 = vld [vmem:[#allocation8 + $0x224] sm:$0xf]
    %v3686 = vld [vmem:[#allocation8 + $0x228] sm:$0xff]
    %v3687 = vld [vmem:[#allocation8 + $0x230] sm:$0xf]
    %v3688 = vld [vmem:[#allocation8 + $0x234] sm:$0xff]
    %v3689 = vld [vmem:[#allocation8 + $0x23c] sm:$0xf]
    %v3690 = vld [vmem:[#allocation8 + $0x240] sm:$0xff]
    %v3691 = vld [vmem:[#allocation8 + $0x248] sm:$0xf]
    %v3692 = vld [vmem:[#allocation8 + $0x24c] sm:$0xff]
    %v3693 = vld [vmem:[#allocation8 + $0x254] sm:$0xf]
    %v3694 = vld [vmem:[#allocation8 + $0x258] sm:$0xff]
    %v3695 = vld [vmem:[#allocation8 + $0x260] sm:$0xf]
    %v3696 = vld [vmem:[#allocation8 + $0x264] sm:$0xff]
    %v3697 = vld [vmem:[#allocation8 + $0x26c] sm:$0xf]
    %v3698 = vld [vmem:[#allocation8 + $0x270] sm:$0xff]
    %v3699 = vld [vmem:[#allocation8 + $0x278] sm:$0xf]
    %v3700 = vld [vmem:[#allocation8 + $0x27c] sm:$0xff]
    %v3701 = vld [vmem:[#allocation8 + $0x284] sm:$0xf]
    %v3702 = vld [vmem:[#allocation8 + $0x288] sm:$0xff]
    %v3703 = vld [vmem:[#allocation8 + $0x290] sm:$0xf]
    %v3704 = vld [vmem:[#allocation8 + $0x294] sm:$0xff]
    %v3705 = vld [vmem:[#allocation8 + $0x29c] sm:$0xf]
    %v3706 = vld [vmem:[#allocation8 + $0x2a0] sm:$0xff]
    %v3707 = vld [vmem:[#allocation8 + $0x2a8] sm:$0xf]
    %v3708 = vld [vmem:[#allocation8 + $0x2ac] sm:$0xff]
    %v3709 = vld [vmem:[#allocation8 + $0x2b4] sm:$0xf]
    %v3710 = vld [vmem:[#allocation8 + $0x2b8] sm:$0xff]
    %v3711 = vld [vmem:[#allocation8 + $0x2c0] sm:$0xf]
    %v3712 = vld [vmem:[#allocation8 + $0x2c4] sm:$0xff]
    %v3713 = vld [vmem:[#allocation8 + $0x2cc] sm:$0xf]
    %v3714 = vld [vmem:[#allocation8 + $0x2d0] sm:$0xff]
    %v3715 = vld [vmem:[#allocation8 + $0x2d8] sm:$0xf]
    %v3716 = vld [vmem:[#allocation8 + $0x2dc] sm:$0xff]
    %v3717 = vld [vmem:[#allocation8 + $0x2e4] sm:$0xf]
    %v3718 = vld [vmem:[#allocation8 + $0x2e8] sm:$0xff]
    %v3719 = vld [vmem:[#allocation8 + $0x2f0] sm:$0xf]
    %v3720 = vld [vmem:[#allocation8 + $0x2f4] sm:$0xff]
    %v3721 = vld [vmem:[#allocation8 + $0x2fc] sm:$0xf]
    %v3722 = vld [vmem:[#allocation8 + $0x300] sm:$0xff]
    %v3723 = vld [vmem:[#allocation8 + $0x308] sm:$0xf]
    %v3724 = vld [vmem:[#allocation8 + $0x30c] sm:$0xff]
    %v3725 = vld [vmem:[#allocation8 + $0x314] sm:$0xf]
    %v3726 = vld [vmem:[#allocation8 + $0x318] sm:$0xff]
    %v3727 = vld [vmem:[#allocation8 + $0x320] sm:$0xf]
    %v3728 = vld [vmem:[#allocation8 + $0x324] sm:$0xff]
    %v3729 = vld [vmem:[#allocation8 + $0x32c] sm:$0xf]
    %v3730 = vld [vmem:[#allocation8 + $0x330] sm:$0xff]
    %v3731 = vld [vmem:[#allocation8 + $0x338] sm:$0xf]
    %v3732 = vld [vmem:[#allocation8 + $0x33c] sm:$0xff]
    %v3733 = vld [vmem:[#allocation8 + $0x344] sm:$0xf]
    %v3734 = vld [vmem:[#allocation8 + $0x348] sm:$0xff]
    %v3735 = vld [vmem:[#allocation8 + $0x350] sm:$0xf]
    %v3736 = vld [vmem:[#allocation8 + $0x354] sm:$0xff]
    %v3737 = vld [vmem:[#allocation8 + $0x35c] sm:$0xf]
    %v3738 = vld [vmem:[#allocation8 + $0x360] sm:$0xff]
    %v3739 = vld [vmem:[#allocation8 + $0x368] sm:$0xf]
    %v3740 = vld [vmem:[#allocation8 + $0x36c] sm:$0xff]
    %v3741 = vld [vmem:[#allocation8 + $0x374] sm:$0xf]
    %v3742 = vld [vmem:[#allocation8 + $0x378] sm:$0xff]
    %v3743 = vld [vmem:[#allocation8 + $0x380] sm:$0xf]
    %v3744 = vld [vmem:[#allocation8 + $0x384] sm:$0xff]
    %v3745 = vld [vmem:[#allocation8 + $0x38c] sm:$0xf]
    %v3746 = vld [vmem:[#allocation8 + $0x390] sm:$0xff]
    %v3747 = vld [vmem:[#allocation8 + $0x398] sm:$0xf]
    %v3748 = vld [vmem:[#allocation8 + $0x39c] sm:$0xff]
    %v3749 = vld [vmem:[#allocation8 + $0x3a4] sm:$0xf]
    %v3750 = vld [vmem:[#allocation8 + $0x3a8] sm:$0xff]
    %v3751 = vld [vmem:[#allocation8 + $0x3b0] sm:$0xf]
    %v3752 = vld [vmem:[#allocation8 + $0x3b4] sm:$0xff]
    %v3753 = vld [vmem:[#allocation8 + $0x3bc] sm:$0xf]
    %v3754 = vld [vmem:[#allocation8 + $0x3c0] sm:$0xff]
    %v3755 = vld [vmem:[#allocation8 + $0x3c8] sm:$0xf]
    %v3756 = vld [vmem:[#allocation8 + $0x3cc] sm:$0xff]
    %v3757 = vld [vmem:[#allocation8 + $0x3d4] sm:$0xf]
    %v3758 = vld [vmem:[#allocation8 + $0x3d8] sm:$0xff]
    %v3759 = vld [vmem:[#allocation8 + $0x3e0] sm:$0xf]
    %v3760 = vld [vmem:[#allocation8 + $0x3e4] sm:$0xff]
    %v3761 = vld [vmem:[#allocation8 + $0x3ec] sm:$0xf]
    %v3762 = vld [vmem:[#allocation8 + $0x3f0] sm:$0xff]
    %v3763 = vld [vmem:[#allocation8 + $0x3f8] sm:$0xf]
    %v3764 = vld [vmem:[#allocation8 + $0x3fc] sm:$0xff]
    %v3765 = vld [vmem:[#allocation8 + $0x404] sm:$0xf]
    %v3766 = vld [vmem:[#allocation8 + $0x408] sm:$0xff]
    %v3767 = vld [vmem:[#allocation8 + $0x410] sm:$0xf]
    %v3768 = vld [vmem:[#allocation8 + $0x414] sm:$0xff]
    %v3769 = vld [vmem:[#allocation8 + $0x41c] sm:$0xf]
    %v3770 = vld [vmem:[#allocation8 + $0x420] sm:$0xff]
    %v3771 = vld [vmem:[#allocation8 + $0x428] sm:$0xf]
    %v3772 = vld [vmem:[#allocation8 + $0x42c] sm:$0xff]
    %v3773 = vld [vmem:[#allocation8 + $0x434] sm:$0xf]
    %v3774 = vld [vmem:[#allocation8 + $0x438] sm:$0xff]
    %v3775 = vld [vmem:[#allocation8 + $0x440] sm:$0xf]
    %v3776 = vld [vmem:[#allocation8 + $0x444] sm:$0xff]
    %v3777 = vld [vmem:[#allocation8 + $0x44c] sm:$0xf]
    %v3778 = vld [vmem:[#allocation8 + $0x450] sm:$0xff]
    %v3779 = vld [vmem:[#allocation8 + $0x458] sm:$0xf]
    %v3780 = vld [vmem:[#allocation8 + $0x45c] sm:$0xff]
    %v3781 = vld [vmem:[#allocation8 + $0x464] sm:$0xf]
    %v3782 = vld [vmem:[#allocation8 + $0x468] sm:$0xff]
    %v3783 = vld [vmem:[#allocation8 + $0x470] sm:$0xf]
    %v3784 = vld [vmem:[#allocation8 + $0x474] sm:$0xff]
    %v3785 = vld [vmem:[#allocation8 + $0x47c] sm:$0xf]
    %v3786 = vld [vmem:[#allocation8 + $0x480] sm:$0xff]
    %v3787 = vld [vmem:[#allocation8 + $0x488] sm:$0xf]
    %v3788 = vld [vmem:[#allocation8 + $0x48c] sm:$0xff]
    %v3789 = vld [vmem:[#allocation8 + $0x494] sm:$0xf]
    %v3790 = vld [vmem:[#allocation8 + $0x498] sm:$0xff]
    %v3791 = vld [vmem:[#allocation8 + $0x4a0] sm:$0xf]
    %v3792 = vld [vmem:[#allocation8 + $0x4a4] sm:$0xff]
    %v3793 = vld [vmem:[#allocation8 + $0x4ac] sm:$0xf]
    %v3794 = vld [vmem:[#allocation8 + $0x4b0] sm:$0xff]
    %v3795 = vld [vmem:[#allocation8 + $0x4b8] sm:$0xf]
    %v3796 = vld [vmem:[#allocation8 + $0x4bc] sm:$0xff]
    %v3797 = vld [vmem:[#allocation8 + $0x4c4] sm:$0xf]
    %v3798 = vld [vmem:[#allocation8 + $0x4c8] sm:$0xff]
    %v3799 = vld [vmem:[#allocation8 + $0x4d0] sm:$0xf]
    %v3800 = vld [vmem:[#allocation8 + $0x4d4] sm:$0xff]
    %v3801 = vld [vmem:[#allocation8 + $0x4dc] sm:$0xf]
    %v3802 = vld [vmem:[#allocation8 + $0x4e0] sm:$0xff]
    %v3803 = vld [vmem:[#allocation8 + $0x4e8] sm:$0xf]
    %v3804 = vld [vmem:[#allocation8 + $0x4ec] sm:$0xff]
    %v3805 = vld [vmem:[#allocation8 + $0x4f4] sm:$0xf]
    %v3806 = vld [vmem:[#allocation8 + $0x4f8] sm:$0xff]
    %v3807 = vld [vmem:[#allocation8 + $0x500] sm:$0xf]
    %v3808 = vld [vmem:[#allocation8 + $0x504] sm:$0xff]
    %v3809 = vld [vmem:[#allocation8 + $0x50c] sm:$0xf]
    %v3810 = vld [vmem:[#allocation8 + $0x510] sm:$0xff]
    %v3811 = vld [vmem:[#allocation8 + $0x518] sm:$0xf]
    %v3812 = vld [vmem:[#allocation8 + $0x51c] sm:$0xff]
    %v3813 = vld [vmem:[#allocation8 + $0x524] sm:$0xf]
    %v3814 = vld [vmem:[#allocation8 + $0x528] sm:$0xff]
    %v3815 = vld [vmem:[#allocation8 + $0x530] sm:$0xf]
    %v3816 = vld [vmem:[#allocation8 + $0x534] sm:$0xff]
    %v3817 = vld [vmem:[#allocation8 + $0x53c] sm:$0xf]
    %v3818 = vld [vmem:[#allocation8 + $0x540] sm:$0xff]
    %v3819 = vld [vmem:[#allocation8 + $0x548] sm:$0xf]
    %v3820 = vld [vmem:[#allocation8 + $0x54c] sm:$0xff]
    %v3821 = vld [vmem:[#allocation8 + $0x554] sm:$0xf]
    %v3822 = vld [vmem:[#allocation8 + $0x558] sm:$0xff]
    %v3823 = vld [vmem:[#allocation8 + $0x560] sm:$0xf]
    %v3824 = vld [vmem:[#allocation8 + $0x564] sm:$0xff]
    %v3825 = vld [vmem:[#allocation8 + $0x56c] sm:$0xf]
    %v3826 = vld [vmem:[#allocation8 + $0x570] sm:$0xff]
    %v3827 = vld [vmem:[#allocation8 + $0x578] sm:$0xf]
    %v3828 = vld [vmem:[#allocation8 + $0x57c] sm:$0xff]
    %v3829 = vld [vmem:[#allocation8 + $0x584] sm:$0xf]
    %v3830 = vld [vmem:[#allocation8 + $0x588] sm:$0xff]
    %v3831 = vld [vmem:[#allocation8 + $0x590] sm:$0xf]
    %v3832 = vld [vmem:[#allocation8 + $0x594] sm:$0xff]
    %v3833 = vld [vmem:[#allocation8 + $0x59c] sm:$0xf]
    %v3834 = vld [vmem:[#allocation8 + $0x5a0] sm:$0xff]
    %v3835 = vld [vmem:[#allocation8 + $0x5a8] sm:$0xf]
    %v3836 = vld [vmem:[#allocation8 + $0x5ac] sm:$0xff]
    %v3837 = vld [vmem:[#allocation8 + $0x5b4] sm:$0xf]
    %v3838 = vld [vmem:[#allocation8 + $0x5b8] sm:$0xff]
    %v3839 = vld [vmem:[#allocation8 + $0x5c0] sm:$0xf]
    %v3840 = vld [vmem:[#allocation8 + $0x5c4] sm:$0xff]
    %v3841 = vld [vmem:[#allocation8 + $0x5cc] sm:$0xf]
    %v3842 = vld [vmem:[#allocation8 + $0x5d0] sm:$0xff]
    %v3843 = vld [vmem:[#allocation8 + $0x5d8] sm:$0xf]
    %v3844 = vld [vmem:[#allocation8 + $0x5dc] sm:$0xff]
    %v3845 = vld [vmem:[#allocation8 + $0x5e4] sm:$0xf]
    %v3846 = vld [vmem:[#allocation8 + $0x5e8] sm:$0xff]
    %v3847 = vld [vmem:[#allocation8 + $0x5f0] sm:$0xf]
    %v3848 = vld [vmem:[#allocation8 + $0x5f4] sm:$0xff]
    %v3849 = vld [vmem:[#allocation8 + $0x5fc] sm:$0xf]
    %v3850 = vld [vmem:[#allocation8 + $0x600] sm:$0xff]
    %v3851 = vld [vmem:[#allocation8 + $0x608] sm:$0xf]
    %v3852 = vld [vmem:[#allocation8 + $0x60c] sm:$0xff]
    %v3853 = vld [vmem:[#allocation8 + $0x614] sm:$0xf]
    %v3854 = vld [vmem:[#allocation8 + $0x618] sm:$0xff]
    %v3855 = vld [vmem:[#allocation8 + $0x620] sm:$0xf]
    %v3856 = vld [vmem:[#allocation8 + $0x624] sm:$0xff]
    %v3857 = vld [vmem:[#allocation8 + $0x62c] sm:$0xf]
    %v3858 = vld [vmem:[#allocation8 + $0x630] sm:$0xff]
    %v3859 = vld [vmem:[#allocation8 + $0x638] sm:$0xf]
    %v3860 = vld [vmem:[#allocation8 + $0x63c] sm:$0xff]
    %v3861 = vld [vmem:[#allocation8 + $0x644] sm:$0xf]
    %v3862 = vld [vmem:[#allocation8 + $0x648] sm:$0xff]
    %v3863 = vld [vmem:[#allocation8 + $0x650] sm:$0xf]
    %v3864 = vld [vmem:[#allocation8 + $0x654] sm:$0xff]
    %v3865 = vld [vmem:[#allocation8 + $0x65c] sm:$0xf]
    %v3866 = vld [vmem:[#allocation8 + $0x660] sm:$0xff]
    %v3867 = vld [vmem:[#allocation8 + $0x668] sm:$0xf]
    %v3868 = vld [vmem:[#allocation8 + $0x66c] sm:$0xff]
    %v3869 = vld [vmem:[#allocation8 + $0x674] sm:$0xf]
    %v3870 = vld [vmem:[#allocation8 + $0x678] sm:$0xff]
    %v3871 = vld [vmem:[#allocation8 + $0x680] sm:$0xf]
    %v3872 = vld [vmem:[#allocation8 + $0x684] sm:$0xff]
    %v3873 = vld [vmem:[#allocation8 + $0x68c] sm:$0xf]
    %v3874 = vld [vmem:[#allocation8 + $0x690] sm:$0xff]
    %v3875 = vld [vmem:[#allocation8 + $0x698] sm:$0xf]
    %v3876 = vld [vmem:[#allocation8 + $0x69c] sm:$0xff]
    %v3877 = vld [vmem:[#allocation8 + $0x6a4] sm:$0xf]
    %v3878 = vld [vmem:[#allocation8 + $0x6a8] sm:$0xff]
    %v3879 = vld [vmem:[#allocation8 + $0x6b0] sm:$0xf]
    %v3880 = vld [vmem:[#allocation8 + $0x6b4] sm:$0xff]
    %v3881 = vld [vmem:[#allocation8 + $0x6bc] sm:$0xf]
    %v3882 = vld [vmem:[#allocation8 + $0x6c0] sm:$0xff]
    %v3883 = vld [vmem:[#allocation8 + $0x6c8] sm:$0xf]
    %v3884 = vld [vmem:[#allocation8 + $0x6cc] sm:$0xff]
    %v3885 = vld [vmem:[#allocation8 + $0x6d4] sm:$0xf]
    %v3886 = vld [vmem:[#allocation8 + $0x6d8] sm:$0xff]
    %v3887 = vld [vmem:[#allocation8 + $0x6e0] sm:$0xf]
    %v3888 = vld [vmem:[#allocation8 + $0x6e4] sm:$0xff]
    %v3889 = vld [vmem:[#allocation8 + $0x6ec] sm:$0xf]
    %v3890 = vld [vmem:[#allocation8 + $0x6f0] sm:$0xff]
    %v3891 = vld [vmem:[#allocation8 + $0x6f8] sm:$0xf]
    %v3892 = vld [vmem:[#allocation8 + $0x6fc] sm:$0xff]
    %v3893 = vld [vmem:[#allocation8 + $0x704] sm:$0xf]
    %v3894 = vld [vmem:[#allocation8 + $0x708] sm:$0xff]
    %v3895 = vld [vmem:[#allocation8 + $0x710] sm:$0xf]
    %v3896 = vld [vmem:[#allocation8 + $0x714] sm:$0xff]
    %v3897 = vld [vmem:[#allocation8 + $0x71c] sm:$0xf]
    %v3898 = vld [vmem:[#allocation8 + $0x720] sm:$0xff]
    %v3899 = vld [vmem:[#allocation8 + $0x728] sm:$0xf]
    %v3900 = vld [vmem:[#allocation8 + $0x72c] sm:$0xff]
    %v3901 = vld [vmem:[#allocation8 + $0x734] sm:$0xf]
    %v3902 = vld [vmem:[#allocation8 + $0x738] sm:$0xff]
    %v3903 = vld [vmem:[#allocation8 + $0x740] sm:$0xf]
    %v3904 = vld [vmem:[#allocation8 + $0x744] sm:$0xff]
    %v3905 = vld [vmem:[#allocation8 + $0x74c] sm:$0xf]
    %v3906 = vld [vmem:[#allocation8 + $0x750] sm:$0xff]
    %v3907 = vld [vmem:[#allocation8 + $0x758] sm:$0xf]
    %v3908 = vld [vmem:[#allocation8 + $0x75c] sm:$0xff]
    %v3909 = vld [vmem:[#allocation8 + $0x764] sm:$0xf]
    %v3910 = vld [vmem:[#allocation8 + $0x768] sm:$0xff]
    %v3911 = vld [vmem:[#allocation8 + $0x770] sm:$0xf]
    %v3912 = vld [vmem:[#allocation8 + $0x774] sm:$0xff]
    %v3913 = vld [vmem:[#allocation8 + $0x77c] sm:$0xf]
    %v3914 = vld [vmem:[#allocation8 + $0x780] sm:$0xff]
    %v3915 = vld [vmem:[#allocation8 + $0x788] sm:$0xf]
    %v3916 = vld [vmem:[#allocation8 + $0x78c] sm:$0xff]
    %v3917 = vld [vmem:[#allocation8 + $0x794] sm:$0xf]
    %v3918 = vld [vmem:[#allocation8 + $0x798] sm:$0xff]
    %v3919 = vld [vmem:[#allocation8 + $0x7a0] sm:$0xf]
    %v3920 = vld [vmem:[#allocation8 + $0x7a4] sm:$0xff]
    %v3921 = vld [vmem:[#allocation8 + $0x7ac] sm:$0xf]
    %v3922 = vld [vmem:[#allocation8 + $0x7b0] sm:$0xff]
    %v3923 = vld [vmem:[#allocation8 + $0x7b8] sm:$0xf]
    %v3924 = vld [vmem:[#allocation8 + $0x7bc] sm:$0xff]
    %v3925 = vld [vmem:[#allocation8 + $0x7c4] sm:$0xf]
    %v3926 = vld [vmem:[#allocation8 + $0x7c8] sm:$0xff]
    %v3927 = vld [vmem:[#allocation8 + $0x7d0] sm:$0xf]
    %v3928 = vld [vmem:[#allocation8 + $0x7d4] sm:$0xff]
    %v3929 = vld [vmem:[#allocation8 + $0x7dc] sm:$0xf]
    %v3930 = vld [vmem:[#allocation8 + $0x7e0] sm:$0xff]
    %v3931 = vld [vmem:[#allocation8 + $0x7e8] sm:$0xf]
    %v3932 = vld [vmem:[#allocation8 + $0x7ec] sm:$0xff]
    %v3933 = vld [vmem:[#allocation8 + $0x7f4] sm:$0xf]
    %v3934 = vld [vmem:[#allocation8 + $0x7f8] sm:$0xff]
    %v3935 = vld [vmem:[#allocation8 + $0x800] sm:$0xf]
    %v3936 = vld [vmem:[#allocation8 + $0x804] sm:$0xff]
    %v3937 = vld [vmem:[#allocation8 + $0x80c] sm:$0xf]
    %v3938 = vld [vmem:[#allocation8 + $0x810] sm:$0xff]
    %v3939 = vld [vmem:[#allocation8 + $0x818] sm:$0xf]
    %v3940 = vld [vmem:[#allocation8 + $0x81c] sm:$0xff]
    %v3941 = vld [vmem:[#allocation8 + $0x824] sm:$0xf]
    %v3942 = vld [vmem:[#allocation8 + $0x828] sm:$0xff]
    %v3943 = vld [vmem:[#allocation8 + $0x830] sm:$0xf]
    %v3944 = vld [vmem:[#allocation8 + $0x834] sm:$0xff]
    %v3945 = vld [vmem:[#allocation8 + $0x83c] sm:$0xf]
    %v3946 = vld [vmem:[#allocation8 + $0x840] sm:$0xff]
    %v3947 = vld [vmem:[#allocation8 + $0x848] sm:$0xf]
    %v3948 = vld [vmem:[#allocation8 + $0x84c] sm:$0xff]
    %v3949 = vld [vmem:[#allocation8 + $0x854] sm:$0xf]
    %v3950 = vld [vmem:[#allocation8 + $0x858] sm:$0xff]
    %v3951 = vld [vmem:[#allocation8 + $0x860] sm:$0xf]
    %v3952 = vld [vmem:[#allocation8 + $0x864] sm:$0xff]
    %v3953 = vld [vmem:[#allocation8 + $0x86c] sm:$0xf]
    %v3954 = vld [vmem:[#allocation8 + $0x870] sm:$0xff]
    %v3955 = vld [vmem:[#allocation8 + $0x878] sm:$0xf]
    %v3956 = vld [vmem:[#allocation8 + $0x87c] sm:$0xff]
    %v3957 = vld [vmem:[#allocation8 + $0x884] sm:$0xf]
    %v3958 = vld [vmem:[#allocation8 + $0x888] sm:$0xff]
    %v3959 = vld [vmem:[#allocation8 + $0x890] sm:$0xf]
    %v3960 = vld [vmem:[#allocation8 + $0x894] sm:$0xff]
    %v3961 = vld [vmem:[#allocation8 + $0x89c] sm:$0xf]
    %v3962 = vld [vmem:[#allocation8 + $0x8a0] sm:$0xff]
    %v3963 = vld [vmem:[#allocation8 + $0x8a8] sm:$0xf]
    %v3964 = vld [vmem:[#allocation8 + $0x8ac] sm:$0xff]
    %v3965 = vld [vmem:[#allocation8 + $0x8b4] sm:$0xf]
    %v3966 = vld [vmem:[#allocation8 + $0x8b8] sm:$0xff]
    %v3967 = vld [vmem:[#allocation8 + $0x8c0] sm:$0xf]
    %v3968 = vld [vmem:[#allocation8 + $0x8c4] sm:$0xff]
    %v3969 = vld [vmem:[#allocation8 + $0x8cc] sm:$0xf]
    %v3970 = vld [vmem:[#allocation8 + $0x8d0] sm:$0xff]
    %v3971 = vld [vmem:[#allocation8 + $0x8d8] sm:$0xf]
    %v3972 = vld [vmem:[#allocation8 + $0x8dc] sm:$0xff]
    %v3973 = vld [vmem:[#allocation8 + $0x8e4] sm:$0xf]
    %v3974 = vld [vmem:[#allocation8 + $0x8e8] sm:$0xff]
    %v3975 = vld [vmem:[#allocation8 + $0x8f0] sm:$0xf]
    %v3976 = vld [vmem:[#allocation8 + $0x8f4] sm:$0xff]
    %v3977 = vld [vmem:[#allocation8 + $0x8fc] sm:$0xf]
    %v3978 = vld [vmem:[#allocation10] sm:$0x7]
    %v3980 = vlaneseq
    %v3981 = vshrl.u32 %v3980, 7
    %v3982 = vsub.s32 0, %v3981
    %v3983 = vrot.slane %v3978, %v3982
    %v3984 = vlaneseq
    %v3985 = vshrl.u32 %v3984, 7
    %v3986 = vsub.s32 1, %v3985
    %v3987 = vrot.slane %v3978, %v3986
    %v3988 = vlaneseq
    %v3989 = vshrl.u32 %v3988, 7
    %v3990 = vsub.s32 2, %v3989
    %v3991 = vrot.slane %v3978, %v3990
    %v4379 = vunpack.c.l.b16 %v3594
    %v4380 = vunpack.c.h.b16 %v3594
    %v4381 = vunpack.c.l.b16 %v3595
    %v4382 = vunpack.c.l.b16 %v3596
    %v4383 = vunpack.c.h.b16 %v3596
    %v4384 = vunpack.c.l.b16 %v3597
    %v4385 = vunpack.c.l.b16 %v3598
    %v4386 = vunpack.c.h.b16 %v3598
    %v4387 = vunpack.c.l.b16 %v3599
    %v4388 = vunpack.c.l.b16 %v3600
    %v4389 = vunpack.c.h.b16 %v3600
    %v4390 = vunpack.c.l.b16 %v3601
    %v4391 = vunpack.c.l.b16 %v3602
    %v4392 = vunpack.c.h.b16 %v3602
    %v4393 = vunpack.c.l.b16 %v3603
    %v4394 = vunpack.c.l.b16 %v3604
    %v4395 = vunpack.c.h.b16 %v3604
    %v4396 = vunpack.c.l.b16 %v3605
    %v4397 = vunpack.c.l.b16 %v3606
    %v4398 = vunpack.c.h.b16 %v3606
    %v4399 = vunpack.c.l.b16 %v3607
    %v4400 = vunpack.c.l.b16 %v3608
    %v4401 = vunpack.c.h.b16 %v3608
    %v4402 = vunpack.c.l.b16 %v3609
    %v4403 = vunpack.c.l.b16 %v3610
    %v4404 = vunpack.c.h.b16 %v3610
    %v4405 = vunpack.c.l.b16 %v3611
    %v4406 = vunpack.c.l.b16 %v3612
    %v4407 = vunpack.c.h.b16 %v3612
    %v4408 = vunpack.c.l.b16 %v3613
    %v4409 = vunpack.c.l.b16 %v3614
    %v4410 = vunpack.c.h.b16 %v3614
    %v4411 = vunpack.c.l.b16 %v3615
    %v4412 = vunpack.c.l.b16 %v3616
    %v4413 = vunpack.c.h.b16 %v3616
    %v4414 = vunpack.c.l.b16 %v3617
    %v4415 = vunpack.c.l.b16 %v3618
    %v4416 = vunpack.c.h.b16 %v3618
    %v4417 = vunpack.c.l.b16 %v3619
    %v4418 = vunpack.c.l.b16 %v3620
    %v4419 = vunpack.c.h.b16 %v3620
    %v4420 = vunpack.c.l.b16 %v3621
    %v4421 = vunpack.c.l.b16 %v3622
    %v4422 = vunpack.c.h.b16 %v3622
    %v4423 = vunpack.c.l.b16 %v3623
    %v4424 = vunpack.c.l.b16 %v3624
    %v4425 = vunpack.c.h.b16 %v3624
    %v4426 = vunpack.c.l.b16 %v3625
    %v4427 = vunpack.c.l.b16 %v3626
    %v4428 = vunpack.c.h.b16 %v3626
    %v4429 = vunpack.c.l.b16 %v3627
    %v4430 = vunpack.c.l.b16 %v3628
    %v4431 = vunpack.c.h.b16 %v3628
    %v4432 = vunpack.c.l.b16 %v3629
    %v4433 = vunpack.c.l.b16 %v3630
    %v4434 = vunpack.c.h.b16 %v3630
    %v4435 = vunpack.c.l.b16 %v3631
    %v4436 = vunpack.c.l.b16 %v3632
    %v4437 = vunpack.c.h.b16 %v3632
    %v4438 = vunpack.c.l.b16 %v3633
    %v4439 = vunpack.c.l.b16 %v3634
    %v4440 = vunpack.c.h.b16 %v3634
    %v4441 = vunpack.c.l.b16 %v3635
    %v4442 = vunpack.c.l.b16 %v3636
    %v4443 = vunpack.c.h.b16 %v3636
    %v4444 = vunpack.c.l.b16 %v3637
    %v4445 = vunpack.c.l.b16 %v3638
    %v4446 = vunpack.c.h.b16 %v3638
    %v4447 = vunpack.c.l.b16 %v3639
    %v4448 = vunpack.c.l.b16 %v3640
    %v4449 = vunpack.c.h.b16 %v3640
    %v4450 = vunpack.c.l.b16 %v3641
    %v4451 = vunpack.c.l.b16 %v3642
    %v4452 = vunpack.c.h.b16 %v3642
    %v4453 = vunpack.c.l.b16 %v3643
    %v4454 = vunpack.c.l.b16 %v3644
    %v4455 = vunpack.c.h.b16 %v3644
    %v4456 = vunpack.c.l.b16 %v3645
    %v4457 = vunpack.c.l.b16 %v3646
    %v4458 = vunpack.c.h.b16 %v3646
    %v4459 = vunpack.c.l.b16 %v3647
    %v4460 = vunpack.c.l.b16 %v3648
    %v4461 = vunpack.c.h.b16 %v3648
    %v4462 = vunpack.c.l.b16 %v3649
    %v4463 = vunpack.c.l.b16 %v3650
    %v4464 = vunpack.c.h.b16 %v3650
    %v4465 = vunpack.c.l.b16 %v3651
    %v4466 = vunpack.c.l.b16 %v3652
    %v4467 = vunpack.c.h.b16 %v3652
    %v4468 = vunpack.c.l.b16 %v3653
    %v4469 = vunpack.c.l.b16 %v3654
    %v4470 = vunpack.c.h.b16 %v3654
    %v4471 = vunpack.c.l.b16 %v3655
    %v4472 = vunpack.c.l.b16 %v3656
    %v4473 = vunpack.c.h.b16 %v3656
    %v4474 = vunpack.c.l.b16 %v3657
    %v4475 = vunpack.c.l.b16 %v3658
    %v4476 = vunpack.c.h.b16 %v3658
    %v4477 = vunpack.c.l.b16 %v3659
    %v4478 = vunpack.c.l.b16 %v3660
    %v4479 = vunpack.c.h.b16 %v3660
    %v4480 = vunpack.c.l.b16 %v3661
    %v4481 = vunpack.c.l.b16 %v3662
    %v4482 = vunpack.c.h.b16 %v3662
    %v4483 = vunpack.c.l.b16 %v3663
    %v4484 = vunpack.c.l.b16 %v3664
    %v4485 = vunpack.c.h.b16 %v3664
    %v4486 = vunpack.c.l.b16 %v3665
    %v4487 = vunpack.c.l.b16 %v3666
    %v4488 = vunpack.c.h.b16 %v3666
    %v4489 = vunpack.c.l.b16 %v3667
    %v4490 = vunpack.c.l.b16 %v3668
    %v4491 = vunpack.c.h.b16 %v3668
    %v4492 = vunpack.c.l.b16 %v3669
    %v4493 = vunpack.c.l.b16 %v3670
    %v4494 = vunpack.c.h.b16 %v3670
    %v4495 = vunpack.c.l.b16 %v3671
    %v4496 = vunpack.c.l.b16 %v3672
    %v4497 = vunpack.c.h.b16 %v3672
    %v4498 = vunpack.c.l.b16 %v3673
    %v4499 = vunpack.c.l.b16 %v3674
    %v4500 = vunpack.c.h.b16 %v3674
    %v4501 = vunpack.c.l.b16 %v3675
    %v4502 = vunpack.c.l.b16 %v3676
    %v4503 = vunpack.c.h.b16 %v3676
    %v4504 = vunpack.c.l.b16 %v3677
    %v4505 = vunpack.c.l.b16 %v3678
    %v4506 = vunpack.c.h.b16 %v3678
    %v4507 = vunpack.c.l.b16 %v3679
    %v4508 = vunpack.c.l.b16 %v3680
    %v4509 = vunpack.c.h.b16 %v3680
    %v4510 = vunpack.c.l.b16 %v3681
    %v4511 = vunpack.c.l.b16 %v3682
    %v4512 = vunpack.c.h.b16 %v3682
    %v4513 = vunpack.c.l.b16 %v3683
    %v4514 = vunpack.c.l.b16 %v3684
    %v4515 = vunpack.c.h.b16 %v3684
    %v4516 = vunpack.c.l.b16 %v3685
    %v4517 = vunpack.c.l.b16 %v3686
    %v4518 = vunpack.c.h.b16 %v3686
    %v4519 = vunpack.c.l.b16 %v3687
    %v4520 = vunpack.c.l.b16 %v3688
    %v4521 = vunpack.c.h.b16 %v3688
    %v4522 = vunpack.c.l.b16 %v3689
    %v4523 = vunpack.c.l.b16 %v3690
    %v4524 = vunpack.c.h.b16 %v3690
    %v4525 = vunpack.c.l.b16 %v3691
    %v4526 = vunpack.c.l.b16 %v3692
    %v4527 = vunpack.c.h.b16 %v3692
    %v4528 = vunpack.c.l.b16 %v3693
    %v4529 = vunpack.c.l.b16 %v3694
    %v4530 = vunpack.c.h.b16 %v3694
    %v4531 = vunpack.c.l.b16 %v3695
    %v4532 = vunpack.c.l.b16 %v3696
    %v4533 = vunpack.c.h.b16 %v3696
    %v4534 = vunpack.c.l.b16 %v3697
    %v4535 = vunpack.c.l.b16 %v3698
    %v4536 = vunpack.c.h.b16 %v3698
    %v4537 = vunpack.c.l.b16 %v3699
    %v4538 = vunpack.c.l.b16 %v3700
    %v4539 = vunpack.c.h.b16 %v3700
    %v4540 = vunpack.c.l.b16 %v3701
    %v4541 = vunpack.c.l.b16 %v3702
    %v4542 = vunpack.c.h.b16 %v3702
    %v4543 = vunpack.c.l.b16 %v3703
    %v4544 = vunpack.c.l.b16 %v3704
    %v4545 = vunpack.c.h.b16 %v3704
    %v4546 = vunpack.c.l.b16 %v3705
    %v4547 = vunpack.c.l.b16 %v3706
    %v4548 = vunpack.c.h.b16 %v3706
    %v4549 = vunpack.c.l.b16 %v3707
    %v4550 = vunpack.c.l.b16 %v3708
    %v4551 = vunpack.c.h.b16 %v3708
    %v4552 = vunpack.c.l.b16 %v3709
    %v4553 = vunpack.c.l.b16 %v3710
    %v4554 = vunpack.c.h.b16 %v3710
    %v4555 = vunpack.c.l.b16 %v3711
    %v4556 = vunpack.c.l.b16 %v3712
    %v4557 = vunpack.c.h.b16 %v3712
    %v4558 = vunpack.c.l.b16 %v3713
    %v4559 = vunpack.c.l.b16 %v3714
    %v4560 = vunpack.c.h.b16 %v3714
    %v4561 = vunpack.c.l.b16 %v3715
    %v4562 = vunpack.c.l.b16 %v3716
    %v4563 = vunpack.c.h.b16 %v3716
    %v4564 = vunpack.c.l.b16 %v3717
    %v4565 = vunpack.c.l.b16 %v3718
    %v4566 = vunpack.c.h.b16 %v3718
    %v4567 = vunpack.c.l.b16 %v3719
    %v4568 = vunpack.c.l.b16 %v3720
    %v4569 = vunpack.c.h.b16 %v3720
    %v4570 = vunpack.c.l.b16 %v3721
    %v4571 = vunpack.c.l.b16 %v3722
    %v4572 = vunpack.c.h.b16 %v3722
    %v4573 = vunpack.c.l.b16 %v3723
    %v4574 = vunpack.c.l.b16 %v3724
    %v4575 = vunpack.c.h.b16 %v3724
    %v4576 = vunpack.c.l.b16 %v3725
    %v4577 = vunpack.c.l.b16 %v3726
    %v4578 = vunpack.c.h.b16 %v3726
    %v4579 = vunpack.c.l.b16 %v3727
    %v4580 = vunpack.c.l.b16 %v3728
    %v4581 = vunpack.c.h.b16 %v3728
    %v4582 = vunpack.c.l.b16 %v3729
    %v4583 = vunpack.c.l.b16 %v3730
    %v4584 = vunpack.c.h.b16 %v3730
    %v4585 = vunpack.c.l.b16 %v3731
    %v4586 = vunpack.c.l.b16 %v3732
    %v4587 = vunpack.c.h.b16 %v3732
    %v4588 = vunpack.c.l.b16 %v3733
    %v4589 = vunpack.c.l.b16 %v3734
    %v4590 = vunpack.c.h.b16 %v3734
    %v4591 = vunpack.c.l.b16 %v3735
    %v4592 = vunpack.c.l.b16 %v3736
    %v4593 = vunpack.c.h.b16 %v3736
    %v4594 = vunpack.c.l.b16 %v3737
    %v4595 = vunpack.c.l.b16 %v3738
    %v4596 = vunpack.c.h.b16 %v3738
    %v4597 = vunpack.c.l.b16 %v3739
    %v4598 = vunpack.c.l.b16 %v3740
    %v4599 = vunpack.c.h.b16 %v3740
    %v4600 = vunpack.c.l.b16 %v3741
    %v4601 = vunpack.c.l.b16 %v3742
    %v4602 = vunpack.c.h.b16 %v3742
    %v4603 = vunpack.c.l.b16 %v3743
    %v4604 = vunpack.c.l.b16 %v3744
    %v4605 = vunpack.c.h.b16 %v3744
    %v4606 = vunpack.c.l.b16 %v3745
    %v4607 = vunpack.c.l.b16 %v3746
    %v4608 = vunpack.c.h.b16 %v3746
    %v4609 = vunpack.c.l.b16 %v3747
    %v4610 = vunpack.c.l.b16 %v3748
    %v4611 = vunpack.c.h.b16 %v3748
    %v4612 = vunpack.c.l.b16 %v3749
    %v4613 = vunpack.c.l.b16 %v3750
    %v4614 = vunpack.c.h.b16 %v3750
    %v4615 = vunpack.c.l.b16 %v3751
    %v4616 = vunpack.c.l.b16 %v3752
    %v4617 = vunpack.c.h.b16 %v3752
    %v4618 = vunpack.c.l.b16 %v3753
    %v4619 = vunpack.c.l.b16 %v3754
    %v4620 = vunpack.c.h.b16 %v3754
    %v4621 = vunpack.c.l.b16 %v3755
    %v4622 = vunpack.c.l.b16 %v3756
    %v4623 = vunpack.c.h.b16 %v3756
    %v4624 = vunpack.c.l.b16 %v3757
    %v4625 = vunpack.c.l.b16 %v3758
    %v4626 = vunpack.c.h.b16 %v3758
    %v4627 = vunpack.c.l.b16 %v3759
    %v4628 = vunpack.c.l.b16 %v3760
    %v4629 = vunpack.c.h.b16 %v3760
    %v4630 = vunpack.c.l.b16 %v3761
    %v4631 = vunpack.c.l.b16 %v3762
    %v4632 = vunpack.c.h.b16 %v3762
    %v4633 = vunpack.c.l.b16 %v3763
    %v4634 = vunpack.c.l.b16 %v3764
    %v4635 = vunpack.c.h.b16 %v3764
    %v4636 = vunpack.c.l.b16 %v3765
    %v4637 = vunpack.c.l.b16 %v3766
    %v4638 = vunpack.c.h.b16 %v3766
    %v4639 = vunpack.c.l.b16 %v3767
    %v4640 = vunpack.c.l.b16 %v3768
    %v4641 = vunpack.c.h.b16 %v3768
    %v4642 = vunpack.c.l.b16 %v3769
    %v4643 = vunpack.c.l.b16 %v3770
    %v4644 = vunpack.c.h.b16 %v3770
    %v4645 = vunpack.c.l.b16 %v3771
    %v4646 = vunpack.c.l.b16 %v3772
    %v4647 = vunpack.c.h.b16 %v3772
    %v4648 = vunpack.c.l.b16 %v3773
    %v4649 = vunpack.c.l.b16 %v3774
    %v4650 = vunpack.c.h.b16 %v3774
    %v4651 = vunpack.c.l.b16 %v3775
    %v4652 = vunpack.c.l.b16 %v3776
    %v4653 = vunpack.c.h.b16 %v3776
    %v4654 = vunpack.c.l.b16 %v3777
    %v4655 = vunpack.c.l.b16 %v3778
    %v4656 = vunpack.c.h.b16 %v3778
    %v4657 = vunpack.c.l.b16 %v3779
    %v4658 = vunpack.c.l.b16 %v3780
    %v4659 = vunpack.c.h.b16 %v3780
    %v4660 = vunpack.c.l.b16 %v3781
    %v4661 = vunpack.c.l.b16 %v3782
    %v4662 = vunpack.c.h.b16 %v3782
    %v4663 = vunpack.c.l.b16 %v3783
    %v4664 = vunpack.c.l.b16 %v3784
    %v4665 = vunpack.c.h.b16 %v3784
    %v4666 = vunpack.c.l.b16 %v3785
    %v4667 = vunpack.c.l.b16 %v3786
    %v4668 = vunpack.c.h.b16 %v3786
    %v4669 = vunpack.c.l.b16 %v3787
    %v4670 = vunpack.c.l.b16 %v3788
    %v4671 = vunpack.c.h.b16 %v3788
    %v4672 = vunpack.c.l.b16 %v3789
    %v4673 = vunpack.c.l.b16 %v3790
    %v4674 = vunpack.c.h.b16 %v3790
    %v4675 = vunpack.c.l.b16 %v3791
    %v4676 = vunpack.c.l.b16 %v3792
    %v4677 = vunpack.c.h.b16 %v3792
    %v4678 = vunpack.c.l.b16 %v3793
    %v4679 = vunpack.c.l.b16 %v3794
    %v4680 = vunpack.c.h.b16 %v3794
    %v4681 = vunpack.c.l.b16 %v3795
    %v4682 = vunpack.c.l.b16 %v3796
    %v4683 = vunpack.c.h.b16 %v3796
    %v4684 = vunpack.c.l.b16 %v3797
    %v4685 = vunpack.c.l.b16 %v3798
    %v4686 = vunpack.c.h.b16 %v3798
    %v4687 = vunpack.c.l.b16 %v3799
    %v4688 = vunpack.c.l.b16 %v3800
    %v4689 = vunpack.c.h.b16 %v3800
    %v4690 = vunpack.c.l.b16 %v3801
    %v4691 = vunpack.c.l.b16 %v3802
    %v4692 = vunpack.c.h.b16 %v3802
    %v4693 = vunpack.c.l.b16 %v3803
    %v4694 = vunpack.c.l.b16 %v3804
    %v4695 = vunpack.c.h.b16 %v3804
    %v4696 = vunpack.c.l.b16 %v3805
    %v4697 = vunpack.c.l.b16 %v3806
    %v4698 = vunpack.c.h.b16 %v3806
    %v4699 = vunpack.c.l.b16 %v3807
    %v4700 = vunpack.c.l.b16 %v3808
    %v4701 = vunpack.c.h.b16 %v3808
    %v4702 = vunpack.c.l.b16 %v3809
    %v4703 = vunpack.c.l.b16 %v3810
    %v4704 = vunpack.c.h.b16 %v3810
    %v4705 = vunpack.c.l.b16 %v3811
    %v4706 = vunpack.c.l.b16 %v3812
    %v4707 = vunpack.c.h.b16 %v3812
    %v4708 = vunpack.c.l.b16 %v3813
    %v4709 = vunpack.c.l.b16 %v3814
    %v4710 = vunpack.c.h.b16 %v3814
    %v4711 = vunpack.c.l.b16 %v3815
    %v4712 = vunpack.c.l.b16 %v3816
    %v4713 = vunpack.c.h.b16 %v3816
    %v4714 = vunpack.c.l.b16 %v3817
    %v4715 = vunpack.c.l.b16 %v3818
    %v4716 = vunpack.c.h.b16 %v3818
    %v4717 = vunpack.c.l.b16 %v3819
    %v4718 = vunpack.c.l.b16 %v3820
    %v4719 = vunpack.c.h.b16 %v3820
    %v4720 = vunpack.c.l.b16 %v3821
    %v4721 = vunpack.c.l.b16 %v3822
    %v4722 = vunpack.c.h.b16 %v3822
    %v4723 = vunpack.c.l.b16 %v3823
    %v4724 = vunpack.c.l.b16 %v3824
    %v4725 = vunpack.c.h.b16 %v3824
    %v4726 = vunpack.c.l.b16 %v3825
    %v4727 = vunpack.c.l.b16 %v3826
    %v4728 = vunpack.c.h.b16 %v3826
    %v4729 = vunpack.c.l.b16 %v3827
    %v4730 = vunpack.c.l.b16 %v3828
    %v4731 = vunpack.c.h.b16 %v3828
    %v4732 = vunpack.c.l.b16 %v3829
    %v4733 = vunpack.c.l.b16 %v3830
    %v4734 = vunpack.c.h.b16 %v3830
    %v4735 = vunpack.c.l.b16 %v3831
    %v4736 = vunpack.c.l.b16 %v3832
    %v4737 = vunpack.c.h.b16 %v3832
    %v4738 = vunpack.c.l.b16 %v3833
    %v4739 = vunpack.c.l.b16 %v3834
    %v4740 = vunpack.c.h.b16 %v3834
    %v4741 = vunpack.c.l.b16 %v3835
    %v4742 = vunpack.c.l.b16 %v3836
    %v4743 = vunpack.c.h.b16 %v3836
    %v4744 = vunpack.c.l.b16 %v3837
    %v4745 = vunpack.c.l.b16 %v3838
    %v4746 = vunpack.c.h.b16 %v3838
    %v4747 = vunpack.c.l.b16 %v3839
    %v4748 = vunpack.c.l.b16 %v3840
    %v4749 = vunpack.c.h.b16 %v3840
    %v4750 = vunpack.c.l.b16 %v3841
    %v4751 = vunpack.c.l.b16 %v3842
    %v4752 = vunpack.c.h.b16 %v3842
    %v4753 = vunpack.c.l.b16 %v3843
    %v4754 = vunpack.c.l.b16 %v3844
    %v4755 = vunpack.c.h.b16 %v3844
    %v4756 = vunpack.c.l.b16 %v3845
    %v4757 = vunpack.c.l.b16 %v3846
    %v4758 = vunpack.c.h.b16 %v3846
    %v4759 = vunpack.c.l.b16 %v3847
    %v4760 = vunpack.c.l.b16 %v3848
    %v4761 = vunpack.c.h.b16 %v3848
    %v4762 = vunpack.c.l.b16 %v3849
    %v4763 = vunpack.c.l.b16 %v3850
    %v4764 = vunpack.c.h.b16 %v3850
    %v4765 = vunpack.c.l.b16 %v3851
    %v4766 = vunpack.c.l.b16 %v3852
    %v4767 = vunpack.c.h.b16 %v3852
    %v4768 = vunpack.c.l.b16 %v3853
    %v4769 = vunpack.c.l.b16 %v3854
    %v4770 = vunpack.c.h.b16 %v3854
    %v4771 = vunpack.c.l.b16 %v3855
    %v4772 = vunpack.c.l.b16 %v3856
    %v4773 = vunpack.c.h.b16 %v3856
    %v4774 = vunpack.c.l.b16 %v3857
    %v4775 = vunpack.c.l.b16 %v3858
    %v4776 = vunpack.c.h.b16 %v3858
    %v4777 = vunpack.c.l.b16 %v3859
    %v4778 = vunpack.c.l.b16 %v3860
    %v4779 = vunpack.c.h.b16 %v3860
    %v4780 = vunpack.c.l.b16 %v3861
    %v4781 = vunpack.c.l.b16 %v3862
    %v4782 = vunpack.c.h.b16 %v3862
    %v4783 = vunpack.c.l.b16 %v3863
    %v4784 = vunpack.c.l.b16 %v3864
    %v4785 = vunpack.c.h.b16 %v3864
    %v4786 = vunpack.c.l.b16 %v3865
    %v4787 = vunpack.c.l.b16 %v3866
    %v4788 = vunpack.c.h.b16 %v3866
    %v4789 = vunpack.c.l.b16 %v3867
    %v4790 = vunpack.c.l.b16 %v3868
    %v4791 = vunpack.c.h.b16 %v3868
    %v4792 = vunpack.c.l.b16 %v3869
    %v4793 = vunpack.c.l.b16 %v3870
    %v4794 = vunpack.c.h.b16 %v3870
    %v4795 = vunpack.c.l.b16 %v3871
    %v4796 = vunpack.c.l.b16 %v3872
    %v4797 = vunpack.c.h.b16 %v3872
    %v4798 = vunpack.c.l.b16 %v3873
    %v4799 = vunpack.c.l.b16 %v3874
    %v4800 = vunpack.c.h.b16 %v3874
    %v4801 = vunpack.c.l.b16 %v3875
    %v4802 = vunpack.c.l.b16 %v3876
    %v4803 = vunpack.c.h.b16 %v3876
    %v4804 = vunpack.c.l.b16 %v3877
    %v4805 = vunpack.c.l.b16 %v3878
    %v4806 = vunpack.c.h.b16 %v3878
    %v4807 = vunpack.c.l.b16 %v3879
    %v4808 = vunpack.c.l.b16 %v3880
    %v4809 = vunpack.c.h.b16 %v3880
    %v4810 = vunpack.c.l.b16 %v3881
    %v4811 = vunpack.c.l.b16 %v3882
    %v4812 = vunpack.c.h.b16 %v3882
    %v4813 = vunpack.c.l.b16 %v3883
    %v4814 = vunpack.c.l.b16 %v3884
    %v4815 = vunpack.c.h.b16 %v3884
    %v4816 = vunpack.c.l.b16 %v3885
    %v4817 = vunpack.c.l.b16 %v3886
    %v4818 = vunpack.c.h.b16 %v3886
    %v4819 = vunpack.c.l.b16 %v3887
    %v4820 = vunpack.c.l.b16 %v3888
    %v4821 = vunpack.c.h.b16 %v3888
    %v4822 = vunpack.c.l.b16 %v3889
    %v4823 = vunpack.c.l.b16 %v3890
    %v4824 = vunpack.c.h.b16 %v3890
    %v4825 = vunpack.c.l.b16 %v3891
    %v4826 = vunpack.c.l.b16 %v3892
    %v4827 = vunpack.c.h.b16 %v3892
    %v4828 = vunpack.c.l.b16 %v3893
    %v4829 = vunpack.c.l.b16 %v3894
    %v4830 = vunpack.c.h.b16 %v3894
    %v4831 = vunpack.c.l.b16 %v3895
    %v4832 = vunpack.c.l.b16 %v3896
    %v4833 = vunpack.c.h.b16 %v3896
    %v4834 = vunpack.c.l.b16 %v3897
    %v4835 = vunpack.c.l.b16 %v3898
    %v4836 = vunpack.c.h.b16 %v3898
    %v4837 = vunpack.c.l.b16 %v3899
    %v4838 = vunpack.c.l.b16 %v3900
    %v4839 = vunpack.c.h.b16 %v3900
    %v4840 = vunpack.c.l.b16 %v3901
    %v4841 = vunpack.c.l.b16 %v3902
    %v4842 = vunpack.c.h.b16 %v3902
    %v4843 = vunpack.c.l.b16 %v3903
    %v4844 = vunpack.c.l.b16 %v3904
    %v4845 = vunpack.c.h.b16 %v3904
    %v4846 = vunpack.c.l.b16 %v3905
    %v4847 = vunpack.c.l.b16 %v3906
    %v4848 = vunpack.c.h.b16 %v3906
    %v4849 = vunpack.c.l.b16 %v3907
    %v4850 = vunpack.c.l.b16 %v3908
    %v4851 = vunpack.c.h.b16 %v3908
    %v4852 = vunpack.c.l.b16 %v3909
    %v4853 = vunpack.c.l.b16 %v3910
    %v4854 = vunpack.c.h.b16 %v3910
    %v4855 = vunpack.c.l.b16 %v3911
    %v4856 = vunpack.c.l.b16 %v3912
    %v4857 = vunpack.c.h.b16 %v3912
    %v4858 = vunpack.c.l.b16 %v3913
    %v4859 = vunpack.c.l.b16 %v3914
    %v4860 = vunpack.c.h.b16 %v3914
    %v4861 = vunpack.c.l.b16 %v3915
    %v4862 = vunpack.c.l.b16 %v3916
    %v4863 = vunpack.c.h.b16 %v3916
    %v4864 = vunpack.c.l.b16 %v3917
    %v4865 = vunpack.c.l.b16 %v3918
    %v4866 = vunpack.c.h.b16 %v3918
    %v4867 = vunpack.c.l.b16 %v3919
    %v4868 = vunpack.c.l.b16 %v3920
    %v4869 = vunpack.c.h.b16 %v3920
    %v4870 = vunpack.c.l.b16 %v3921
    %v4871 = vunpack.c.l.b16 %v3922
    %v4872 = vunpack.c.h.b16 %v3922
    %v4873 = vunpack.c.l.b16 %v3923
    %v4874 = vunpack.c.l.b16 %v3924
    %v4875 = vunpack.c.h.b16 %v3924
    %v4876 = vunpack.c.l.b16 %v3925
    %v4877 = vunpack.c.l.b16 %v3926
    %v4878 = vunpack.c.h.b16 %v3926
    %v4879 = vunpack.c.l.b16 %v3927
    %v4880 = vunpack.c.l.b16 %v3928
    %v4881 = vunpack.c.h.b16 %v3928
    %v4882 = vunpack.c.l.b16 %v3929
    %v4883 = vunpack.c.l.b16 %v3930
    %v4884 = vunpack.c.h.b16 %v3930
    %v4885 = vunpack.c.l.b16 %v3931
    %v4886 = vunpack.c.l.b16 %v3932
    %v4887 = vunpack.c.h.b16 %v3932
    %v4888 = vunpack.c.l.b16 %v3933
    %v4889 = vunpack.c.l.b16 %v3934
    %v4890 = vunpack.c.h.b16 %v3934
    %v4891 = vunpack.c.l.b16 %v3935
    %v4892 = vunpack.c.l.b16 %v3936
    %v4893 = vunpack.c.h.b16 %v3936
    %v4894 = vunpack.c.l.b16 %v3937
    %v4895 = vunpack.c.l.b16 %v3938
    %v4896 = vunpack.c.h.b16 %v3938
    %v4897 = vunpack.c.l.b16 %v3939
    %v4898 = vunpack.c.l.b16 %v3940
    %v4899 = vunpack.c.h.b16 %v3940
    %v4900 = vunpack.c.l.b16 %v3941
    %v4901 = vunpack.c.l.b16 %v3942
    %v4902 = vunpack.c.h.b16 %v3942
    %v4903 = vunpack.c.l.b16 %v3943
    %v4904 = vunpack.c.l.b16 %v3944
    %v4905 = vunpack.c.h.b16 %v3944
    %v4906 = vunpack.c.l.b16 %v3945
    %v4907 = vunpack.c.l.b16 %v3946
    %v4908 = vunpack.c.h.b16 %v3946
    %v4909 = vunpack.c.l.b16 %v3947
    %v4910 = vunpack.c.l.b16 %v3948
    %v4911 = vunpack.c.h.b16 %v3948
    %v4912 = vunpack.c.l.b16 %v3949
    %v4913 = vunpack.c.l.b16 %v3950
    %v4914 = vunpack.c.h.b16 %v3950
    %v4915 = vunpack.c.l.b16 %v3951
    %v4916 = vunpack.c.l.b16 %v3952
    %v4917 = vunpack.c.h.b16 %v3952
    %v4918 = vunpack.c.l.b16 %v3953
    %v4919 = vunpack.c.l.b16 %v3954
    %v4920 = vunpack.c.h.b16 %v3954
    %v4921 = vunpack.c.l.b16 %v3955
    %v4922 = vunpack.c.l.b16 %v3956
    %v4923 = vunpack.c.h.b16 %v3956
    %v4924 = vunpack.c.l.b16 %v3957
    %v4925 = vunpack.c.l.b16 %v3958
    %v4926 = vunpack.c.h.b16 %v3958
    %v4927 = vunpack.c.l.b16 %v3959
    %v4928 = vunpack.c.l.b16 %v3960
    %v4929 = vunpack.c.h.b16 %v3960
    %v4930 = vunpack.c.l.b16 %v3961
    %v4931 = vunpack.c.l.b16 %v3962
    %v4932 = vunpack.c.h.b16 %v3962
    %v4933 = vunpack.c.l.b16 %v3963
    %v4934 = vunpack.c.l.b16 %v3964
    %v4935 = vunpack.c.h.b16 %v3964
    %v4936 = vunpack.c.l.b16 %v3965
    %v4937 = vunpack.c.l.b16 %v3966
    %v4938 = vunpack.c.h.b16 %v3966
    %v4939 = vunpack.c.l.b16 %v3967
    %v4940 = vunpack.c.l.b16 %v3968
    %v4941 = vunpack.c.h.b16 %v3968
    %v4942 = vunpack.c.l.b16 %v3969
    %v4943 = vunpack.c.l.b16 %v3970
    %v4944 = vunpack.c.h.b16 %v3970
    %v4945 = vunpack.c.l.b16 %v3971
    %v4946 = vunpack.c.l.b16 %v3972
    %v4947 = vunpack.c.h.b16 %v3972
    %v4948 = vunpack.c.l.b16 %v3973
    %v4949 = vunpack.c.l.b16 %v3974
    %v4950 = vunpack.c.h.b16 %v3974
    %v4951 = vunpack.c.l.b16 %v3975
    %v4952 = vunpack.c.l.b16 %v3976
    %v4953 = vunpack.c.h.b16 %v3976
    %v4954 = vunpack.c.l.b16 %v3977
    %v4955 = vpack.c.b16 %v4382, %v4379
    %v4956 = vpack.c.b16 %v4383, %v4380
    %v4957 = vpack.c.b16 %v4384, %v4381
    %v4958 = vpack.c.b16 %v4388, %v4385
    %v4959 = vpack.c.b16 %v4389, %v4386
    %v4960 = vpack.c.b16 %v4390, %v4387
    %v4961 = vpack.c.b16 %v4394, %v4391
    %v4962 = vpack.c.b16 %v4395, %v4392
    %v4963 = vpack.c.b16 %v4396, %v4393
    %v4964 = vpack.c.b16 %v4400, %v4397
    %v4965 = vpack.c.b16 %v4401, %v4398
    %v4966 = vpack.c.b16 %v4402, %v4399
    %v4967 = vpack.c.b16 %v4406, %v4403
    %v4968 = vpack.c.b16 %v4407, %v4404
    %v4969 = vpack.c.b16 %v4408, %v4405
    %v4970 = vpack.c.b16 %v4412, %v4409
    %v4971 = vpack.c.b16 %v4413, %v4410
    %v4972 = vpack.c.b16 %v4414, %v4411
    %v4973 = vpack.c.b16 %v4418, %v4415
    %v4974 = vpack.c.b16 %v4419, %v4416
    %v4975 = vpack.c.b16 %v4420, %v4417
    %v4976 = vpack.c.b16 %v4424, %v4421
    %v4977 = vpack.c.b16 %v4425, %v4422
    %v4978 = vpack.c.b16 %v4426, %v4423
    %v4979 = vpack.c.b16 %v4430, %v4427
    %v4980 = vpack.c.b16 %v4431, %v4428
    %v4981 = vpack.c.b16 %v4432, %v4429
    %v4982 = vpack.c.b16 %v4436, %v4433
    %v4983 = vpack.c.b16 %v4437, %v4434
    %v4984 = vpack.c.b16 %v4438, %v4435
    %v4985 = vpack.c.b16 %v4442, %v4439
    %v4986 = vpack.c.b16 %v4443, %v4440
    %v4987 = vpack.c.b16 %v4444, %v4441
    %v4988 = vpack.c.b16 %v4448, %v4445
    %v4989 = vpack.c.b16 %v4449, %v4446
    %v4990 = vpack.c.b16 %v4450, %v4447
    %v4991 = vpack.c.b16 %v4454, %v4451
    %v4992 = vpack.c.b16 %v4455, %v4452
    %v4993 = vpack.c.b16 %v4456, %v4453
    %v4994 = vpack.c.b16 %v4460, %v4457
    %v4995 = vpack.c.b16 %v4461, %v4458
    %v4996 = vpack.c.b16 %v4462, %v4459
    %v4997 = vpack.c.b16 %v4466, %v4463
    %v4998 = vpack.c.b16 %v4467, %v4464
    %v4999 = vpack.c.b16 %v4468, %v4465
    %v5000 = vpack.c.b16 %v4472, %v4469
    %v5001 = vpack.c.b16 %v4473, %v4470
    %v5002 = vpack.c.b16 %v4474, %v4471
    %v5003 = vpack.c.b16 %v4478, %v4475
    %v5004 = vpack.c.b16 %v4479, %v4476
    %v5005 = vpack.c.b16 %v4480, %v4477
    %v5006 = vpack.c.b16 %v4484, %v4481
    %v5007 = vpack.c.b16 %v4485, %v4482
    %v5008 = vpack.c.b16 %v4486, %v4483
    %v5009 = vpack.c.b16 %v4490, %v4487
    %v5010 = vpack.c.b16 %v4491, %v4488
    %v5011 = vpack.c.b16 %v4492, %v4489
    %v5012 = vpack.c.b16 %v4496, %v4493
    %v5013 = vpack.c.b16 %v4497, %v4494
    %v5014 = vpack.c.b16 %v4498, %v4495
    %v5015 = vpack.c.b16 %v4502, %v4499
    %v5016 = vpack.c.b16 %v4503, %v4500
    %v5017 = vpack.c.b16 %v4504, %v4501
    %v5018 = vpack.c.b16 %v4508, %v4505
    %v5019 = vpack.c.b16 %v4509, %v4506
    %v5020 = vpack.c.b16 %v4510, %v4507
    %v5021 = vpack.c.b16 %v4514, %v4511
    %v5022 = vpack.c.b16 %v4515, %v4512
    %v5023 = vpack.c.b16 %v4516, %v4513
    %v5024 = vpack.c.b16 %v4520, %v4517
    %v5025 = vpack.c.b16 %v4521, %v4518
    %v5026 = vpack.c.b16 %v4522, %v4519
    %v5027 = vpack.c.b16 %v4526, %v4523
    %v5028 = vpack.c.b16 %v4527, %v4524
    %v5029 = vpack.c.b16 %v4528, %v4525
    %v5030 = vpack.c.b16 %v4532, %v4529
    %v5031 = vpack.c.b16 %v4533, %v4530
    %v5032 = vpack.c.b16 %v4534, %v4531
    %v5033 = vpack.c.b16 %v4538, %v4535
    %v5034 = vpack.c.b16 %v4539, %v4536
    %v5035 = vpack.c.b16 %v4540, %v4537
    %v5036 = vpack.c.b16 %v4544, %v4541
    %v5037 = vpack.c.b16 %v4545, %v4542
    %v5038 = vpack.c.b16 %v4546, %v4543
    %v5039 = vpack.c.b16 %v4550, %v4547
    %v5040 = vpack.c.b16 %v4551, %v4548
    %v5041 = vpack.c.b16 %v4552, %v4549
    %v5042 = vpack.c.b16 %v4556, %v4553
    %v5043 = vpack.c.b16 %v4557, %v4554
    %v5044 = vpack.c.b16 %v4558, %v4555
    %v5045 = vpack.c.b16 %v4562, %v4559
    %v5046 = vpack.c.b16 %v4563, %v4560
    %v5047 = vpack.c.b16 %v4564, %v4561
    %v5048 = vpack.c.b16 %v4568, %v4565
    %v5049 = vpack.c.b16 %v4569, %v4566
    %v5050 = vpack.c.b16 %v4570, %v4567
    %v5051 = vpack.c.b16 %v4574, %v4571
    %v5052 = vpack.c.b16 %v4575, %v4572
    %v5053 = vpack.c.b16 %v4576, %v4573
    %v5054 = vpack.c.b16 %v4580, %v4577
    %v5055 = vpack.c.b16 %v4581, %v4578
    %v5056 = vpack.c.b16 %v4582, %v4579
    %v5057 = vpack.c.b16 %v4586, %v4583
    %v5058 = vpack.c.b16 %v4587, %v4584
    %v5059 = vpack.c.b16 %v4588, %v4585
    %v5060 = vpack.c.b16 %v4592, %v4589
    %v5061 = vpack.c.b16 %v4593, %v4590
    %v5062 = vpack.c.b16 %v4594, %v4591
    %v5063 = vpack.c.b16 %v4598, %v4595
    %v5064 = vpack.c.b16 %v4599, %v4596
    %v5065 = vpack.c.b16 %v4600, %v4597
    %v5066 = vpack.c.b16 %v4604, %v4601
    %v5067 = vpack.c.b16 %v4605, %v4602
    %v5068 = vpack.c.b16 %v4606, %v4603
    %v5069 = vpack.c.b16 %v4610, %v4607
    %v5070 = vpack.c.b16 %v4611, %v4608
    %v5071 = vpack.c.b16 %v4612, %v4609
    %v5072 = vpack.c.b16 %v4616, %v4613
    %v5073 = vpack.c.b16 %v4617, %v4614
    %v5074 = vpack.c.b16 %v4618, %v4615
    %v5075 = vpack.c.b16 %v4622, %v4619
    %v5076 = vpack.c.b16 %v4623, %v4620
    %v5077 = vpack.c.b16 %v4624, %v4621
    %v5078 = vpack.c.b16 %v4628, %v4625
    %v5079 = vpack.c.b16 %v4629, %v4626
    %v5080 = vpack.c.b16 %v4630, %v4627
    %v5081 = vpack.c.b16 %v4634, %v4631
    %v5082 = vpack.c.b16 %v4635, %v4632
    %v5083 = vpack.c.b16 %v4636, %v4633
    %v5084 = vpack.c.b16 %v4640, %v4637
    %v5085 = vpack.c.b16 %v4641, %v4638
    %v5086 = vpack.c.b16 %v4642, %v4639
    %v5087 = vpack.c.b16 %v4646, %v4643
    %v5088 = vpack.c.b16 %v4647, %v4644
    %v5089 = vpack.c.b16 %v4648, %v4645
    %v5090 = vpack.c.b16 %v4652, %v4649
    %v5091 = vpack.c.b16 %v4653, %v4650
    %v5092 = vpack.c.b16 %v4654, %v4651
    %v5093 = vpack.c.b16 %v4658, %v4655
    %v5094 = vpack.c.b16 %v4659, %v4656
    %v5095 = vpack.c.b16 %v4660, %v4657
    %v5096 = vpack.c.b16 %v4664, %v4661
    %v5097 = vpack.c.b16 %v4665, %v4662
    %v5098 = vpack.c.b16 %v4666, %v4663
    %v5099 = vpack.c.b16 %v4670, %v4667
    %v5100 = vpack.c.b16 %v4671, %v4668
    %v5101 = vpack.c.b16 %v4672, %v4669
    %v5102 = vpack.c.b16 %v4676, %v4673
    %v5103 = vpack.c.b16 %v4677, %v4674
    %v5104 = vpack.c.b16 %v4678, %v4675
    %v5105 = vpack.c.b16 %v4682, %v4679
    %v5106 = vpack.c.b16 %v4683, %v4680
    %v5107 = vpack.c.b16 %v4684, %v4681
    %v5108 = vpack.c.b16 %v4688, %v4685
    %v5109 = vpack.c.b16 %v4689, %v4686
    %v5110 = vpack.c.b16 %v4690, %v4687
    %v5111 = vpack.c.b16 %v4694, %v4691
    %v5112 = vpack.c.b16 %v4695, %v4692
    %v5113 = vpack.c.b16 %v4696, %v4693
    %v5114 = vpack.c.b16 %v4700, %v4697
    %v5115 = vpack.c.b16 %v4701, %v4698
    %v5116 = vpack.c.b16 %v4702, %v4699
    %v5117 = vpack.c.b16 %v4706, %v4703
    %v5118 = vpack.c.b16 %v4707, %v4704
    %v5119 = vpack.c.b16 %v4708, %v4705
    %v5120 = vpack.c.b16 %v4712, %v4709
    %v5121 = vpack.c.b16 %v4713, %v4710
    %v5122 = vpack.c.b16 %v4714, %v4711
    %v5123 = vpack.c.b16 %v4718, %v4715
    %v5124 = vpack.c.b16 %v4719, %v4716
    %v5125 = vpack.c.b16 %v4720, %v4717
    %v5126 = vpack.c.b16 %v4724, %v4721
    %v5127 = vpack.c.b16 %v4725, %v4722
    %v5128 = vpack.c.b16 %v4726, %v4723
    %v5129 = vpack.c.b16 %v4730, %v4727
    %v5130 = vpack.c.b16 %v4731, %v4728
    %v5131 = vpack.c.b16 %v4732, %v4729
    %v5132 = vpack.c.b16 %v4736, %v4733
    %v5133 = vpack.c.b16 %v4737, %v4734
    %v5134 = vpack.c.b16 %v4738, %v4735
    %v5135 = vpack.c.b16 %v4742, %v4739
    %v5136 = vpack.c.b16 %v4743, %v4740
    %v5137 = vpack.c.b16 %v4744, %v4741
    %v5138 = vpack.c.b16 %v4748, %v4745
    %v5139 = vpack.c.b16 %v4749, %v4746
    %v5140 = vpack.c.b16 %v4750, %v4747
    %v5141 = vpack.c.b16 %v4754, %v4751
    %v5142 = vpack.c.b16 %v4755, %v4752
    %v5143 = vpack.c.b16 %v4756, %v4753
    %v5144 = vpack.c.b16 %v4760, %v4757
    %v5145 = vpack.c.b16 %v4761, %v4758
    %v5146 = vpack.c.b16 %v4762, %v4759
    %v5147 = vpack.c.b16 %v4766, %v4763
    %v5148 = vpack.c.b16 %v4767, %v4764
    %v5149 = vpack.c.b16 %v4768, %v4765
    %v5150 = vpack.c.b16 %v4772, %v4769
    %v5151 = vpack.c.b16 %v4773, %v4770
    %v5152 = vpack.c.b16 %v4774, %v4771
    %v5153 = vpack.c.b16 %v4778, %v4775
    %v5154 = vpack.c.b16 %v4779, %v4776
    %v5155 = vpack.c.b16 %v4780, %v4777
    %v5156 = vpack.c.b16 %v4784, %v4781
    %v5157 = vpack.c.b16 %v4785, %v4782
    %v5158 = vpack.c.b16 %v4786, %v4783
    %v5159 = vpack.c.b16 %v4790, %v4787
    %v5160 = vpack.c.b16 %v4791, %v4788
    %v5161 = vpack.c.b16 %v4792, %v4789
    %v5162 = vpack.c.b16 %v4796, %v4793
    %v5163 = vpack.c.b16 %v4797, %v4794
    %v5164 = vpack.c.b16 %v4798, %v4795
    %v5165 = vpack.c.b16 %v4802, %v4799
    %v5166 = vpack.c.b16 %v4803, %v4800
    %v5167 = vpack.c.b16 %v4804, %v4801
    %v5168 = vpack.c.b16 %v4808, %v4805
    %v5169 = vpack.c.b16 %v4809, %v4806
    %v5170 = vpack.c.b16 %v4810, %v4807
    %v5171 = vpack.c.b16 %v4814, %v4811
    %v5172 = vpack.c.b16 %v4815, %v4812
    %v5173 = vpack.c.b16 %v4816, %v4813
    %v5174 = vpack.c.b16 %v4820, %v4817
    %v5175 = vpack.c.b16 %v4821, %v4818
    %v5176 = vpack.c.b16 %v4822, %v4819
    %v5177 = vpack.c.b16 %v4826, %v4823
    %v5178 = vpack.c.b16 %v4827, %v4824
    %v5179 = vpack.c.b16 %v4828, %v4825
    %v5180 = vpack.c.b16 %v4832, %v4829
    %v5181 = vpack.c.b16 %v4833, %v4830
    %v5182 = vpack.c.b16 %v4834, %v4831
    %v5183 = vpack.c.b16 %v4838, %v4835
    %v5184 = vpack.c.b16 %v4839, %v4836
    %v5185 = vpack.c.b16 %v4840, %v4837
    %v5186 = vpack.c.b16 %v4844, %v4841
    %v5187 = vpack.c.b16 %v4845, %v4842
    %v5188 = vpack.c.b16 %v4846, %v4843
    %v5189 = vpack.c.b16 %v4850, %v4847
    %v5190 = vpack.c.b16 %v4851, %v4848
    %v5191 = vpack.c.b16 %v4852, %v4849
    %v5192 = vpack.c.b16 %v4856, %v4853
    %v5193 = vpack.c.b16 %v4857, %v4854
    %v5194 = vpack.c.b16 %v4858, %v4855
    %v5195 = vpack.c.b16 %v4862, %v4859
    %v5196 = vpack.c.b16 %v4863, %v4860
    %v5197 = vpack.c.b16 %v4864, %v4861
    %v5198 = vpack.c.b16 %v4868, %v4865
    %v5199 = vpack.c.b16 %v4869, %v4866
    %v5200 = vpack.c.b16 %v4870, %v4867
    %v5201 = vpack.c.b16 %v4874, %v4871
    %v5202 = vpack.c.b16 %v4875, %v4872
    %v5203 = vpack.c.b16 %v4876, %v4873
    %v5204 = vpack.c.b16 %v4880, %v4877
    %v5205 = vpack.c.b16 %v4881, %v4878
    %v5206 = vpack.c.b16 %v4882, %v4879
    %v5207 = vpack.c.b16 %v4886, %v4883
    %v5208 = vpack.c.b16 %v4887, %v4884
    %v5209 = vpack.c.b16 %v4888, %v4885
    %v5210 = vpack.c.b16 %v4892, %v4889
    %v5211 = vpack.c.b16 %v4893, %v4890
    %v5212 = vpack.c.b16 %v4894, %v4891
    %v5213 = vpack.c.b16 %v4898, %v4895
    %v5214 = vpack.c.b16 %v4899, %v4896
    %v5215 = vpack.c.b16 %v4900, %v4897
    %v5216 = vpack.c.b16 %v4904, %v4901
    %v5217 = vpack.c.b16 %v4905, %v4902
    %v5218 = vpack.c.b16 %v4906, %v4903
    %v5219 = vpack.c.b16 %v4910, %v4907
    %v5220 = vpack.c.b16 %v4911, %v4908
    %v5221 = vpack.c.b16 %v4912, %v4909
    %v5222 = vpack.c.b16 %v4916, %v4913
    %v5223 = vpack.c.b16 %v4917, %v4914
    %v5224 = vpack.c.b16 %v4918, %v4915
    %v5225 = vpack.c.b16 %v4922, %v4919
    %v5226 = vpack.c.b16 %v4923, %v4920
    %v5227 = vpack.c.b16 %v4924, %v4921
    %v5228 = vpack.c.b16 %v4928, %v4925
    %v5229 = vpack.c.b16 %v4929, %v4926
    %v5230 = vpack.c.b16 %v4930, %v4927
    %v5231 = vpack.c.b16 %v4934, %v4931
    %v5232 = vpack.c.b16 %v4935, %v4932
    %v5233 = vpack.c.b16 %v4936, %v4933
    %v5234 = vpack.c.b16 %v4940, %v4937
    %v5235 = vpack.c.b16 %v4941, %v4938
    %v5236 = vpack.c.b16 %v4942, %v4939
    %v5237 = vpack.c.b16 %v4946, %v4943
    %v5238 = vpack.c.b16 %v4947, %v4944
    %v5239 = vpack.c.b16 %v4948, %v4945
    %v5240 = vpack.c.b16 %v4952, %v4949
    %v5241 = vpack.c.b16 %v4953, %v4950
    %v5242 = vpack.c.b16 %v4954, %v4951
    %5531 = vmatprep.subr.bf16.mxu0 %v4956
    %5532 = vmatpush1.bf16.msra.mxu0 %v4955
    %5533 = vmatprep.subr.bf16.mxu0 %v4959
    %5534 = vmatpush1.bf16.msra.mxu0 %v4958
    %5535 = vmatprep.subr.bf16.mxu0 %v4962
    %5536 = vmatpush1.bf16.msra.mxu0 %v4961
    %5537 = vmatprep.subr.bf16.mxu0 %v4965
    %5538 = vmatpush1.bf16.msra.mxu0 %v4964
    %5539 = vmatprep.subr.bf16.mxu0 %v4968
    %5540 = vmatpush1.bf16.msra.mxu0 %v4967
    %5541 = vmatprep.subr.bf16.mxu0 %v4971
    %5542 = vmatpush1.bf16.msra.mxu0 %v4970
    %5543 = vmatprep.subr.bf16.mxu0 %v4974
    %5544 = vmatpush1.bf16.msra.mxu0 %v4973
    %5545 = vmatprep.subr.bf16.mxu0 %v4977
    %5546 = vmatpush1.bf16.msra.mxu0 %v4976
    %5547 = vmatprep.subr.bf16.mxu0 %v4980
    %5548 = vmatpush1.bf16.msra.mxu0 %v4979
    %5549 = vmatprep.subr.bf16.mxu0 %v4983
    %5550 = vmatpush1.bf16.msra.mxu0 %v4982
    %5551 = vmatprep.subr.bf16.mxu0 %v4986
    %5552 = vmatpush1.bf16.msra.mxu0 %v4985
    %5553 = vmatprep.subr.bf16.mxu0 %v4989
    %5554 = vmatpush1.bf16.msra.mxu0 %v4988
    %5555 = vmatprep.subr.bf16.mxu0 %v4992
    %5556 = vmatpush1.bf16.msra.mxu0 %v4991
    %5557 = vmatprep.subr.bf16.mxu0 %v4995
    %5558 = vmatpush1.bf16.msra.mxu0 %v4994
    %5559 = vmatprep.subr.bf16.mxu0 %v4998
    %5560 = vmatpush1.bf16.msra.mxu0 %v4997
    %5561 = vmatprep.subr.bf16.mxu0 %v5001
    %5562 = vmatpush1.bf16.msra.mxu0 %v5000
    %5563 = vmatprep.mubr.bf16.mxu0 %v3499
    %5564 = vmatmul.mubr.bf16.gmra.mrb[0].mxu0 %v3498
    %v5565 = vpop.f32.mrb[0].mxu0
    %v5566 = vadd.f32 %v3983, %v5565
    %v5567 = vpop.f32.mrb[0].mxu0
    %v5568 = vadd.f32 %v3987, %v5567
    %v5569 = vpop.f32.mrb[0].mxu0
    %v5570 = vadd.f32 %v3983, %v5569
    %v5571 = vpop.f32.mrb[0].mxu0
    %v5572 = vadd.f32 %v3987, %v5571
    %5573 = vmatprep.mubr.bf16.mxu0 %v3511
    %5574 = vmatmul.mubr.bf16.gmra.mrb[0].mxu0 %v3510
    %v5575 = vpop.f32.mrb[0].mxu0
    %v5576 = vadd.f32 %v3983, %v5575
    %v5577 = vpop.f32.mrb[0].mxu0
    %v5578 = vadd.f32 %v3987, %v5577
    %v5579 = vpop.f32.mrb[0].mxu0
    %v5580 = vadd.f32 %v3983, %v5579
    %v5581 = vpop.f32.mrb[0].mxu0
    %v5582 = vadd.f32 %v3987, %v5581
    %5583 = vmatprep.mubr.bf16.mxu0 %v3523
    %5584 = vmatmul.mubr.bf16.gmra.mrb[0].mxu0 %v3522
    %v5585 = vpop.f32.mrb[0].mxu0
    %v5586 = vadd.f32 %v3983, %v5585
    %v5587 = vpop.f32.mrb[0].mxu0
    %v5588 = vadd.f32 %v3987, %v5587
    %v5589 = vpop.f32.mrb[0].mxu0
    %v5590 = vadd.f32 %v3983, %v5589
    %v5591 = vpop.f32.mrb[0].mxu0
    %v5592 = vadd.f32 %v3987, %v5591
    %5593 = vmatprep.mubr.bf16.mxu0 %v3535
    %5594 = vmatmul.mubr.bf16.gmra.mrb[0].mxu0 %v3534
    %v5595 = vpop.f32.mrb[0].mxu0
    %v5596 = vadd.f32 %v3983, %v5595
    %v5597 = vpop.f32.mrb[0].mxu0
    %v5598 = vadd.f32 %v3987, %v5597
    %v5599 = vpop.f32.mrb[0].mxu0
    %v5600 = vadd.f32 %v3983, %v5599
    %v5601 = vpop.f32.mrb[0].mxu0
    %v5602 = vadd.f32 %v3987, %v5601
    %5603 = vmatprep.mubr.bf16.mxu0 %v3547
    %5604 = vmatmul.mubr.bf16.gmra.mrb[0].mxu0 %v3546
    %v5605 = vpop.f32.mrb[0].mxu0
    %v5606 = vadd.f32 %v3983, %v5605
    %v5607 = vpop.f32.mrb[0].mxu0
    %v5608 = vadd.f32 %v3987, %v5607
    %v5609 = vpop.f32.mrb[0].mxu0
    %v5610 = vadd.f32 %v3983, %v5609
    %v5611 = vpop.f32.mrb[0].mxu0
    %v5612 = vadd.f32 %v3987, %v5611
    %5613 = vmatprep.mubr.bf16.mxu0 %v3559
    %5614 = vmatmul.mubr.bf16.gmra.mrb[0].mxu0 %v3558
    %v5615 = vpop.f32.mrb[0].mxu0
    %v5616 = vadd.f32 %v3983, %v5615
    %v5617 = vpop.f32.mrb[0].mxu0
    %v5618 = vadd.f32 %v3987, %v5617
    %v5619 = vpop.f32.mrb[0].mxu0
    %v5620 = vadd.f32 %v3983, %v5619
    %v5621 = vpop.f32.mrb[0].mxu0
    %v5622 = vadd.f32 %v3987, %v5621
    %5623 = vmatprep.mubr.bf16.mxu0 %v3571
    %5624 = vmatmul.mubr.bf16.gmra.mrb[0].mxu0 %v3570
    %v5625 = vpop.f32.mrb[0].mxu0
    %v5626 = vadd.f32 %v3983, %v5625
    %v5627 = vpop.f32.mrb[0].mxu0
    %v5628 = vadd.f32 %v3987, %v5627
    %v5629 = vpop.f32.mrb[0].mxu0
    %v5630 = vadd.f32 %v3983, %v5629
    %v5631 = vpop.f32.mrb[0].mxu0
    %v5632 = vadd.f32 %v3987, %v5631
    %5633 = vmatprep.mubr.bf16.mxu0 %v3583
    %5634 = vmatmul.mubr.bf16.gmra.mrb[0].mxu0 %v3582
    %v5635 = vpop.f32.mrb[0].mxu0
    %v5636 = vadd.f32 %v3983, %v5635
    %v5637 = vpop.f32.mrb[0].mxu0
    %v5638 = vadd.f32 %v3987, %v5637
    %v5639 = vpop.f32.mrb[0].mxu0
    %v5640 = vadd.f32 %v3983, %v5639
    %v5641 = vpop.f32.mrb[0].mxu0
    %v5642 = vadd.f32 %v3987, %v5641
    %5643 = vdwg.mxu0
    %5644 = vmatprep.subr.bf16.mxu0 %v5004
    %5645 = vmatpush1.bf16.msra.mxu0 %v5003
    %5646 = vmatprep.subr.bf16.mxu0 %v5007
    %5647 = vmatpush1.bf16.msra.mxu0 %v5006
    %5648 = vmatprep.subr.bf16.mxu0 %v5010
    %5649 = vmatpush1.bf16.msra.mxu0 %v5009
    %5650 = vmatprep.subr.bf16.mxu0 %v5013
    %5651 = vmatpush1.bf16.msra.mxu0 %v5012
    %5652 = vmatprep.subr.bf16.mxu0 %v5016
    %5653 = vmatpush1.bf16.msra.mxu0 %v5015
    %5654 = vmatprep.subr.bf16.mxu0 %v5019
    %5655 = vmatpush1.bf16.msra.mxu0 %v5018
    %5656 = vmatprep.subr.bf16.mxu0 %v5022
    %5657 = vmatpush1.bf16.msra.mxu0 %v5021
    %5658 = vmatprep.subr.bf16.mxu0 %v5025
    %5659 = vmatpush1.bf16.msra.mxu0 %v5024
    %5660 = vmatprep.subr.bf16.mxu0 %v5028
    %5661 = vmatpush1.bf16.msra.mxu0 %v5027
    %5662 = vmatprep.subr.bf16.mxu0 %v5031
    %5663 = vmatpush1.bf16.msra.mxu0 %v5030
    %5664 = vmatprep.subr.bf16.mxu0 %v5034
    %5665 = vmatpush1.bf16.msra.mxu0 %v5033
    %5666 = vmatprep.subr.bf16.mxu0 %v5037
    %5667 = vmatpush1.bf16.msra.mxu0 %v5036
    %5668 = vmatprep.subr.bf16.mxu0 %v5040
    %5669 = vmatpush1.bf16.msra.mxu0 %v5039
    %5670 = vmatprep.subr.bf16.mxu0 %v5043
    %5671 = vmatpush1.bf16.msra.mxu0 %v5042
    %5672 = vmatprep.subr.bf16.mxu0 %v5046
    %5673 = vmatpush1.bf16.msra.mxu0 %v5045
    %5674 = vmatprep.subr.bf16.mxu0 %v5049
    %5675 = vmatpush1.bf16.msra.mxu0 %v5048
    %5676 = vmatprep.mubr.bf16.mxu0 %v3501
    %5677 = vmatmul.mubr.bf16.gmra.mrb[0].mxu0 %v3500
    %v5678 = vpop.f32.mrb[0].mxu0
    %v5679 = vadd.f32 %v5566, %v5678
    %v5680 = vpop.f32.mrb[0].mxu0
    %v5681 = vadd.f32 %v5568, %v5680
    %v5682 = vpop.f32.mrb[0].mxu0
    %v5683 = vadd.f32 %v5570, %v5682
    %v5684 = vpop.f32.mrb[0].mxu0
    %v5685 = vadd.f32 %v5572, %v5684
    %5686 = vmatprep.mubr.bf16.mxu0 %v3513
    %5687 = vmatmul.mubr.bf16.gmra.mrb[0].mxu0 %v3512
    %v5688 = vpop.f32.mrb[0].mxu0
    %v5689 = vadd.f32 %v5576, %v5688
    %v5690 = vpop.f32.mrb[0].mxu0
    %v5691 = vadd.f32 %v5578, %v5690
    %v5692 = vpop.f32.mrb[0].mxu0
    %v5693 = vadd.f32 %v5580, %v5692
    %v5694 = vpop.f32.mrb[0].mxu0
    %v5695 = vadd.f32 %v5582, %v5694
    %5696 = vmatprep.mubr.bf16.mxu0 %v3525
    %5697 = vmatmul.mubr.bf16.gmra.mrb[0].mxu0 %v3524
    %v5698 = vpop.f32.mrb[0].mxu0
    %v5699 = vadd.f32 %v5586, %v5698
    %v5700 = vpop.f32.mrb[0].mxu0
    %v5701 = vadd.f32 %v5588, %v5700
    %v5702 = vpop.f32.mrb[0].mxu0
    %v5703 = vadd.f32 %v5590, %v5702
    %v5704 = vpop.f32.mrb[0].mxu0
    %v5705 = vadd.f32 %v5592, %v5704
    %5706 = vmatprep.mubr.bf16.mxu0 %v3537
    %5707 = vmatmul.mubr.bf16.gmra.mrb[0].mxu0 %v3536
    %v5708 = vpop.f32.mrb[0].mxu0
    %v5709 = vadd.f32 %v5596, %v5708
    %v5710 = vpop.f32.mrb[0].mxu0
    %v5711 = vadd.f32 %v5598, %v5710
    %v5712 = vpop.f32.mrb[0].mxu0
    %v5713 = vadd.f32 %v5600, %v5712
    %v5714 = vpop.f32.mrb[0].mxu0
    %v5715 = vadd.f32 %v5602, %v5714
    %5716 = vmatprep.mubr.bf16.mxu0 %v3549
    %5717 = vmatmul.mubr.bf16.gmra.mrb[0].mxu0 %v3548
    %v5718 = vpop.f32.mrb[0].mxu0
    %v5719 = vadd.f32 %v5606, %v5718
    %v5720 = vpop.f32.mrb[0].mxu0
    %v5721 = vadd.f32 %v5608, %v5720
    %v5722 = vpop.f32.mrb[0].mxu0
    %v5723 = vadd.f32 %v5610, %v5722
    %v5724 = vpop.f32.mrb[0].mxu0
    %v5725 = vadd.f32 %v5612, %v5724
    %5726 = vmatprep.mubr.bf16.mxu0 %v3561
    %5727 = vmatmul.mubr.bf16.gmra.mrb[0].mxu0 %v3560
    %v5728 = vpop.f32.mrb[0].mxu0
    %v5729 = vadd.f32 %v5616, %v5728
    %v5730 = vpop.f32.mrb[0].mxu0
    %v5731 = vadd.f32 %v5618, %v5730
    %v5732 = vpop.f32.mrb[0].mxu0
    %v5733 = vadd.f32 %v5620, %v5732
    %v5734 = vpop.f32.mrb[0].mxu0
    %v5735 = vadd.f32 %v5622, %v5734
    %5736 = vmatprep.mubr.bf16.mxu0 %v3573
    %5737 = vmatmul.mubr.bf16.gmra.mrb[0].mxu0 %v3572
    %v5738 = vpop.f32.mrb[0].mxu0
    %v5739 = vadd.f32 %v5626, %v5738
    %v5740 = vpop.f32.mrb[0].mxu0
    %v5741 = vadd.f32 %v5628, %v5740
    %v5742 = vpop.f32.mrb[0].mxu0
    %v5743 = vadd.f32 %v5630, %v5742
    %v5744 = vpop.f32.mrb[0].mxu0
    %v5745 = vadd.f32 %v5632, %v5744
    %5746 = vmatprep.mubr.bf16.mxu0 %v3585
    %5747 = vmatmul.mubr.bf16.gmra.mrb[0].mxu0 %v3584
    %v5748 = vpop.f32.mrb[0].mxu0
    %v5749 = vadd.f32 %v5636, %v5748
    %v5750 = vpop.f32.mrb[0].mxu0
    %v5751 = vadd.f32 %v5638, %v5750
    %v5752 = vpop.f32.mrb[0].mxu0
    %v5753 = vadd.f32 %v5640, %v5752
    %v5754 = vpop.f32.mrb[0].mxu0
    %v5755 = vadd.f32 %v5642, %v5754
    %5756 = vdwg.mxu0
    %5757 = vmatprep.subr.bf16.mxu0 %v5052
    %5758 = vmatpush1.bf16.msra.mxu0 %v5051
    %5759 = vmatprep.subr.bf16.mxu0 %v5055
    %5760 = vmatpush1.bf16.msra.mxu0 %v5054
    %5761 = vmatprep.subr.bf16.mxu0 %v5058
    %5762 = vmatpush1.bf16.msra.mxu0 %v5057
    %5763 = vmatprep.subr.bf16.mxu0 %v5061
    %5764 = vmatpush1.bf16.msra.mxu0 %v5060
    %5765 = vmatprep.subr.bf16.mxu0 %v5064
    %5766 = vmatpush1.bf16.msra.mxu0 %v5063
    %5767 = vmatprep.subr.bf16.mxu0 %v5067
    %5768 = vmatpush1.bf16.msra.mxu0 %v5066
    %5769 = vmatprep.subr.bf16.mxu0 %v5070
    %5770 = vmatpush1.bf16.msra.mxu0 %v5069
    %5771 = vmatprep.subr.bf16.mxu0 %v5073
    %5772 = vmatpush1.bf16.msra.mxu0 %v5072
    %5773 = vmatprep.subr.bf16.mxu0 %v5076
    %5774 = vmatpush1.bf16.msra.mxu0 %v5075
    %5775 = vmatprep.subr.bf16.mxu0 %v5079
    %5776 = vmatpush1.bf16.msra.mxu0 %v5078
    %5777 = vmatprep.subr.bf16.mxu0 %v5082
    %5778 = vmatpush1.bf16.msra.mxu0 %v5081
    %5779 = vmatprep.subr.bf16.mxu0 %v5085
    %5780 = vmatpush1.bf16.msra.mxu0 %v5084
    %5781 = vmatprep.subr.bf16.mxu0 %v5088
    %5782 = vmatpush1.bf16.msra.mxu0 %v5087
    %5783 = vmatprep.subr.bf16.mxu0 %v5091
    %5784 = vmatpush1.bf16.msra.mxu0 %v5090
    %5785 = vmatprep.subr.bf16.mxu0 %v5094
    %5786 = vmatpush1.bf16.msra.mxu0 %v5093
    %5787 = vmatprep.subr.bf16.mxu0 %v5097
    %5788 = vmatpush1.bf16.msra.mxu0 %v5096
    %5789 = vmatprep.mubr.bf16.mxu0 %v3503
    %5790 = vmatmul.mubr.bf16.gmra.mrb[0].mxu0 %v3502
    %v5791 = vpop.f32.mrb[0].mxu0
    %v5792 = vadd.f32 %v5679, %v5791
    %v5793 = vpop.f32.mrb[0].mxu0
    %v5794 = vadd.f32 %v5681, %v5793
    %v5795 = vpop.f32.mrb[0].mxu0
    %v5796 = vadd.f32 %v5683, %v5795
    %v5797 = vpop.f32.mrb[0].mxu0
    %v5798 = vadd.f32 %v5685, %v5797
    %5799 = vmatprep.mubr.bf16.mxu0 %v3515
    %5800 = vmatmul.mubr.bf16.gmra.mrb[0].mxu0 %v3514
    %v5801 = vpop.f32.mrb[0].mxu0
    %v5802 = vadd.f32 %v5689, %v5801
    %v5803 = vpop.f32.mrb[0].mxu0
    %v5804 = vadd.f32 %v5691, %v5803
    %v5805 = vpop.f32.mrb[0].mxu0
    %v5806 = vadd.f32 %v5693, %v5805
    %v5807 = vpop.f32.mrb[0].mxu0
    %v5808 = vadd.f32 %v5695, %v5807
    %5809 = vmatprep.mubr.bf16.mxu0 %v3527
    %5810 = vmatmul.mubr.bf16.gmra.mrb[0].mxu0 %v3526
    %v5811 = vpop.f32.mrb[0].mxu0
    %v5812 = vadd.f32 %v5699, %v5811
    %v5813 = vpop.f32.mrb[0].mxu0
    %v5814 = vadd.f32 %v5701, %v5813
    %v5815 = vpop.f32.mrb[0].mxu0
    %v5816 = vadd.f32 %v5703, %v5815
    %v5817 = vpop.f32.mrb[0].mxu0
    %v5818 = vadd.f32 %v5705, %v5817
    %5819 = vmatprep.mubr.bf16.mxu0 %v3539
    %5820 = vmatmul.mubr.bf16.gmra.mrb[0].mxu0 %v3538
    %v5821 = vpop.f32.mrb[0].mxu0
    %v5822 = vadd.f32 %v5709, %v5821
    %v5823 = vpop.f32.mrb[0].mxu0
    %v5824 = vadd.f32 %v5711, %v5823
    %v5825 = vpop.f32.mrb[0].mxu0
    %v5826 = vadd.f32 %v5713, %v5825
    %v5827 = vpop.f32.mrb[0].mxu0
    %v5828 = vadd.f32 %v5715, %v5827
    %5829 = vmatprep.mubr.bf16.mxu0 %v3551
    %5830 = vmatmul.mubr.bf16.gmra.mrb[0].mxu0 %v3550
    %v5831 = vpop.f32.mrb[0].mxu0
    %v5832 = vadd.f32 %v5719, %v5831
    %v5833 = vpop.f32.mrb[0].mxu0
    %v5834 = vadd.f32 %v5721, %v5833
    %v5835 = vpop.f32.mrb[0].mxu0
    %v5836 = vadd.f32 %v5723, %v5835
    %v5837 = vpop.f32.mrb[0].mxu0
    %v5838 = vadd.f32 %v5725, %v5837
    %5839 = vmatprep.mubr.bf16.mxu0 %v3563
    %5840 = vmatmul.mubr.bf16.gmra.mrb[0].mxu0 %v3562
    %v5841 = vpop.f32.mrb[0].mxu0
    %v5842 = vadd.f32 %v5729, %v5841
    %v5843 = vpop.f32.mrb[0].mxu0
    %v5844 = vadd.f32 %v5731, %v5843
    %v5845 = vpop.f32.mrb[0].mxu0
    %v5846 = vadd.f32 %v5733, %v5845
    %v5847 = vpop.f32.mrb[0].mxu0
    %v5848 = vadd.f32 %v5735, %v5847
    %5849 = vmatprep.mubr.bf16.mxu0 %v3575
    %5850 = vmatmul.mubr.bf16.gmra.mrb[0].mxu0 %v3574
    %v5851 = vpop.f32.mrb[0].mxu0
    %v5852 = vadd.f32 %v5739, %v5851
    %v5853 = vpop.f32.mrb[0].mxu0
    %v5854 = vadd.f32 %v5741, %v5853
    %v5855 = vpop.f32.mrb[0].mxu0
    %v5856 = vadd.f32 %v5743, %v5855
    %v5857 = vpop.f32.mrb[0].mxu0
    %v5858 = vadd.f32 %v5745, %v5857
    %5859 = vmatprep.mubr.bf16.mxu0 %v3587
    %5860 = vmatmul.mubr.bf16.gmra.mrb[0].mxu0 %v3586
    %v5861 = vpop.f32.mrb[0].mxu0
    %v5862 = vadd.f32 %v5749, %v5861
    %v5863 = vpop.f32.mrb[0].mxu0
    %v5864 = vadd.f32 %v5751, %v5863
    %v5865 = vpop.f32.mrb[0].mxu0
    %v5866 = vadd.f32 %v5753, %v5865
    %v5867 = vpop.f32.mrb[0].mxu0
    %v5868 = vadd.f32 %v5755, %v5867
    %5869 = vdwg.mxu0
    %5870 = vmatprep.subr.bf16.mxu0 %v5100
    %5871 = vmatpush1.bf16.msra.mxu0 %v5099
    %5872 = vmatprep.subr.bf16.mxu0 %v5103
    %5873 = vmatpush1.bf16.msra.mxu0 %v5102
    %5874 = vmatprep.subr.bf16.mxu0 %v5106
    %5875 = vmatpush1.bf16.msra.mxu0 %v5105
    %5876 = vmatprep.subr.bf16.mxu0 %v5109
    %5877 = vmatpush1.bf16.msra.mxu0 %v5108
    %5878 = vmatprep.subr.bf16.mxu0 %v5112
    %5879 = vmatpush1.bf16.msra.mxu0 %v5111
    %5880 = vmatprep.subr.bf16.mxu0 %v5115
    %5881 = vmatpush1.bf16.msra.mxu0 %v5114
    %5882 = vmatprep.subr.bf16.mxu0 %v5118
    %5883 = vmatpush1.bf16.msra.mxu0 %v5117
    %5884 = vmatprep.subr.bf16.mxu0 %v5121
    %5885 = vmatpush1.bf16.msra.mxu0 %v5120
    %5886 = vmatprep.subr.bf16.mxu0 %v5124
    %5887 = vmatpush1.bf16.msra.mxu0 %v5123
    %5888 = vmatprep.subr.bf16.mxu0 %v5127
    %5889 = vmatpush1.bf16.msra.mxu0 %v5126
    %5890 = vmatprep.subr.bf16.mxu0 %v5130
    %5891 = vmatpush1.bf16.msra.mxu0 %v5129
    %5892 = vmatprep.subr.bf16.mxu0 %v5133
    %5893 = vmatpush1.bf16.msra.mxu0 %v5132
    %5894 = vmatprep.subr.bf16.mxu0 %v5136
    %5895 = vmatpush1.bf16.msra.mxu0 %v5135
    %5896 = vmatprep.subr.bf16.mxu0 %v5139
    %5897 = vmatpush1.bf16.msra.mxu0 %v5138
    %5898 = vmatprep.subr.bf16.mxu0 %v5142
    %5899 = vmatpush1.bf16.msra.mxu0 %v5141
    %5900 = vmatprep.subr.bf16.mxu0 %v5145
    %5901 = vmatpush1.bf16.msra.mxu0 %v5144
    %5902 = vmatprep.mubr.bf16.mxu0 %v3505
    %5903 = vmatmul.mubr.bf16.gmra.mrb[0].mxu0 %v3504
    %v5904 = vpop.f32.mrb[0].mxu0
    %v5905 = vadd.f32 %v5792, %v5904
    %v5906 = vpop.f32.mrb[0].mxu0
    %v5907 = vadd.f32 %v5794, %v5906
    %v5908 = vpop.f32.mrb[0].mxu0
    %v5909 = vadd.f32 %v5796, %v5908
    %v5910 = vpop.f32.mrb[0].mxu0
    %v5911 = vadd.f32 %v5798, %v5910
    %5912 = vmatprep.mubr.bf16.mxu0 %v3517
    %5913 = vmatmul.mubr.bf16.gmra.mrb[0].mxu0 %v3516
    %v5914 = vpop.f32.mrb[0].mxu0
    %v5915 = vadd.f32 %v5802, %v5914
    %v5916 = vpop.f32.mrb[0].mxu0
    %v5917 = vadd.f32 %v5804, %v5916
    %v5918 = vpop.f32.mrb[0].mxu0
    %v5919 = vadd.f32 %v5806, %v5918
    %v5920 = vpop.f32.mrb[0].mxu0
    %v5921 = vadd.f32 %v5808, %v5920
    %5922 = vmatprep.mubr.bf16.mxu0 %v3529
    %5923 = vmatmul.mubr.bf16.gmra.mrb[0].mxu0 %v3528
    %v5924 = vpop.f32.mrb[0].mxu0
    %v5925 = vadd.f32 %v5812, %v5924
    %v5926 = vpop.f32.mrb[0].mxu0
    %v5927 = vadd.f32 %v5814, %v5926
    %v5928 = vpop.f32.mrb[0].mxu0
    %v5929 = vadd.f32 %v5816, %v5928
    %v5930 = vpop.f32.mrb[0].mxu0
    %v5931 = vadd.f32 %v5818, %v5930
    %5932 = vmatprep.mubr.bf16.mxu0 %v3541
    %5933 = vmatmul.mubr.bf16.gmra.mrb[0].mxu0 %v3540
    %v5934 = vpop.f32.mrb[0].mxu0
    %v5935 = vadd.f32 %v5822, %v5934
    %v5936 = vpop.f32.mrb[0].mxu0
    %v5937 = vadd.f32 %v5824, %v5936
    %v5938 = vpop.f32.mrb[0].mxu0
    %v5939 = vadd.f32 %v5826, %v5938
    %v5940 = vpop.f32.mrb[0].mxu0
    %v5941 = vadd.f32 %v5828, %v5940
    %5942 = vmatprep.mubr.bf16.mxu0 %v3553
    %5943 = vmatmul.mubr.bf16.gmra.mrb[0].mxu0 %v3552
    %v5944 = vpop.f32.mrb[0].mxu0
    %v5945 = vadd.f32 %v5832, %v5944
    %v5946 = vpop.f32.mrb[0].mxu0
    %v5947 = vadd.f32 %v5834, %v5946
    %v5948 = vpop.f32.mrb[0].mxu0
    %v5949 = vadd.f32 %v5836, %v5948
    %v5950 = vpop.f32.mrb[0].mxu0
    %v5951 = vadd.f32 %v5838, %v5950
    %5952 = vmatprep.mubr.bf16.mxu0 %v3565
    %5953 = vmatmul.mubr.bf16.gmra.mrb[0].mxu0 %v3564
    %v5954 = vpop.f32.mrb[0].mxu0
    %v5955 = vadd.f32 %v5842, %v5954
    %v5956 = vpop.f32.mrb[0].mxu0
    %v5957 = vadd.f32 %v5844, %v5956
    %v5958 = vpop.f32.mrb[0].mxu0
    %v5959 = vadd.f32 %v5846, %v5958
    %v5960 = vpop.f32.mrb[0].mxu0
    %v5961 = vadd.f32 %v5848, %v5960
    %5962 = vmatprep.mubr.bf16.mxu0 %v3577
    %5963 = vmatmul.mubr.bf16.gmra.mrb[0].mxu0 %v3576
    %v5964 = vpop.f32.mrb[0].mxu0
    %v5965 = vadd.f32 %v5852, %v5964
    %v5966 = vpop.f32.mrb[0].mxu0
    %v5967 = vadd.f32 %v5854, %v5966
    %v5968 = vpop.f32.mrb[0].mxu0
    %v5969 = vadd.f32 %v5856, %v5968
    %v5970 = vpop.f32.mrb[0].mxu0
    %v5971 = vadd.f32 %v5858, %v5970
    %5972 = vmatprep.mubr.bf16.mxu0 %v3589
    %5973 = vmatmul.mubr.bf16.gmra.mrb[0].mxu0 %v3588
    %v5974 = vpop.f32.mrb[0].mxu0
    %v5975 = vadd.f32 %v5862, %v5974
    %v5976 = vpop.f32.mrb[0].mxu0
    %v5977 = vadd.f32 %v5864, %v5976
    %v5978 = vpop.f32.mrb[0].mxu0
    %v5979 = vadd.f32 %v5866, %v5978
    %v5980 = vpop.f32.mrb[0].mxu0
    %v5981 = vadd.f32 %v5868, %v5980
    %5982 = vdwg.mxu0
    %5983 = vmatprep.subr.bf16.mxu0 %v5148
    %5984 = vmatpush1.bf16.msra.mxu0 %v5147
    %5985 = vmatprep.subr.bf16.mxu0 %v5151
    %5986 = vmatpush1.bf16.msra.mxu0 %v5150
    %5987 = vmatprep.subr.bf16.mxu0 %v5154
    %5988 = vmatpush1.bf16.msra.mxu0 %v5153
    %5989 = vmatprep.subr.bf16.mxu0 %v5157
    %5990 = vmatpush1.bf16.msra.mxu0 %v5156
    %5991 = vmatprep.subr.bf16.mxu0 %v5160
    %5992 = vmatpush1.bf16.msra.mxu0 %v5159
    %5993 = vmatprep.subr.bf16.mxu0 %v5163
    %5994 = vmatpush1.bf16.msra.mxu0 %v5162
    %5995 = vmatprep.subr.bf16.mxu0 %v5166
    %5996 = vmatpush1.bf16.msra.mxu0 %v5165
    %5997 = vmatprep.subr.bf16.mxu0 %v5169
    %5998 = vmatpush1.bf16.msra.mxu0 %v5168
    %5999 = vmatprep.subr.bf16.mxu0 %v5172
    %6000 = vmatpush1.bf16.msra.mxu0 %v5171
    %6001 = vmatprep.subr.bf16.mxu0 %v5175
    %6002 = vmatpush1.bf16.msra.mxu0 %v5174
    %6003 = vmatprep.subr.bf16.mxu0 %v5178
    %6004 = vmatpush1.bf16.msra.mxu0 %v5177
    %6005 = vmatprep.subr.bf16.mxu0 %v5181
    %6006 = vmatpush1.bf16.msra.mxu0 %v5180
    %6007 = vmatprep.subr.bf16.mxu0 %v5184
    %6008 = vmatpush1.bf16.msra.mxu0 %v5183
    %6009 = vmatprep.subr.bf16.mxu0 %v5187
    %6010 = vmatpush1.bf16.msra.mxu0 %v5186
    %6011 = vmatprep.subr.bf16.mxu0 %v5190
    %6012 = vmatpush1.bf16.msra.mxu0 %v5189
    %6013 = vmatprep.subr.bf16.mxu0 %v5193
    %6014 = vmatpush1.bf16.msra.mxu0 %v5192
    %6015 = vmatprep.mubr.bf16.mxu0 %v3507
    %6016 = vmatmul.mubr.bf16.gmra.mrb[0].mxu0 %v3506
    %v6017 = vpop.f32.mrb[0].mxu0
    %v6018 = vadd.f32 %v5905, %v6017
    %v6019 = vpop.f32.mrb[0].mxu0
    %v6020 = vadd.f32 %v5907, %v6019
    %v6021 = vpop.f32.mrb[0].mxu0
    %v6022 = vadd.f32 %v5909, %v6021
    %v6023 = vpop.f32.mrb[0].mxu0
    %v6024 = vadd.f32 %v5911, %v6023
    %6025 = vmatprep.mubr.bf16.mxu0 %v3519
    %6026 = vmatmul.mubr.bf16.gmra.mrb[0].mxu0 %v3518
    %v6027 = vpop.f32.mrb[0].mxu0
    %v6028 = vadd.f32 %v5915, %v6027
    %v6029 = vpop.f32.mrb[0].mxu0
    %v6030 = vadd.f32 %v5917, %v6029
    %v6031 = vpop.f32.mrb[0].mxu0
    %v6032 = vadd.f32 %v5919, %v6031
    %v6033 = vpop.f32.mrb[0].mxu0
    %v6034 = vadd.f32 %v5921, %v6033
    %6035 = vmatprep.mubr.bf16.mxu0 %v3531
    %6036 = vmatmul.mubr.bf16.gmra.mrb[0].mxu0 %v3530
    %v6037 = vpop.f32.mrb[0].mxu0
    %v6038 = vadd.f32 %v5925, %v6037
    %v6039 = vpop.f32.mrb[0].mxu0
    %v6040 = vadd.f32 %v5927, %v6039
    %v6041 = vpop.f32.mrb[0].mxu0
    %v6042 = vadd.f32 %v5929, %v6041
    %v6043 = vpop.f32.mrb[0].mxu0
    %v6044 = vadd.f32 %v5931, %v6043
    %6045 = vmatprep.mubr.bf16.mxu0 %v3543
    %6046 = vmatmul.mubr.bf16.gmra.mrb[0].mxu0 %v3542
    %v6047 = vpop.f32.mrb[0].mxu0
    %v6048 = vadd.f32 %v5935, %v6047
    %v6049 = vpop.f32.mrb[0].mxu0
    %v6050 = vadd.f32 %v5937, %v6049
    %v6051 = vpop.f32.mrb[0].mxu0
    %v6052 = vadd.f32 %v5939, %v6051
    %v6053 = vpop.f32.mrb[0].mxu0
    %v6054 = vadd.f32 %v5941, %v6053
    %6055 = vmatprep.mubr.bf16.mxu0 %v3555
    %6056 = vmatmul.mubr.bf16.gmra.mrb[0].mxu0 %v3554
    %v6057 = vpop.f32.mrb[0].mxu0
    %v6058 = vadd.f32 %v5945, %v6057
    %v6059 = vpop.f32.mrb[0].mxu0
    %v6060 = vadd.f32 %v5947, %v6059
    %v6061 = vpop.f32.mrb[0].mxu0
    %v6062 = vadd.f32 %v5949, %v6061
    %v6063 = vpop.f32.mrb[0].mxu0
    %v6064 = vadd.f32 %v5951, %v6063
    %6065 = vmatprep.mubr.bf16.mxu0 %v3567
    %6066 = vmatmul.mubr.bf16.gmra.mrb[0].mxu0 %v3566
    %v6067 = vpop.f32.mrb[0].mxu0
    %v6068 = vadd.f32 %v5955, %v6067
    %v6069 = vpop.f32.mrb[0].mxu0
    %v6070 = vadd.f32 %v5957, %v6069
    %v6071 = vpop.f32.mrb[0].mxu0
    %v6072 = vadd.f32 %v5959, %v6071
    %v6073 = vpop.f32.mrb[0].mxu0
    %v6074 = vadd.f32 %v5961, %v6073
    %6075 = vmatprep.mubr.bf16.mxu0 %v3579
    %6076 = vmatmul.mubr.bf16.gmra.mrb[0].mxu0 %v3578
    %v6077 = vpop.f32.mrb[0].mxu0
    %v6078 = vadd.f32 %v5965, %v6077
    %v6079 = vpop.f32.mrb[0].mxu0
    %v6080 = vadd.f32 %v5967, %v6079
    %v6081 = vpop.f32.mrb[0].mxu0
    %v6082 = vadd.f32 %v5969, %v6081
    %v6083 = vpop.f32.mrb[0].mxu0
    %v6084 = vadd.f32 %v5971, %v6083
    %6085 = vmatprep.mubr.bf16.mxu0 %v3591
    %6086 = vmatmul.mubr.bf16.gmra.mrb[0].mxu0 %v3590
    %v6087 = vpop.f32.mrb[0].mxu0
    %v6088 = vadd.f32 %v5975, %v6087
    %v6089 = vpop.f32.mrb[0].mxu0
    %v6090 = vadd.f32 %v5977, %v6089
    %v6091 = vpop.f32.mrb[0].mxu0
    %v6092 = vadd.f32 %v5979, %v6091
    %v6093 = vpop.f32.mrb[0].mxu0
    %v6094 = vadd.f32 %v5981, %v6093
    %6095 = vdwg.mxu0
    %6096 = vmatprep.subr.bf16.mxu0 %v5196
    %6097 = vmatpush1.bf16.msra.mxu0 %v5195
    %6098 = vmatprep.subr.bf16.mxu0 %v5199
    %6099 = vmatpush1.bf16.msra.mxu0 %v5198
    %6100 = vmatprep.subr.bf16.mxu0 %v5202
    %6101 = vmatpush1.bf16.msra.mxu0 %v5201
    %6102 = vmatprep.subr.bf16.mxu0 %v5205
    %6103 = vmatpush1.bf16.msra.mxu0 %v5204
    %6104 = vmatprep.subr.bf16.mxu0 %v5208
    %6105 = vmatpush1.bf16.msra.mxu0 %v5207
    %6106 = vmatprep.subr.bf16.mxu0 %v5211
    %6107 = vmatpush1.bf16.msra.mxu0 %v5210
    %6108 = vmatprep.subr.bf16.mxu0 %v5214
    %6109 = vmatpush1.bf16.msra.mxu0 %v5213
    %6110 = vmatprep.subr.bf16.mxu0 %v5217
    %6111 = vmatpush1.bf16.msra.mxu0 %v5216
    %6112 = vmatprep.subr.bf16.mxu0 %v5220
    %6113 = vmatpush1.bf16.msra.mxu0 %v5219
    %6114 = vmatprep.subr.bf16.mxu0 %v5223
    %6115 = vmatpush1.bf16.msra.mxu0 %v5222
    %6116 = vmatprep.subr.bf16.mxu0 %v5226
    %6117 = vmatpush1.bf16.msra.mxu0 %v5225
    %6118 = vmatprep.subr.bf16.mxu0 %v5229
    %6119 = vmatpush1.bf16.msra.mxu0 %v5228
    %6120 = vmatprep.subr.bf16.mxu0 %v5232
    %6121 = vmatpush1.bf16.msra.mxu0 %v5231
    %6122 = vmatprep.subr.bf16.mxu0 %v5235
    %6123 = vmatpush1.bf16.msra.mxu0 %v5234
    %6124 = vmatprep.subr.bf16.mxu0 %v5238
    %6125 = vmatpush1.bf16.msra.mxu0 %v5237
    %6126 = vmatprep.subr.bf16.mxu0 %v5241
    %6127 = vmatpush1.bf16.msra.mxu0 %v5240
    %6128 = vmatprep.mubr.bf16.mxu0 %v3509
    %6129 = vmatmul.mubr.bf16.gmra.mrb[0].mxu0 %v3508
    %v6130 = vpop.f32.mrb[0].mxu0
    %v6131 = vadd.f32 %v6018, %v6130
    %v6132 = vpop.f32.mrb[0].mxu0
    %v6133 = vadd.f32 %v6020, %v6132
    %v6134 = vpop.f32.mrb[0].mxu0
    %v6135 = vadd.f32 %v6022, %v6134
    %v6136 = vpop.f32.mrb[0].mxu0
    %v6137 = vadd.f32 %v6024, %v6136
    %6138 = vmatprep.mubr.bf16.mxu0 %v3521
    %6139 = vmatmul.mubr.bf16.gmra.mrb[0].mxu0 %v3520
    %v6140 = vpop.f32.mrb[0].mxu0
    %v6141 = vadd.f32 %v6028, %v6140
    %v6142 = vpop.f32.mrb[0].mxu0
    %v6143 = vadd.f32 %v6030, %v6142
    %v6144 = vpop.f32.mrb[0].mxu0
    %v6145 = vadd.f32 %v6032, %v6144
    %v6146 = vpop.f32.mrb[0].mxu0
    %v6147 = vadd.f32 %v6034, %v6146
    %6148 = vmatprep.mubr.bf16.mxu0 %v3533
    %6149 = vmatmul.mubr.bf16.gmra.mrb[0].mxu0 %v3532
    %v6150 = vpop.f32.mrb[0].mxu0
    %v6151 = vadd.f32 %v6038, %v6150
    %v6152 = vpop.f32.mrb[0].mxu0
    %v6153 = vadd.f32 %v6040, %v6152
    %v6154 = vpop.f32.mrb[0].mxu0
    %v6155 = vadd.f32 %v6042, %v6154
    %v6156 = vpop.f32.mrb[0].mxu0
    %v6157 = vadd.f32 %v6044, %v6156
    %6158 = vmatprep.mubr.bf16.mxu0 %v3545
    %6159 = vmatmul.mubr.bf16.gmra.mrb[0].mxu0 %v3544
    %v6160 = vpop.f32.mrb[0].mxu0
    %v6161 = vadd.f32 %v6048, %v6160
    %v6162 = vpop.f32.mrb[0].mxu0
    %v6163 = vadd.f32 %v6050, %v6162
    %v6164 = vpop.f32.mrb[0].mxu0
    %v6165 = vadd.f32 %v6052, %v6164
    %v6166 = vpop.f32.mrb[0].mxu0
    %v6167 = vadd.f32 %v6054, %v6166
    %6168 = vmatprep.mubr.bf16.mxu0 %v3557
    %6169 = vmatmul.mubr.bf16.gmra.mrb[0].mxu0 %v3556
    %v6170 = vpop.f32.mrb[0].mxu0
    %v6171 = vadd.f32 %v6058, %v6170
    %v6172 = vpop.f32.mrb[0].mxu0
    %v6173 = vadd.f32 %v6060, %v6172
    %v6174 = vpop.f32.mrb[0].mxu0
    %v6175 = vadd.f32 %v6062, %v6174
    %v6176 = vpop.f32.mrb[0].mxu0
    %v6177 = vadd.f32 %v6064, %v6176
    %6178 = vmatprep.mubr.bf16.mxu0 %v3569
    %6179 = vmatmul.mubr.bf16.gmra.mrb[0].mxu0 %v3568
    %v6180 = vpop.f32.mrb[0].mxu0
    %v6181 = vadd.f32 %v6068, %v6180
    %v6182 = vpop.f32.mrb[0].mxu0
    %v6183 = vadd.f32 %v6070, %v6182
    %v6184 = vpop.f32.mrb[0].mxu0
    %v6185 = vadd.f32 %v6072, %v6184
    %v6186 = vpop.f32.mrb[0].mxu0
    %v6187 = vadd.f32 %v6074, %v6186
    %6188 = vmatprep.mubr.bf16.mxu0 %v3581
    %6189 = vmatmul.mubr.bf16.gmra.mrb[0].mxu0 %v3580
    %v6190 = vpop.f32.mrb[0].mxu0
    %v6191 = vadd.f32 %v6078, %v6190
    %v6192 = vpop.f32.mrb[0].mxu0
    %v6193 = vadd.f32 %v6080, %v6192
    %v6194 = vpop.f32.mrb[0].mxu0
    %v6195 = vadd.f32 %v6082, %v6194
    %v6196 = vpop.f32.mrb[0].mxu0
    %v6197 = vadd.f32 %v6084, %v6196
    %6198 = vmatprep.mubr.bf16.mxu0 %v3593
    %6199 = vmatmul.mubr.bf16.gmra.mrb[0].mxu0 %v3592
    %v6200 = vpop.f32.mrb[0].mxu0
    %v6201 = vadd.f32 %v6088, %v6200
    %v6202 = vpop.f32.mrb[0].mxu0
    %v6203 = vadd.f32 %v6090, %v6202
    %v6204 = vpop.f32.mrb[0].mxu0
    %v6205 = vadd.f32 %v6092, %v6204
    %v6206 = vpop.f32.mrb[0].mxu0
    %v6207 = vadd.f32 %v6094, %v6206
    %6208 = vdwg.mxu0
    %6209 = vmatprep.subr.bf16.mxu0 0
    %6210 = vmatpush1.bf16.msra.mxu0 %v4957
    %6211 = vmatprep.subr.bf16.mxu0 0
    %6212 = vmatpush1.bf16.msra.mxu0 %v4960
    %6213 = vmatprep.subr.bf16.mxu0 0
    %6214 = vmatpush1.bf16.msra.mxu0 %v4963
    %6215 = vmatprep.subr.bf16.mxu0 0
    %6216 = vmatpush1.bf16.msra.mxu0 %v4966
    %6217 = vmatprep.subr.bf16.mxu0 0
    %6218 = vmatpush1.bf16.msra.mxu0 %v4969
    %6219 = vmatprep.subr.bf16.mxu0 0
    %6220 = vmatpush1.bf16.msra.mxu0 %v4972
    %6221 = vmatprep.subr.bf16.mxu0 0
    %6222 = vmatpush1.bf16.msra.mxu0 %v4975
    %6223 = vmatprep.subr.bf16.mxu0 0
    %6224 = vmatpush1.bf16.msra.mxu0 %v4978
    %6225 = vmatprep.subr.bf16.mxu0 0
    %6226 = vmatpush1.bf16.msra.mxu0 %v4981
    %6227 = vmatprep.subr.bf16.mxu0 0
    %6228 = vmatpush1.bf16.msra.mxu0 %v4984
    %6229 = vmatprep.subr.bf16.mxu0 0
    %6230 = vmatpush1.bf16.msra.mxu0 %v4987
    %6231 = vmatprep.subr.bf16.mxu0 0
    %6232 = vmatpush1.bf16.msra.mxu0 %v4990
    %6233 = vmatprep.subr.bf16.mxu0 0
    %6234 = vmatpush1.bf16.msra.mxu0 %v4993
    %6235 = vmatprep.subr.bf16.mxu0 0
    %6236 = vmatpush1.bf16.msra.mxu0 %v4996
    %6237 = vmatprep.subr.bf16.mxu0 0
    %6238 = vmatpush1.bf16.msra.mxu0 %v4999
    %6239 = vmatprep.subr.bf16.mxu0 0
    %6240 = vmatpush1.bf16.msra.mxu0 %v5002
    %6241 = vmatprep.mubr.bf16.mxu0 %v3499
    %6242 = vmatmul.mubr.bf16.gmra.mrb[0].mxu0 %v3498
    %v6243 = vpop.f32.mrb[0].mxu0
    %v6244 = vadd.f32 %v3991, %v6243
    %v6245 = vpop.f32.mrb[0].mxu0
    %v6246 = vpop.f32.mrb[0].mxu0
    %v6247 = vadd.f32 %v3991, %v6246
    %v6248 = vpop.f32.mrb[0].mxu0
    %6249 = vmatprep.mubr.bf16.mxu0 %v3511
    %6250 = vmatmul.mubr.bf16.gmra.mrb[0].mxu0 %v3510
    %v6251 = vpop.f32.mrb[0].mxu0
    %v6252 = vadd.f32 %v3991, %v6251
    %v6253 = vpop.f32.mrb[0].mxu0
    %v6254 = vpop.f32.mrb[0].mxu0
    %v6255 = vadd.f32 %v3991, %v6254
    %v6256 = vpop.f32.mrb[0].mxu0
    %6257 = vmatprep.mubr.bf16.mxu0 %v3523
    %6258 = vmatmul.mubr.bf16.gmra.mrb[0].mxu0 %v3522
    %v6259 = vpop.f32.mrb[0].mxu0
    %v6260 = vadd.f32 %v3991, %v6259
    %v6261 = vpop.f32.mrb[0].mxu0
    %v6262 = vpop.f32.mrb[0].mxu0
    %v6263 = vadd.f32 %v3991, %v6262
    %v6264 = vpop.f32.mrb[0].mxu0
    %6265 = vmatprep.mubr.bf16.mxu0 %v3535
    %6266 = vmatmul.mubr.bf16.gmra.mrb[0].mxu0 %v3534
    %v6267 = vpop.f32.mrb[0].mxu0
    %v6268 = vadd.f32 %v3991, %v6267
    %v6269 = vpop.f32.mrb[0].mxu0
    %v6270 = vpop.f32.mrb[0].mxu0
    %v6271 = vadd.f32 %v3991, %v6270
    %v6272 = vpop.f32.mrb[0].mxu0
    %6273 = vmatprep.mubr.bf16.mxu0 %v3547
    %6274 = vmatmul.mubr.bf16.gmra.mrb[0].mxu0 %v3546
    %v6275 = vpop.f32.mrb[0].mxu0
    %v6276 = vadd.f32 %v3991, %v6275
    %v6277 = vpop.f32.mrb[0].mxu0
    %v6278 = vpop.f32.mrb[0].mxu0
    %v6279 = vadd.f32 %v3991, %v6278
    %v6280 = vpop.f32.mrb[0].mxu0
    %6281 = vmatprep.mubr.bf16.mxu0 %v3559
    %6282 = vmatmul.mubr.bf16.gmra.mrb[0].mxu0 %v3558
    %v6283 = vpop.f32.mrb[0].mxu0
    %v6284 = vadd.f32 %v3991, %v6283
    %v6285 = vpop.f32.mrb[0].mxu0
    %v6286 = vpop.f32.mrb[0].mxu0
    %v6287 = vadd.f32 %v3991, %v6286
    %v6288 = vpop.f32.mrb[0].mxu0
    %6289 = vmatprep.mubr.bf16.mxu0 %v3571
    %6290 = vmatmul.mubr.bf16.gmra.mrb[0].mxu0 %v3570
    %v6291 = vpop.f32.mrb[0].mxu0
    %v6292 = vadd.f32 %v3991, %v6291
    %v6293 = vpop.f32.mrb[0].mxu0
    %v6294 = vpop.f32.mrb[0].mxu0
    %v6295 = vadd.f32 %v3991, %v6294
    %v6296 = vpop.f32.mrb[0].mxu0
    %6297 = vmatprep.mubr.bf16.mxu0 %v3583
    %6298 = vmatmul.mubr.bf16.gmra.mrb[0].mxu0 %v3582
    %v6299 = vpop.f32.mrb[0].mxu0
    %v6300 = vadd.f32 %v3991, %v6299
    %v6301 = vpop.f32.mrb[0].mxu0
    %v6302 = vpop.f32.mrb[0].mxu0
    %v6303 = vadd.f32 %v3991, %v6302
    %v6304 = vpop.f32.mrb[0].mxu0
    %6305 = vdwg.mxu0
    %6306 = vmatprep.subr.bf16.mxu0 0
    %6307 = vmatpush1.bf16.msra.mxu0 %v5005
    %6308 = vmatprep.subr.bf16.mxu0 0
    %6309 = vmatpush1.bf16.msra.mxu0 %v5008
    %6310 = vmatprep.subr.bf16.mxu0 0
    %6311 = vmatpush1.bf16.msra.mxu0 %v5011
    %6312 = vmatprep.subr.bf16.mxu0 0
    %6313 = vmatpush1.bf16.msra.mxu0 %v5014
    %6314 = vmatprep.subr.bf16.mxu0 0
    %6315 = vmatpush1.bf16.msra.mxu0 %v5017
    %6316 = vmatprep.subr.bf16.mxu0 0
    %6317 = vmatpush1.bf16.msra.mxu0 %v5020
    %6318 = vmatprep.subr.bf16.mxu0 0
    %6319 = vmatpush1.bf16.msra.mxu0 %v5023
    %6320 = vmatprep.subr.bf16.mxu0 0
    %6321 = vmatpush1.bf16.msra.mxu0 %v5026
    %6322 = vmatprep.subr.bf16.mxu0 0
    %6323 = vmatpush1.bf16.msra.mxu0 %v5029
    %6324 = vmatprep.subr.bf16.mxu0 0
    %6325 = vmatpush1.bf16.msra.mxu0 %v5032
    %6326 = vmatprep.subr.bf16.mxu0 0
    %6327 = vmatpush1.bf16.msra.mxu0 %v5035
    %6328 = vmatprep.subr.bf16.mxu0 0
    %6329 = vmatpush1.bf16.msra.mxu0 %v5038
    %6330 = vmatprep.subr.bf16.mxu0 0
    %6331 = vmatpush1.bf16.msra.mxu0 %v5041
    %6332 = vmatprep.subr.bf16.mxu0 0
    %6333 = vmatpush1.bf16.msra.mxu0 %v5044
    %6334 = vmatprep.subr.bf16.mxu0 0
    %6335 = vmatpush1.bf16.msra.mxu0 %v5047
    %6336 = vmatprep.subr.bf16.mxu0 0
    %6337 = vmatpush1.bf16.msra.mxu0 %v5050
    %6338 = vmatprep.mubr.bf16.mxu0 %v3501
    %6339 = vmatmul.mubr.bf16.gmra.mrb[0].mxu0 %v3500
    %v6340 = vpop.f32.mrb[0].mxu0
    %v6341 = vadd.f32 %v6244, %v6340
    %v6342 = vpop.f32.mrb[0].mxu0
    %v6343 = vpop.f32.mrb[0].mxu0
    %v6344 = vadd.f32 %v6247, %v6343
    %v6345 = vpop.f32.mrb[0].mxu0
    %6346 = vmatprep.mubr.bf16.mxu0 %v3513
    %6347 = vmatmul.mubr.bf16.gmra.mrb[0].mxu0 %v3512
    %v6348 = vpop.f32.mrb[0].mxu0
    %v6349 = vadd.f32 %v6252, %v6348
    %v6350 = vpop.f32.mrb[0].mxu0
    %v6351 = vpop.f32.mrb[0].mxu0
    %v6352 = vadd.f32 %v6255, %v6351
    %v6353 = vpop.f32.mrb[0].mxu0
    %6354 = vmatprep.mubr.bf16.mxu0 %v3525
    %6355 = vmatmul.mubr.bf16.gmra.mrb[0].mxu0 %v3524
    %v6356 = vpop.f32.mrb[0].mxu0
    %v6357 = vadd.f32 %v6260, %v6356
    %v6358 = vpop.f32.mrb[0].mxu0
    %v6359 = vpop.f32.mrb[0].mxu0
    %v6360 = vadd.f32 %v6263, %v6359
    %v6361 = vpop.f32.mrb[0].mxu0
    %6362 = vmatprep.mubr.bf16.mxu0 %v3537
    %6363 = vmatmul.mubr.bf16.gmra.mrb[0].mxu0 %v3536
    %v6364 = vpop.f32.mrb[0].mxu0
    %v6365 = vadd.f32 %v6268, %v6364
    %v6366 = vpop.f32.mrb[0].mxu0
    %v6367 = vpop.f32.mrb[0].mxu0
    %v6368 = vadd.f32 %v6271, %v6367
    %v6369 = vpop.f32.mrb[0].mxu0
    %6370 = vmatprep.mubr.bf16.mxu0 %v3549
    %6371 = vmatmul.mubr.bf16.gmra.mrb[0].mxu0 %v3548
    %v6372 = vpop.f32.mrb[0].mxu0
    %v6373 = vadd.f32 %v6276, %v6372
    %v6374 = vpop.f32.mrb[0].mxu0
    %v6375 = vpop.f32.mrb[0].mxu0
    %v6376 = vadd.f32 %v6279, %v6375
    %v6377 = vpop.f32.mrb[0].mxu0
    %6378 = vmatprep.mubr.bf16.mxu0 %v3561
    %6379 = vmatmul.mubr.bf16.gmra.mrb[0].mxu0 %v3560
    %v6380 = vpop.f32.mrb[0].mxu0
    %v6381 = vadd.f32 %v6284, %v6380
    %v6382 = vpop.f32.mrb[0].mxu0
    %v6383 = vpop.f32.mrb[0].mxu0
    %v6384 = vadd.f32 %v6287, %v6383
    %v6385 = vpop.f32.mrb[0].mxu0
    %6386 = vmatprep.mubr.bf16.mxu0 %v3573
    %6387 = vmatmul.mubr.bf16.gmra.mrb[0].mxu0 %v3572
    %v6388 = vpop.f32.mrb[0].mxu0
    %v6389 = vadd.f32 %v6292, %v6388
    %v6390 = vpop.f32.mrb[0].mxu0
    %v6391 = vpop.f32.mrb[0].mxu0
    %v6392 = vadd.f32 %v6295, %v6391
    %v6393 = vpop.f32.mrb[0].mxu0
    %6394 = vmatprep.mubr.bf16.mxu0 %v3585
    %6395 = vmatmul.mubr.bf16.gmra.mrb[0].mxu0 %v3584
    %v6396 = vpop.f32.mrb[0].mxu0
    %v6397 = vadd.f32 %v6300, %v6396
    %v6398 = vpop.f32.mrb[0].mxu0
    %v6399 = vpop.f32.mrb[0].mxu0
    %v6400 = vadd.f32 %v6303, %v6399
    %v6401 = vpop.f32.mrb[0].mxu0
    %6402 = vdwg.mxu0
    %6403 = vmatprep.subr.bf16.mxu0 0
    %6404 = vmatpush1.bf16.msra.mxu0 %v5053
    %6405 = vmatprep.subr.bf16.mxu0 0
    %6406 = vmatpush1.bf16.msra.mxu0 %v5056
    %6407 = vmatprep.subr.bf16.mxu0 0
    %6408 = vmatpush1.bf16.msra.mxu0 %v5059
    %6409 = vmatprep.subr.bf16.mxu0 0
    %6410 = vmatpush1.bf16.msra.mxu0 %v5062
    %6411 = vmatprep.subr.bf16.mxu0 0
    %6412 = vmatpush1.bf16.msra.mxu0 %v5065
    %6413 = vmatprep.subr.bf16.mxu0 0
    %6414 = vmatpush1.bf16.msra.mxu0 %v5068
    %6415 = vmatprep.subr.bf16.mxu0 0
    %6416 = vmatpush1.bf16.msra.mxu0 %v5071
    %6417 = vmatprep.subr.bf16.mxu0 0
    %6418 = vmatpush1.bf16.msra.mxu0 %v5074
    %6419 = vmatprep.subr.bf16.mxu0 0
    %6420 = vmatpush1.bf16.msra.mxu0 %v5077
    %6421 = vmatprep.subr.bf16.mxu0 0
    %6422 = vmatpush1.bf16.msra.mxu0 %v5080
    %6423 = vmatprep.subr.bf16.mxu0 0
    %6424 = vmatpush1.bf16.msra.mxu0 %v5083
    %6425 = vmatprep.subr.bf16.mxu0 0
    %6426 = vmatpush1.bf16.msra.mxu0 %v5086
    %6427 = vmatprep.subr.bf16.mxu0 0
    %6428 = vmatpush1.bf16.msra.mxu0 %v5089
    %6429 = vmatprep.subr.bf16.mxu0 0
    %6430 = vmatpush1.bf16.msra.mxu0 %v5092
    %6431 = vmatprep.subr.bf16.mxu0 0
    %6432 = vmatpush1.bf16.msra.mxu0 %v5095
    %6433 = vmatprep.subr.bf16.mxu0 0
    %6434 = vmatpush1.bf16.msra.mxu0 %v5098
    %6435 = vmatprep.mubr.bf16.mxu0 %v3503
    %6436 = vmatmul.mubr.bf16.gmra.mrb[0].mxu0 %v3502
    %v6437 = vpop.f32.mrb[0].mxu0
    %v6438 = vadd.f32 %v6341, %v6437
    %v6439 = vpop.f32.mrb[0].mxu0
    %v6440 = vpop.f32.mrb[0].mxu0
    %v6441 = vadd.f32 %v6344, %v6440
    %v6442 = vpop.f32.mrb[0].mxu0
    %6443 = vmatprep.mubr.bf16.mxu0 %v3515
    %6444 = vmatmul.mubr.bf16.gmra.mrb[0].mxu0 %v3514
    %v6445 = vpop.f32.mrb[0].mxu0
    %v6446 = vadd.f32 %v6349, %v6445
    %v6447 = vpop.f32.mrb[0].mxu0
    %v6448 = vpop.f32.mrb[0].mxu0
    %v6449 = vadd.f32 %v6352, %v6448
    %v6450 = vpop.f32.mrb[0].mxu0
    %6451 = vmatprep.mubr.bf16.mxu0 %v3527
    %6452 = vmatmul.mubr.bf16.gmra.mrb[0].mxu0 %v3526
    %v6453 = vpop.f32.mrb[0].mxu0
    %v6454 = vadd.f32 %v6357, %v6453
    %v6455 = vpop.f32.mrb[0].mxu0
    %v6456 = vpop.f32.mrb[0].mxu0
    %v6457 = vadd.f32 %v6360, %v6456
    %v6458 = vpop.f32.mrb[0].mxu0
    %6459 = vmatprep.mubr.bf16.mxu0 %v3539
    %6460 = vmatmul.mubr.bf16.gmra.mrb[0].mxu0 %v3538
    %v6461 = vpop.f32.mrb[0].mxu0
    %v6462 = vadd.f32 %v6365, %v6461
    %v6463 = vpop.f32.mrb[0].mxu0
    %v6464 = vpop.f32.mrb[0].mxu0
    %v6465 = vadd.f32 %v6368, %v6464
    %v6466 = vpop.f32.mrb[0].mxu0
    %6467 = vmatprep.mubr.bf16.mxu0 %v3551
    %6468 = vmatmul.mubr.bf16.gmra.mrb[0].mxu0 %v3550
    %v6469 = vpop.f32.mrb[0].mxu0
    %v6470 = vadd.f32 %v6373, %v6469
    %v6471 = vpop.f32.mrb[0].mxu0
    %v6472 = vpop.f32.mrb[0].mxu0
    %v6473 = vadd.f32 %v6376, %v6472
    %v6474 = vpop.f32.mrb[0].mxu0
    %6475 = vmatprep.mubr.bf16.mxu0 %v3563
    %6476 = vmatmul.mubr.bf16.gmra.mrb[0].mxu0 %v3562
    %v6477 = vpop.f32.mrb[0].mxu0
    %v6478 = vadd.f32 %v6381, %v6477
    %v6479 = vpop.f32.mrb[0].mxu0
    %v6480 = vpop.f32.mrb[0].mxu0
    %v6481 = vadd.f32 %v6384, %v6480
    %v6482 = vpop.f32.mrb[0].mxu0
    %6483 = vmatprep.mubr.bf16.mxu0 %v3575
    %6484 = vmatmul.mubr.bf16.gmra.mrb[0].mxu0 %v3574
    %v6485 = vpop.f32.mrb[0].mxu0
    %v6486 = vadd.f32 %v6389, %v6485
    %v6487 = vpop.f32.mrb[0].mxu0
    %v6488 = vpop.f32.mrb[0].mxu0
    %v6489 = vadd.f32 %v6392, %v6488
    %v6490 = vpop.f32.mrb[0].mxu0
    %6491 = vmatprep.mubr.bf16.mxu0 %v3587
    %6492 = vmatmul.mubr.bf16.gmra.mrb[0].mxu0 %v3586
    %v6493 = vpop.f32.mrb[0].mxu0
    %v6494 = vadd.f32 %v6397, %v6493
    %v6495 = vpop.f32.mrb[0].mxu0
    %v6496 = vpop.f32.mrb[0].mxu0
    %v6497 = vadd.f32 %v6400, %v6496
    %v6498 = vpop.f32.mrb[0].mxu0
    %6499 = vdwg.mxu0
    %6500 = vmatprep.subr.bf16.mxu0 0
    %6501 = vmatpush1.bf16.msra.mxu0 %v5101
    %6502 = vmatprep.subr.bf16.mxu0 0
    %6503 = vmatpush1.bf16.msra.mxu0 %v5104
    %6504 = vmatprep.subr.bf16.mxu0 0
    %6505 = vmatpush1.bf16.msra.mxu0 %v5107
    %6506 = vmatprep.subr.bf16.mxu0 0
    %6507 = vmatpush1.bf16.msra.mxu0 %v5110
    %6508 = vmatprep.subr.bf16.mxu0 0
    %6509 = vmatpush1.bf16.msra.mxu0 %v5113
    %6510 = vmatprep.subr.bf16.mxu0 0
    %6511 = vmatpush1.bf16.msra.mxu0 %v5116
    %6512 = vmatprep.subr.bf16.mxu0 0
    %6513 = vmatpush1.bf16.msra.mxu0 %v5119
    %6514 = vmatprep.subr.bf16.mxu0 0
    %6515 = vmatpush1.bf16.msra.mxu0 %v5122
    %6516 = vmatprep.subr.bf16.mxu0 0
    %6517 = vmatpush1.bf16.msra.mxu0 %v5125
    %6518 = vmatprep.subr.bf16.mxu0 0
    %6519 = vmatpush1.bf16.msra.mxu0 %v5128
    %6520 = vmatprep.subr.bf16.mxu0 0
    %6521 = vmatpush1.bf16.msra.mxu0 %v5131
    %6522 = vmatprep.subr.bf16.mxu0 0
    %6523 = vmatpush1.bf16.msra.mxu0 %v5134
    %6524 = vmatprep.subr.bf16.mxu0 0
    %6525 = vmatpush1.bf16.msra.mxu0 %v5137
    %6526 = vmatprep.subr.bf16.mxu0 0
    %6527 = vmatpush1.bf16.msra.mxu0 %v5140
    %6528 = vmatprep.subr.bf16.mxu0 0
    %6529 = vmatpush1.bf16.msra.mxu0 %v5143
    %6530 = vmatprep.subr.bf16.mxu0 0
    %6531 = vmatpush1.bf16.msra.mxu0 %v5146
    %6532 = vmatprep.mubr.bf16.mxu0 %v3505
    %6533 = vmatmul.mubr.bf16.gmra.mrb[0].mxu0 %v3504
    %v6534 = vpop.f32.mrb[0].mxu0
    %v6535 = vadd.f32 %v6438, %v6534
    %v6536 = vpop.f32.mrb[0].mxu0
    %v6537 = vpop.f32.mrb[0].mxu0
    %v6538 = vadd.f32 %v6441, %v6537
    %v6539 = vpop.f32.mrb[0].mxu0
    %6540 = vmatprep.mubr.bf16.mxu0 %v3517
    %6541 = vmatmul.mubr.bf16.gmra.mrb[0].mxu0 %v3516
    %v6542 = vpop.f32.mrb[0].mxu0
    %v6543 = vadd.f32 %v6446, %v6542
    %v6544 = vpop.f32.mrb[0].mxu0
    %v6545 = vpop.f32.mrb[0].mxu0
    %v6546 = vadd.f32 %v6449, %v6545
    %v6547 = vpop.f32.mrb[0].mxu0
    %6548 = vmatprep.mubr.bf16.mxu0 %v3529
    %6549 = vmatmul.mubr.bf16.gmra.mrb[0].mxu0 %v3528
    %v6550 = vpop.f32.mrb[0].mxu0
    %v6551 = vadd.f32 %v6454, %v6550
    %v6552 = vpop.f32.mrb[0].mxu0
    %v6553 = vpop.f32.mrb[0].mxu0
    %v6554 = vadd.f32 %v6457, %v6553
    %v6555 = vpop.f32.mrb[0].mxu0
    %6556 = vmatprep.mubr.bf16.mxu0 %v3541
    %6557 = vmatmul.mubr.bf16.gmra.mrb[0].mxu0 %v3540
    %v6558 = vpop.f32.mrb[0].mxu0
    %v6559 = vadd.f32 %v6462, %v6558
    %v6560 = vpop.f32.mrb[0].mxu0
    %v6561 = vpop.f32.mrb[0].mxu0
    %v6562 = vadd.f32 %v6465, %v6561
    %v6563 = vpop.f32.mrb[0].mxu0
    %6564 = vmatprep.mubr.bf16.mxu0 %v3553
    %6565 = vmatmul.mubr.bf16.gmra.mrb[0].mxu0 %v3552
    %v6566 = vpop.f32.mrb[0].mxu0
    %v6567 = vadd.f32 %v6470, %v6566
    %v6568 = vpop.f32.mrb[0].mxu0
    %v6569 = vpop.f32.mrb[0].mxu0
    %v6570 = vadd.f32 %v6473, %v6569
    %v6571 = vpop.f32.mrb[0].mxu0
    %6572 = vmatprep.mubr.bf16.mxu0 %v3565
    %6573 = vmatmul.mubr.bf16.gmra.mrb[0].mxu0 %v3564
    %v6574 = vpop.f32.mrb[0].mxu0
    %v6575 = vadd.f32 %v6478, %v6574
    %v6576 = vpop.f32.mrb[0].mxu0
    %v6577 = vpop.f32.mrb[0].mxu0
    %v6578 = vadd.f32 %v6481, %v6577
    %v6579 = vpop.f32.mrb[0].mxu0
    %6580 = vmatprep.mubr.bf16.mxu0 %v3577
    %6581 = vmatmul.mubr.bf16.gmra.mrb[0].mxu0 %v3576
    %v6582 = vpop.f32.mrb[0].mxu0
    %v6583 = vadd.f32 %v6486, %v6582
    %v6584 = vpop.f32.mrb[0].mxu0
    %v6585 = vpop.f32.mrb[0].mxu0
    %v6586 = vadd.f32 %v6489, %v6585
    %v6587 = vpop.f32.mrb[0].mxu0
    %6588 = vmatprep.mubr.bf16.mxu0 %v3589
    %6589 = vmatmul.mubr.bf16.gmra.mrb[0].mxu0 %v3588
    %v6590 = vpop.f32.mrb[0].mxu0
    %v6591 = vadd.f32 %v6494, %v6590
    %v6592 = vpop.f32.mrb[0].mxu0
    %v6593 = vpop.f32.mrb[0].mxu0
    %v6594 = vadd.f32 %v6497, %v6593
    %v6595 = vpop.f32.mrb[0].mxu0
    %6596 = vdwg.mxu0
    %6597 = vmatprep.subr.bf16.mxu0 0
    %6598 = vmatpush1.bf16.msra.mxu0 %v5149
    %6599 = vmatprep.subr.bf16.mxu0 0
    %6600 = vmatpush1.bf16.msra.mxu0 %v5152
    %6601 = vmatprep.subr.bf16.mxu0 0
    %6602 = vmatpush1.bf16.msra.mxu0 %v5155
    %6603 = vmatprep.subr.bf16.mxu0 0
    %6604 = vmatpush1.bf16.msra.mxu0 %v5158
    %6605 = vmatprep.subr.bf16.mxu0 0
    %6606 = vmatpush1.bf16.msra.mxu0 %v5161
    %6607 = vmatprep.subr.bf16.mxu0 0
    %6608 = vmatpush1.bf16.msra.mxu0 %v5164
    %6609 = vmatprep.subr.bf16.mxu0 0
    %6610 = vmatpush1.bf16.msra.mxu0 %v5167
    %6611 = vmatprep.subr.bf16.mxu0 0
    %6612 = vmatpush1.bf16.msra.mxu0 %v5170
    %6613 = vmatprep.subr.bf16.mxu0 0
    %6614 = vmatpush1.bf16.msra.mxu0 %v5173
    %6615 = vmatprep.subr.bf16.mxu0 0
    %6616 = vmatpush1.bf16.msra.mxu0 %v5176
    %6617 = vmatprep.subr.bf16.mxu0 0
    %6618 = vmatpush1.bf16.msra.mxu0 %v5179
    %6619 = vmatprep.subr.bf16.mxu0 0
    %6620 = vmatpush1.bf16.msra.mxu0 %v5182
    %6621 = vmatprep.subr.bf16.mxu0 0
    %6622 = vmatpush1.bf16.msra.mxu0 %v5185
    %6623 = vmatprep.subr.bf16.mxu0 0
    %6624 = vmatpush1.bf16.msra.mxu0 %v5188
    %6625 = vmatprep.subr.bf16.mxu0 0
    %6626 = vmatpush1.bf16.msra.mxu0 %v5191
    %6627 = vmatprep.subr.bf16.mxu0 0
    %6628 = vmatpush1.bf16.msra.mxu0 %v5194
    %6629 = vmatprep.mubr.bf16.mxu0 %v3507
    %6630 = vmatmul.mubr.bf16.gmra.mrb[0].mxu0 %v3506
    %v6631 = vpop.f32.mrb[0].mxu0
    %v6632 = vadd.f32 %v6535, %v6631
    %v6633 = vpop.f32.mrb[0].mxu0
    %v6634 = vpop.f32.mrb[0].mxu0
    %v6635 = vadd.f32 %v6538, %v6634
    %v6636 = vpop.f32.mrb[0].mxu0
    %6637 = vmatprep.mubr.bf16.mxu0 %v3519
    %6638 = vmatmul.mubr.bf16.gmra.mrb[0].mxu0 %v3518
    %v6639 = vpop.f32.mrb[0].mxu0
    %v6640 = vadd.f32 %v6543, %v6639
    %v6641 = vpop.f32.mrb[0].mxu0
    %v6642 = vpop.f32.mrb[0].mxu0
    %v6643 = vadd.f32 %v6546, %v6642
    %v6644 = vpop.f32.mrb[0].mxu0
    %6645 = vmatprep.mubr.bf16.mxu0 %v3531
    %6646 = vmatmul.mubr.bf16.gmra.mrb[0].mxu0 %v3530
    %v6647 = vpop.f32.mrb[0].mxu0
    %v6648 = vadd.f32 %v6551, %v6647
    %v6649 = vpop.f32.mrb[0].mxu0
    %v6650 = vpop.f32.mrb[0].mxu0
    %v6651 = vadd.f32 %v6554, %v6650
    %v6652 = vpop.f32.mrb[0].mxu0
    %6653 = vmatprep.mubr.bf16.mxu0 %v3543
    %6654 = vmatmul.mubr.bf16.gmra.mrb[0].mxu0 %v3542
    %v6655 = vpop.f32.mrb[0].mxu0
    %v6656 = vadd.f32 %v6559, %v6655
    %v6657 = vpop.f32.mrb[0].mxu0
    %v6658 = vpop.f32.mrb[0].mxu0
    %v6659 = vadd.f32 %v6562, %v6658
    %v6660 = vpop.f32.mrb[0].mxu0
    %6661 = vmatprep.mubr.bf16.mxu0 %v3555
    %6662 = vmatmul.mubr.bf16.gmra.mrb[0].mxu0 %v3554
    %v6663 = vpop.f32.mrb[0].mxu0
    %v6664 = vadd.f32 %v6567, %v6663
    %v6665 = vpop.f32.mrb[0].mxu0
    %v6666 = vpop.f32.mrb[0].mxu0
    %v6667 = vadd.f32 %v6570, %v6666
    %v6668 = vpop.f32.mrb[0].mxu0
    %6669 = vmatprep.mubr.bf16.mxu0 %v3567
    %6670 = vmatmul.mubr.bf16.gmra.mrb[0].mxu0 %v3566
    %v6671 = vpop.f32.mrb[0].mxu0
    %v6672 = vadd.f32 %v6575, %v6671
    %v6673 = vpop.f32.mrb[0].mxu0
    %v6674 = vpop.f32.mrb[0].mxu0
    %v6675 = vadd.f32 %v6578, %v6674
    %v6676 = vpop.f32.mrb[0].mxu0
    %6677 = vmatprep.mubr.bf16.mxu0 %v3579
    %6678 = vmatmul.mubr.bf16.gmra.mrb[0].mxu0 %v3578
    %v6679 = vpop.f32.mrb[0].mxu0
    %v6680 = vadd.f32 %v6583, %v6679
    %v6681 = vpop.f32.mrb[0].mxu0
    %v6682 = vpop.f32.mrb[0].mxu0
    %v6683 = vadd.f32 %v6586, %v6682
    %v6684 = vpop.f32.mrb[0].mxu0
    %6685 = vmatprep.mubr.bf16.mxu0 %v3591
    %6686 = vmatmul.mubr.bf16.gmra.mrb[0].mxu0 %v3590
    %v6687 = vpop.f32.mrb[0].mxu0
    %v6688 = vadd.f32 %v6591, %v6687
    %v6689 = vpop.f32.mrb[0].mxu0
    %v6690 = vpop.f32.mrb[0].mxu0
    %v6691 = vadd.f32 %v6594, %v6690
    %v6692 = vpop.f32.mrb[0].mxu0
    %6693 = vdwg.mxu0
    %6694 = vmatprep.subr.bf16.mxu0 0
    %6695 = vmatpush1.bf16.msra.mxu0 %v5197
    %6696 = vmatprep.subr.bf16.mxu0 0
    %6697 = vmatpush1.bf16.msra.mxu0 %v5200
    %6698 = vmatprep.subr.bf16.mxu0 0
    %6699 = vmatpush1.bf16.msra.mxu0 %v5203
    %6700 = vmatprep.subr.bf16.mxu0 0
    %6701 = vmatpush1.bf16.msra.mxu0 %v5206
    %6702 = vmatprep.subr.bf16.mxu0 0
    %6703 = vmatpush1.bf16.msra.mxu0 %v5209
    %6704 = vmatprep.subr.bf16.mxu0 0
    %6705 = vmatpush1.bf16.msra.mxu0 %v5212
    %6706 = vmatprep.subr.bf16.mxu0 0
    %6707 = vmatpush1.bf16.msra.mxu0 %v5215
    %6708 = vmatprep.subr.bf16.mxu0 0
    %6709 = vmatpush1.bf16.msra.mxu0 %v5218
    %6710 = vmatprep.subr.bf16.mxu0 0
    %6711 = vmatpush1.bf16.msra.mxu0 %v5221
    %6712 = vmatprep.subr.bf16.mxu0 0
    %6713 = vmatpush1.bf16.msra.mxu0 %v5224
    %6714 = vmatprep.subr.bf16.mxu0 0
    %6715 = vmatpush1.bf16.msra.mxu0 %v5227
    %6716 = vmatprep.subr.bf16.mxu0 0
    %6717 = vmatpush1.bf16.msra.mxu0 %v5230
    %6718 = vmatprep.subr.bf16.mxu0 0
    %6719 = vmatpush1.bf16.msra.mxu0 %v5233
    %6720 = vmatprep.subr.bf16.mxu0 0
    %6721 = vmatpush1.bf16.msra.mxu0 %v5236
    %6722 = vmatprep.subr.bf16.mxu0 0
    %6723 = vmatpush1.bf16.msra.mxu0 %v5239
    %6724 = vmatprep.subr.bf16.mxu0 0
    %6725 = vmatpush1.bf16.msra.mxu0 %v5242
    %6726 = vmatprep.mubr.bf16.mxu0 %v3509
    %6727 = vmatmul.mubr.bf16.gmra.mrb[0].mxu0 %v3508
    %v6728 = vpop.f32.mrb[0].mxu0
    %v6729 = vadd.f32 %v6632, %v6728
    %v6730 = vpop.f32.mrb[0].mxu0
    %v6731 = vpop.f32.mrb[0].mxu0
    %v6732 = vadd.f32 %v6635, %v6731
    %v6733 = vpop.f32.mrb[0].mxu0
    %6734 = vmatprep.mubr.bf16.mxu0 %v3521
    %6735 = vmatmul.mubr.bf16.gmra.mrb[0].mxu0 %v3520
    %v6736 = vpop.f32.mrb[0].mxu0
    %v6737 = vadd.f32 %v6640, %v6736
    %v6738 = vpop.f32.mrb[0].mxu0
    %v6739 = vpop.f32.mrb[0].mxu0
    %v6740 = vadd.f32 %v6643, %v6739
    %v6741 = vpop.f32.mrb[0].mxu0
    %6742 = vmatprep.mubr.bf16.mxu0 %v3533
    %6743 = vmatmul.mubr.bf16.gmra.mrb[0].mxu0 %v3532
    %v6744 = vpop.f32.mrb[0].mxu0
    %v6745 = vadd.f32 %v6648, %v6744
    %v6746 = vpop.f32.mrb[0].mxu0
    %v6747 = vpop.f32.mrb[0].mxu0
    %v6748 = vadd.f32 %v6651, %v6747
    %v6749 = vpop.f32.mrb[0].mxu0
    %6750 = vmatprep.mubr.bf16.mxu0 %v3545
    %6751 = vmatmul.mubr.bf16.gmra.mrb[0].mxu0 %v3544
    %v6752 = vpop.f32.mrb[0].mxu0
    %v6753 = vadd.f32 %v6656, %v6752
    %v6754 = vpop.f32.mrb[0].mxu0
    %v6755 = vpop.f32.mrb[0].mxu0
    %v6756 = vadd.f32 %v6659, %v6755
    %v6757 = vpop.f32.mrb[0].mxu0
    %6758 = vmatprep.mubr.bf16.mxu0 %v3557
    %6759 = vmatmul.mubr.bf16.gmra.mrb[0].mxu0 %v3556
    %v6760 = vpop.f32.mrb[0].mxu0
    %v6761 = vadd.f32 %v6664, %v6760
    %v6762 = vpop.f32.mrb[0].mxu0
    %v6763 = vpop.f32.mrb[0].mxu0
    %v6764 = vadd.f32 %v6667, %v6763
    %v6765 = vpop.f32.mrb[0].mxu0
    %6766 = vmatprep.mubr.bf16.mxu0 %v3569
    %6767 = vmatmul.mubr.bf16.gmra.mrb[0].mxu0 %v3568
    %v6768 = vpop.f32.mrb[0].mxu0
    %v6769 = vadd.f32 %v6672, %v6768
    %v6770 = vpop.f32.mrb[0].mxu0
    %v6771 = vpop.f32.mrb[0].mxu0
    %v6772 = vadd.f32 %v6675, %v6771
    %v6773 = vpop.f32.mrb[0].mxu0
    %6774 = vmatprep.mubr.bf16.mxu0 %v3581
    %6775 = vmatmul.mubr.bf16.gmra.mrb[0].mxu0 %v3580
    %v6776 = vpop.f32.mrb[0].mxu0
    %v6777 = vadd.f32 %v6680, %v6776
    %v6778 = vpop.f32.mrb[0].mxu0
    %v6779 = vpop.f32.mrb[0].mxu0
    %v6780 = vadd.f32 %v6683, %v6779
    %v6781 = vpop.f32.mrb[0].mxu0
    %6782 = vmatprep.mubr.bf16.mxu0 %v3593
    %6783 = vmatmul.mubr.bf16.gmra.mrb[0].mxu0 %v3592
    %v6784 = vpop.f32.mrb[0].mxu0
    %v6785 = vadd.f32 %v6688, %v6784
    %v6786 = vpop.f32.mrb[0].mxu0
    %v6787 = vpop.f32.mrb[0].mxu0
    %v6788 = vadd.f32 %v6691, %v6787
    %v6789 = vpop.f32.mrb[0].mxu0
    %6790 = vdwg.mxu0
    %6791 = vst [vmem:[#allocation11] sm:$0xff] %v6131
    %6792 = vst [vmem:[#allocation11 + $0x8] sm:$0xff] %v6133
    %6793 = vst [vmem:[#allocation11 + $0x10] sm:$0xff] %v6729
    %6794 = vst [vmem:[#allocation11 + $0x18] sm:$0xff] %v6135
    %6795 = vst [vmem:[#allocation11 + $0x20] sm:$0xff] %v6137
    %6796 = vst [vmem:[#allocation11 + $0x28] sm:$0xff] %v6732
    %6797 = vst [vmem:[#allocation11 + $0x30] sm:$0xff] %v6141
    %6798 = vst [vmem:[#allocation11 + $0x38] sm:$0xff] %v6143
    %6799 = vst [vmem:[#allocation11 + $0x40] sm:$0xff] %v6737
    %6800 = vst [vmem:[#allocation11 + $0x48] sm:$0xff] %v6145
    %6801 = vst [vmem:[#allocation11 + $0x50] sm:$0xff] %v6147
    %6802 = vst [vmem:[#allocation11 + $0x58] sm:$0xff] %v6740
    %6803 = vst [vmem:[#allocation11 + $0x60] sm:$0xff] %v6151
    %6804 = vst [vmem:[#allocation11 + $0x68] sm:$0xff] %v6153
    %6805 = vst [vmem:[#allocation11 + $0x70] sm:$0xff] %v6745
    %6806 = vst [vmem:[#allocation11 + $0x78] sm:$0xff] %v6155
    %6807 = vst [vmem:[#allocation11 + $0x80] sm:$0xff] %v6157
    %6808 = vst [vmem:[#allocation11 + $0x88] sm:$0xff] %v6748
    %6809 = vst [vmem:[#allocation11 + $0x90] sm:$0xff] %v6161
    %6810 = vst [vmem:[#allocation11 + $0x98] sm:$0xff] %v6163
    %6811 = vst [vmem:[#allocation11 + $0xa0] sm:$0xff] %v6753
    %6812 = vst [vmem:[#allocation11 + $0xa8] sm:$0xff] %v6165
    %6813 = vst [vmem:[#allocation11 + $0xb0] sm:$0xff] %v6167
    %6814 = vst [vmem:[#allocation11 + $0xb8] sm:$0xff] %v6756
    %6815 = vst [vmem:[#allocation11 + $0xc0] sm:$0xff] %v6171
    %6816 = vst [vmem:[#allocation11 + $0xc8] sm:$0xff] %v6173
    %6817 = vst [vmem:[#allocation11 + $0xd0] sm:$0xff] %v6761
    %6818 = vst [vmem:[#allocation11 + $0xd8] sm:$0xff] %v6175
    %6819 = vst [vmem:[#allocation11 + $0xe0] sm:$0xff] %v6177
    %6820 = vst [vmem:[#allocation11 + $0xe8] sm:$0xff] %v6764
    %6821 = vst [vmem:[#allocation11 + $0xf0] sm:$0xff] %v6181
    %6822 = vst [vmem:[#allocation11 + $0xf8] sm:$0xff] %v6183
    %6823 = vst [vmem:[#allocation11 + $0x100] sm:$0xff] %v6769
    %6824 = vst [vmem:[#allocation11 + $0x108] sm:$0xff] %v6185
    %6825 = vst [vmem:[#allocation11 + $0x110] sm:$0xff] %v6187
    %6826 = vst [vmem:[#allocation11 + $0x118] sm:$0xff] %v6772
    %6827 = vst [vmem:[#allocation11 + $0x120] sm:$0xff] %v6191
    %6828 = vst [vmem:[#allocation11 + $0x128] sm:$0xff] %v6193
    %6829 = vst [vmem:[#allocation11 + $0x130] sm:$0xff] %v6777
    %6830 = vst [vmem:[#allocation11 + $0x138] sm:$0xff] %v6195
    %6831 = vst [vmem:[#allocation11 + $0x140] sm:$0xff] %v6197
    %6832 = vst [vmem:[#allocation11 + $0x148] sm:$0xff] %v6780
    %6833 = vst [vmem:[#allocation11 + $0x150] sm:$0xff] %v6201
    %6834 = vst [vmem:[#allocation11 + $0x158] sm:$0xff] %v6203
    %6835 = vst [vmem:[#allocation11 + $0x160] sm:$0xff] %v6785
    %6836 = vst [vmem:[#allocation11 + $0x168] sm:$0xff] %v6205
    %6837 = vst [vmem:[#allocation11 + $0x170] sm:$0xff] %v6207
    %6838 = vst [vmem:[#allocation11 + $0x178] sm:$0xff] %v6788
    // Predicated region
    $region42: #{tpu_custom_call.1} parent=1 // pred_check
      _
    $region43: #{tpu_custom_call.1} parent=1 // pred_check_branch
      %6840 = sbr.rel (0) target = $region45
    $region44: #{tpu_custom_call.1} parent=1 // pred_region
      %s6842 = ssub.s32 6144, 6144
      %6843 = vsyncadd [#allocation4], %s6842
      %s6844 = sshll.u32 [#allocation11], 4
      %s6845 = int_to_ptr.vmem [resolvable:$true] %s6844
      %6850 = dma.vmem_to_hbm [thread:$0]  %s6845, 6144, %s5, [#allocation4], 384, 384, 24
    $region45: #{tpu_custom_call.1} parent=1 // pred_fallthru
      _
    // Predicated region
    $region46: #{tpu_custom_call.1} parent=1 // pred_check
      _
    $region47: #{tpu_custom_call.1} parent=1 // pred_check_branch
      %6852 = sbr.rel (0) target = $region49
    $region48: #{tpu_custom_call.1} parent=1 // pred_region
      %6853 = dma.done [#allocation4], 6144
    $region49: #{tpu_custom_call.1} parent=1 // pred_fallthru
      _
    %6854 = vsyncpa [#allocation3], 1
    %6855 = vsyncpa [#allocation6], 1
    %6856 = vsyncpa [#allocation9], 1
    %6857 = vsyncpa [#allocation4], 1

</llo_original>
